<compile_context>
chip_gen: v5e
topology: v5e:2x2
jax: 0.10.0
libtpu: 0.0.40
codegen_flags: <defaults>
</compile_context>

<pallas_src>
import functools

import jax
import jax.numpy as jnp
from jax import lax
from jax.experimental import pallas as pl
from jax.experimental.pallas import tpu as pltpu


def cbam_kernel(x_ref, w1_ref, w2_ref, wmap_ref, o_ref, *, H, W, C, K, Bblk):
    """One grid step: Bblk images, each a lane-dense (C, H*W) tile.

    x_ref    : (Bblk, C, HW)  input block
    w1_ref   : (Cr, C)        first 1x1-conv weight of the shared MLP
    w2_ref   : (C, Cr)        second 1x1-conv weight of the shared MLP
    wmap_ref : (2*K*K, HW)    border-masked spatial-conv weight maps,
                              rows [2t, 2t+1] = (w_max, w_mean) of tap t
    o_ref    : (Bblk, C, HW)  output block
    """
    HW = H * W
    pad = K // 2

    w1 = w1_ref[...]                                   # (Cr, C) tiny, resident
    w2 = w2_ref[...]                                   # (C, Cr)

    # Static unroll over the batch tile: one grid step per Bblk images
    # (amortizes per-grid-step overhead on single-TensorCore parts).
    for b in range(Bblk):
        xf = x_ref[b].astype(jnp.float32)              # (C, HW)

        # -------- channel attention: single fused MLP matmul chain ----------
        mx = jnp.max(xf, axis=1, keepdims=True)        # (C, 1)
        av = jnp.sum(xf, axis=1, keepdims=True) * (1.0 / HW)
        col = lax.broadcasted_iota(jnp.int32, (C, 2), 1)
        pooled = jnp.where(col == 0, mx, av)           # (C, 2): cols [max, mean]

        h = jnp.dot(w1, pooled, preferred_element_type=jnp.float32,
                    precision=lax.Precision.HIGHEST)   # (Cr, 2)
        h = jnp.maximum(h, 0.0)
        y = jnp.dot(w2, h, preferred_element_type=jnp.float32,
                    precision=lax.Precision.HIGHEST)   # (C, 2)
        # sigmoid(max_out + avg_out) == sigmoid(sum over the two columns)
        catt = jax.nn.sigmoid(jnp.sum(y, axis=1, keepdims=True))   # (C, 1)

        xg = xf * catt                                 # gated value, never stored

        # -------- spatial attention ------------------------------------------
        cmax = jnp.max(xg, axis=0, keepdims=True)      # (1, HW)
        cmean = jnp.sum(xg, axis=0, keepdims=True) * (1.0 / C)
        rsel = lax.broadcasted_iota(jnp.int32, (2, HW), 0)
        stacked = jnp.where(rsel == 0, cmax, cmean)    # (2, HW): rows [max, mean]

        # "same"-padding KxK cross-correlation on the flat maps: one lane roll
        # per tap of the stacked pair times its precomputed border-masked
        # weight map.  Dual accumulators restore ILP; the center tap (shift 0)
        # skips its roll.
        acc0 = jnp.zeros((2, HW), jnp.float32)
        acc1 = jnp.zeros((2, HW), jnp.float32)
        for dh in range(K):
            for dw in range(K):
                tap = dh * K + dw
                s = (dh - pad) * W + (dw - pad)        # flat shift
                rolled = stacked if s == 0 else pltpu.roll(stacked, (-s) % HW, axis=1)
                term = wmap_ref[pl.ds(2 * tap, 2), :] * rolled
                if tap & 1:
                    acc1 = acc1 + term
                else:
                    acc0 = acc0 + term
        conv = jnp.sum(acc0 + acc1, axis=0, keepdims=True)   # (1, HW)
        satt = jax.nn.sigmoid(conv)

        # output = (x * channel_att) * spatial_att; one dense lane-aligned store.
        o_ref[b] = (xg * satt).astype(o_ref.dtype)


def _pick_batch_block(B, C, HW, itemsize):
    """Batch tile per grid step.

    Single-TC parts (v5e/v6e): fuse the whole batch to amortize ~0.35us/step
    grid overhead.  v7x (2 TCs/chip): keep >= 2 grid steps so both cores work.
    """
    try:
        kind = jax.devices()[0].device_kind.lower()
    except Exception:
        kind = ""
    if "v7" in kind:
        bblk = max(1, B // 2)
    else:
        bblk = min(B, 8)
    # Keep the double-buffered in/out blocks comfortably small.
    max_by_vmem = max(1, (4 << 20) // max(1, 4 * C * HW * itemsize))
    bblk = min(bblk, max_by_vmem)
    while B % bblk != 0:
        bblk -= 1
    return max(bblk, 1)


def cbam_forward(x, w1, w2, wsp, *, spatial_kernel=7):
    """CBAM forward.  x: (B,C,H,W); w1: (Cr,C); w2: (C,Cr); wsp: (1,2,K,K)."""
    B, C, H, W = x.shape
    Cr = w1.shape[0]
    K = spatial_kernel
    HW = H * W
    assert C % 8 == 0 and HW % 128 == 0, (
        "kernel assumes sublane/lane-dense tiles: need C % 8 == 0 and H*W % 128 == 0")
    # TODO(synk): add a pad-and-mask path for shapes that are not (8,128)-dense.

    x_flat = x.reshape(B, C, HW)                       # lane-dense view (NCHW contiguous)
    w1f = w1.astype(jnp.float32)
    w2f = w2.astype(jnp.float32)

    # Precompute per-tap border-masked weight maps:
    #   wmap[2*t + c, p] = wsp[0, c, dh, dw] * valid(p, dh, dw)
    pad = K // 2
    p = jnp.arange(HW)
    row = (p // W)[None, None, :]                      # (1,1,HW)
    col = (p % W)[None, None, :]
    oh = (jnp.arange(K) - pad)[:, None, None]          # (K,1,1)
    ow = (jnp.arange(K) - pad)[None, :, None]          # (1,K,1)
    valid = ((row + oh >= 0) & (row + oh < H) &
             (col + ow >= 0) & (col + ow < W)).astype(jnp.float32)    # (K,K,HW)
    wsp2 = wsp.reshape(2, K, K).astype(jnp.float32)                   # [w_max, w_mean]
    wmap = wsp2[:, :, :, None] * valid[None]                          # (2,K,K,HW)
    wmap = jnp.transpose(wmap, (1, 2, 0, 3)).reshape(2 * K * K, HW)   # tap-major rows

    Bblk = _pick_batch_block(B, C, HW, jnp.dtype(x.dtype).itemsize)

    # VMEM budget: double-buffered in/out blocks + resident weight maps + slack,
    # capped at 32 MiB so the same request fits v7x's smaller per-TC VMEM.
    blk_bytes = Bblk * C * HW * jnp.dtype(x.dtype).itemsize
    vmem_limit = int(min(max(8 * blk_bytes + int(wmap.size) * 4 + (4 << 20), 8 << 20),
                         32 << 20))

    kernel = functools.partial(cbam_kernel, H=H, W=W, C=C, K=K, Bblk=Bblk)
    out_flat = pl.pallas_call(
        kernel,
        out_shape=jax.ShapeDtypeStruct((B, C, HW), x.dtype),
        grid=(B // Bblk,),
        in_specs=[
            pl.BlockSpec((Bblk, C, HW), lambda i: (i, 0, 0)),
            pl.BlockSpec((Cr, C), lambda i: (0, 0)),
            pl.BlockSpec((C, Cr), lambda i: (0, 0)),
            pl.BlockSpec((2 * K * K, HW), lambda i: (0, 0)),
        ],
        out_specs=pl.BlockSpec((Bblk, C, HW), lambda i: (i, 0, 0)),
        compiler_params=pltpu.CompilerParams(
            dimension_semantics=("parallel",),         # batch tiles are independent
            vmem_limit_bytes=vmem_limit),
    )(x_flat, w1f, w2f, wmap)
    return out_flat.reshape(B, C, H, W)


def cbam_reference(x, w1, w2, wsp):
    """Pure-JAX reference mirroring the PyTorch forward (NCHW)."""
    mx = jnp.max(x, axis=(2, 3))
    av = jnp.mean(x, axis=(2, 3))

    def mlp(v):
        h = jax.nn.relu(jnp.einsum("bc,jc->bj", v, w1,
                                   precision=lax.Precision.HIGHEST))
        return jnp.einsum("bj,kj->bk", h, w2, precision=lax.Precision.HIGHEST)

    catt = jax.nn.sigmoid(mlp(mx) + mlp(av))[:, :, None, None]
    x2 = x * catt
    cmax = jnp.max(x2, axis=1, keepdims=True)
    cmean = jnp.mean(x2, axis=1, keepdims=True)
    stacked = jnp.concatenate([cmax, cmean], axis=1)
    pad = wsp.shape[-1] // 2
    conv = lax.conv_general_dilated(
        stacked, wsp, window_strides=(1, 1), padding=((pad, pad), (pad, pad)),
        dimension_numbers=("NCHW", "OIHW", "NCHW"),
        precision=lax.Precision.HIGHEST)
    satt = jax.nn.sigmoid(conv)
    return x2 * satt


if __name__ == "__main__":
    # channel >= reduction (16) so the MLP bottleneck is non-empty;
    # H*W = 256 keeps the kernel's lane dimension 128-dense.
    B, C, H, W = 2, 64, 16, 16
    reduction, K = 16, 7
    Cr = C // reduction

    key = jax.random.PRNGKey(0)
    kx, k1, k2, k3 = jax.random.split(key, 4)
    x = jax.random.normal(kx, (B, C, H, W), jnp.float32)
    w1 = jax.random.normal(k1, (Cr, C), jnp.float32) * (1.0 / jnp.sqrt(C))
    w2 = jax.random.normal(k2, (C, Cr), jnp.float32) * (1.0 / jnp.sqrt(Cr))
    wsp = jax.random.normal(k3, (1, 2, K, K), jnp.float32) * (1.0 / jnp.sqrt(2.0 * K * K))

    out = jax.block_until_ready(cbam_forward(x, w1, w2, wsp, spatial_kernel=K))

    ref = cbam_reference(x, w1, w2, wsp)
    err = float(jnp.max(jnp.abs(out - ref)))
    assert jnp.allclose(out, ref, atol=1e-4, rtol=1e-4), f"max abs err {err}"
    print("KERNEL_OK")
</pallas_src>

<mosaic_0001>
module attributes {stable_mosaic.version = 11 : i64} {
  func.func @cbam_kernel(%arg0: i32, %arg1: memref<2x64x256xf32, #tpu.memory_space<vmem>>, %arg2: memref<4x64xf32, #tpu.memory_space<vmem>>, %arg3: memref<64x4xf32, #tpu.memory_space<vmem>>, %arg4: memref<98x256xf32, #tpu.memory_space<vmem>>, %arg5: memref<2x64x256xf32, #tpu.memory_space<vmem>>) attributes {dimension_semantics = [#tpu.dimension_semantics<parallel>], iteration_bounds = array<i64: 1>, scalar_prefetch = 0 : i64, scratch_operands = 0 : i64, tpu.core_type = #tpu.core_type<tc>, window_params = [{transform_indices = @transform_0, window_bounds = array<i64: 2, 64, 256>}, {pipeline_mode = #tpu.pipeline_mode<synchronous>, transform_indices = @transform_1, window_bounds = array<i64: 4, 64>}, {pipeline_mode = #tpu.pipeline_mode<synchronous>, transform_indices = @transform_2, window_bounds = array<i64: 64, 4>}, {pipeline_mode = #tpu.pipeline_mode<synchronous>, transform_indices = @transform_3, window_bounds = array<i64: 98, 256>}, {transform_indices = @transform_4, window_bounds = array<i64: 2, 64, 256>}]} {
    %c0 = arith.constant 0 : index
    %c0_0 = arith.constant 0 : index
    %0 = vector.load %arg2[%c0, %c0_0] : memref<4x64xf32, #tpu.memory_space<vmem>>, vector<4x64xf32>
    %c0_1 = arith.constant 0 : index
    %c0_2 = arith.constant 0 : index
    %1 = vector.load %arg3[%c0_1, %c0_2] : memref<64x4xf32, #tpu.memory_space<vmem>>, vector<64x4xf32>
    %c0_3 = arith.constant 0 : index
    %c0_4 = arith.constant 0 : index
    %c0_5 = arith.constant 0 : index
    %2 = vector.load %arg1[%c0_3, %c0_4, %c0_5] : memref<2x64x256xf32, #tpu.memory_space<vmem>>, vector<1x64x256xf32>
    %3 = vector.shape_cast %2 : vector<1x64x256xf32> to vector<64x256xf32>
    %cst = arith.constant dense<0xFF800000> : vector<64xf32>
    %4 = vector.multi_reduction <maximumf>, %3, %cst [1] : vector<64x256xf32> to vector<64xf32>
    %5 = vector.shape_cast %4 : vector<64xf32> to vector<64x1xf32>
    %cst_6 = arith.constant dense<0.000000e+00> : vector<64xf32>
    %6 = vector.multi_reduction <add>, %3, %cst_6 [1] : vector<64x256xf32> to vector<64xf32>
    %7 = vector.shape_cast %6 : vector<64xf32> to vector<64x1xf32>
    %cst_7 = arith.constant 3.906250e-03 : f32
    %8 = vector.broadcast %cst_7 : f32 to vector<64x1xf32>
    %9 = arith.mulf %7, %8 : vector<64x1xf32>
    %10 = tpu.iota {dimensions = array<i32: 1>} : vector<64x2xi32>
    %c0_i32 = arith.constant 0 : i32
    %11 = vector.broadcast %c0_i32 : i32 to vector<64x2xi32>
    %12 = arith.cmpi eq, %10, %11 : vector<64x2xi32>
    %13 = vector.shape_cast %5 : vector<64x1xf32> to vector<64x1xf32>
    %14 = vector.broadcast %13 : vector<64x1xf32> to vector<64x2xf32>
    %15 = vector.shape_cast %9 : vector<64x1xf32> to vector<64x1xf32>
    %16 = vector.broadcast %15 : vector<64x1xf32> to vector<64x2xf32>
    %17 = arith.select %12, %14, %16 : vector<64x2xi1>, vector<64x2xf32>
    %cst_8 = arith.constant dense<0.000000e+00> : vector<4x2xf32>
    %18 = tpu.matmul %0, %17, %cst_8 {dimension_numbers = #tpu.dot_dimension_numbers<[1], [0], [0], [1], [0, 0, 1, 1], [], []>, precision = #tpu.contract_precision<fp32>} : vector<4x64xf32>, vector<64x2xf32>, vector<4x2xf32> -> vector<4x2xf32>
    %cst_9 = arith.constant 0.000000e+00 : f32
    %19 = vector.broadcast %cst_9 : f32 to vector<4x2xf32>
    %20 = arith.maximumf %18, %19 : vector<4x2xf32>
    %cst_10 = arith.constant dense<0.000000e+00> : vector<64x2xf32>
    %21 = tpu.matmul %1, %20, %cst_10 {dimension_numbers = #tpu.dot_dimension_numbers<[1], [0], [0], [1], [0, 0, 1, 1], [], []>, precision = #tpu.contract_precision<fp32>} : vector<64x4xf32>, vector<4x2xf32>, vector<64x2xf32> -> vector<64x2xf32>
    %cst_11 = arith.constant dense<0.000000e+00> : vector<64xf32>
    %22 = vector.multi_reduction <add>, %21, %cst_11 [1] : vector<64x2xf32> to vector<64xf32>
    %23 = vector.shape_cast %22 : vector<64xf32> to vector<64x1xf32>
    %24 = arith.negf %23 : vector<64x1xf32>
    %25 = math.exp %24 : vector<64x1xf32>
    %cst_12 = arith.constant 1.000000e+00 : f32
    %26 = vector.broadcast %cst_12 : f32 to vector<64x1xf32>
    %27 = arith.addf %26, %25 : vector<64x1xf32>
    %28 = arith.divf %26, %27 : vector<64x1xf32>
    %29 = vector.broadcast %28 : vector<64x1xf32> to vector<64x256xf32>
    %30 = arith.mulf %3, %29 : vector<64x256xf32>
    %cst_13 = arith.constant dense<0xFF800000> : vector<256xf32>
    %31 = vector.multi_reduction <maximumf>, %30, %cst_13 [0] : vector<64x256xf32> to vector<256xf32>
    %32 = vector.shape_cast %31 : vector<256xf32> to vector<1x256xf32>
    %cst_14 = arith.constant dense<0.000000e+00> : vector<256xf32>
    %33 = vector.multi_reduction <add>, %30, %cst_14 [0] : vector<64x256xf32> to vector<256xf32>
    %34 = vector.shape_cast %33 : vector<256xf32> to vector<1x256xf32>
    %cst_15 = arith.constant 1.562500e-02 : f32
    %35 = vector.broadcast %cst_15 : f32 to vector<1x256xf32>
    %36 = arith.mulf %34, %35 : vector<1x256xf32>
    %37 = tpu.iota {dimensions = array<i32: 0>} : vector<2x256xi32>
    %c0_i32_16 = arith.constant 0 : i32
    %38 = vector.broadcast %c0_i32_16 : i32 to vector<2x256xi32>
    %39 = arith.cmpi eq, %37, %38 : vector<2x256xi32>
    %40 = vector.shape_cast %32 : vector<1x256xf32> to vector<1x256xf32>
    %41 = vector.broadcast %40 : vector<1x256xf32> to vector<2x256xf32>
    %42 = vector.shape_cast %36 : vector<1x256xf32> to vector<1x256xf32>
    %43 = vector.broadcast %42 : vector<1x256xf32> to vector<2x256xf32>
    %44 = arith.select %39, %41, %43 : vector<2x256xi1>, vector<2x256xf32>
    %cst_17 = arith.constant 0.000000e+00 : f32
    %45 = vector.broadcast %cst_17 : f32 to vector<2x256xf32>
    %cst_18 = arith.constant 0.000000e+00 : f32
    %46 = vector.broadcast %cst_18 : f32 to vector<2x256xf32>
    %c51_i32 = arith.constant 51 : i32
    %47 = tpu.dynamic_rotate %44 by %c51_i32 dim 1 : vector<2x256xf32>, i32 -> vector<2x256xf32>
    %c0_19 = arith.constant 0 : index
    %c0_20 = arith.constant 0 : index
    %48 = vector.load %arg4[%c0_19, %c0_20] : memref<98x256xf32, #tpu.memory_space<vmem>>, vector<2x256xf32>
    %49 = arith.mulf %48, %47 : vector<2x256xf32>
    %50 = arith.addf %45, %49 : vector<2x256xf32>
    %c50_i32 = arith.constant 50 : i32
    %51 = tpu.dynamic_rotate %44 by %c50_i32 dim 1 : vector<2x256xf32>, i32 -> vector<2x256xf32>
    %c2 = arith.constant 2 : index
    %c0_21 = arith.constant 0 : index
    %52 = vector.load %arg4[%c2, %c0_21] : memref<98x256xf32, #tpu.memory_space<vmem>>, vector<2x256xf32>
    %53 = arith.mulf %52, %51 : vector<2x256xf32>
    %54 = arith.addf %46, %53 : vector<2x256xf32>
    %c49_i32 = arith.constant 49 : i32
    %55 = tpu.dynamic_rotate %44 by %c49_i32 dim 1 : vector<2x256xf32>, i32 -> vector<2x256xf32>
    %c4 = arith.constant 4 : index
    %c0_22 = arith.constant 0 : index
    %56 = vector.load %arg4[%c4, %c0_22] : memref<98x256xf32, #tpu.memory_space<vmem>>, vector<2x256xf32>
    %57 = arith.mulf %56, %55 : vector<2x256xf32>
    %58 = arith.addf %50, %57 : vector<2x256xf32>
    %c48_i32 = arith.constant 48 : i32
    %59 = tpu.dynamic_rotate %44 by %c48_i32 dim 1 : vector<2x256xf32>, i32 -> vector<2x256xf32>
    %c6 = arith.constant 6 : index
    %c0_23 = arith.constant 0 : index
    %60 = vector.load %arg4[%c6, %c0_23] : memref<98x256xf32, #tpu.memory_space<vmem>>, vector<2x256xf32>
    %61 = arith.mulf %60, %59 : vector<2x256xf32>
    %62 = arith.addf %54, %61 : vector<2x256xf32>
    %c47_i32 = arith.constant 47 : i32
    %63 = tpu.dynamic_rotate %44 by %c47_i32 dim 1 : vector<2x256xf32>, i32 -> vector<2x256xf32>
    %c8 = arith.constant 8 : index
    %c0_24 = arith.constant 0 : index
    %64 = vector.load %arg4[%c8, %c0_24] : memref<98x256xf32, #tpu.memory_space<vmem>>, vector<2x256xf32>
    %65 = arith.mulf %64, %63 : vector<2x256xf32>
    %66 = arith.addf %58, %65 : vector<2x256xf32>
    %c46_i32 = arith.constant 46 : i32
    %67 = tpu.dynamic_rotate %44 by %c46_i32 dim 1 : vector<2x256xf32>, i32 -> vector<2x256xf32>
    %c10 = arith.constant 10 : index
    %c0_25 = arith.constant 0 : index
    %68 = vector.load %arg4[%c10, %c0_25] : memref<98x256xf32, #tpu.memory_space<vmem>>, vector<2x256xf32>
    %69 = arith.mulf %68, %67 : vector<2x256xf32>
    %70 = arith.addf %62, %69 : vector<2x256xf32>
    %c45_i32 = arith.constant 45 : i32
    %71 = tpu.dynamic_rotate %44 by %c45_i32 dim 1 : vector<2x256xf32>, i32 -> vector<2x256xf32>
    %c12 = arith.constant 12 : index
    %c0_26 = arith.constant 0 : index
    %72 = vector.load %arg4[%c12, %c0_26] : memref<98x256xf32, #tpu.memory_space<vmem>>, vector<2x256xf32>
    %73 = arith.mulf %72, %71 : vector<2x256xf32>
    %74 = arith.addf %66, %73 : vector<2x256xf32>
    %c35_i32 = arith.constant 35 : i32
    %75 = tpu.dynamic_rotate %44 by %c35_i32 dim 1 : vector<2x256xf32>, i32 -> vector<2x256xf32>
    %c14 = arith.constant 14 : index
    %c0_27 = arith.constant 0 : index
    %76 = vector.load %arg4[%c14, %c0_27] : memref<98x256xf32, #tpu.memory_space<vmem>>, vector<2x256xf32>
    %77 = arith.mulf %76, %75 : vector<2x256xf32>
    %78 = arith.addf %70, %77 : vector<2x256xf32>
    %c34_i32 = arith.constant 34 : i32
    %79 = tpu.dynamic_rotate %44 by %c34_i32 dim 1 : vector<2x256xf32>, i32 -> vector<2x256xf32>
    %c16 = arith.constant 16 : index
    %c0_28 = arith.constant 0 : index
    %80 = vector.load %arg4[%c16, %c0_28] : memref<98x256xf32, #tpu.memory_space<vmem>>, vector<2x256xf32>
    %81 = arith.mulf %80, %79 : vector<2x256xf32>
    %82 = arith.addf %74, %81 : vector<2x256xf32>
    %c33_i32 = arith.constant 33 : i32
    %83 = tpu.dynamic_rotate %44 by %c33_i32 dim 1 : vector<2x256xf32>, i32 -> vector<2x256xf32>
    %c18 = arith.constant 18 : index
    %c0_29 = arith.constant 0 : index
    %84 = vector.load %arg4[%c18, %c0_29] : memref<98x256xf32, #tpu.memory_space<vmem>>, vector<2x256xf32>
    %85 = arith.mulf %84, %83 : vector<2x256xf32>
    %86 = arith.addf %78, %85 : vector<2x256xf32>
    %c32_i32 = arith.constant 32 : i32
    %87 = tpu.dynamic_rotate %44 by %c32_i32 dim 1 : vector<2x256xf32>, i32 -> vector<2x256xf32>
    %c20 = arith.constant 20 : index
    %c0_30 = arith.constant 0 : index
    %88 = vector.load %arg4[%c20, %c0_30] : memref<98x256xf32, #tpu.memory_space<vmem>>, vector<2x256xf32>
    %89 = arith.mulf %88, %87 : vector<2x256xf32>
    %90 = arith.addf %82, %89 : vector<2x256xf32>
    %c31_i32 = arith.constant 31 : i32
    %91 = tpu.dynamic_rotate %44 by %c31_i32 dim 1 : vector<2x256xf32>, i32 -> vector<2x256xf32>
    %c22 = arith.constant 22 : index
    %c0_31 = arith.constant 0 : index
    %92 = vector.load %arg4[%c22, %c0_31] : memref<98x256xf32, #tpu.memory_space<vmem>>, vector<2x256xf32>
    %93 = arith.mulf %92, %91 : vector<2x256xf32>
    %94 = arith.addf %86, %93 : vector<2x256xf32>
    %c30_i32 = arith.constant 30 : i32
    %95 = tpu.dynamic_rotate %44 by %c30_i32 dim 1 : vector<2x256xf32>, i32 -> vector<2x256xf32>
    %c24 = arith.constant 24 : index
    %c0_32 = arith.constant 0 : index
    %96 = vector.load %arg4[%c24, %c0_32] : memref<98x256xf32, #tpu.memory_space<vmem>>, vector<2x256xf32>
    %97 = arith.mulf %96, %95 : vector<2x256xf32>
    %98 = arith.addf %90, %97 : vector<2x256xf32>
    %c29_i32 = arith.constant 29 : i32
    %99 = tpu.dynamic_rotate %44 by %c29_i32 dim 1 : vector<2x256xf32>, i32 -> vector<2x256xf32>
    %c26 = arith.constant 26 : index
    %c0_33 = arith.constant 0 : index
    %100 = vector.load %arg4[%c26, %c0_33] : memref<98x256xf32, #tpu.memory_space<vmem>>, vector<2x256xf32>
    %101 = arith.mulf %100, %99 : vector<2x256xf32>
    %102 = arith.addf %94, %101 : vector<2x256xf32>
    %c19_i32 = arith.constant 19 : i32
    %103 = tpu.dynamic_rotate %44 by %c19_i32 dim 1 : vector<2x256xf32>, i32 -> vector<2x256xf32>
    %c28 = arith.constant 28 : index
    %c0_34 = arith.constant 0 : index
    %104 = vector.load %arg4[%c28, %c0_34] : memref<98x256xf32, #tpu.memory_space<vmem>>, vector<2x256xf32>
    %105 = arith.mulf %104, %103 : vector<2x256xf32>
    %106 = arith.addf %98, %105 : vector<2x256xf32>
    %c18_i32 = arith.constant 18 : i32
    %107 = tpu.dynamic_rotate %44 by %c18_i32 dim 1 : vector<2x256xf32>, i32 -> vector<2x256xf32>
    %c30 = arith.constant 30 : index
    %c0_35 = arith.constant 0 : index
    %108 = vector.load %arg4[%c30, %c0_35] : memref<98x256xf32, #tpu.memory_space<vmem>>, vector<2x256xf32>
    %109 = arith.mulf %108, %107 : vector<2x256xf32>
    %110 = arith.addf %102, %109 : vector<2x256xf32>
    %c17_i32 = arith.constant 17 : i32
    %111 = tpu.dynamic_rotate %44 by %c17_i32 dim 1 : vector<2x256xf32>, i32 -> vector<2x256xf32>
    %c32 = arith.constant 32 : index
    %c0_36 = arith.constant 0 : index
    %112 = vector.load %arg4[%c32, %c0_36] : memref<98x256xf32, #tpu.memory_space<vmem>>, vector<2x256xf32>
    %113 = arith.mulf %112, %111 : vector<2x256xf32>
    %114 = arith.addf %106, %113 : vector<2x256xf32>
    %c16_i32 = arith.constant 16 : i32
    %115 = tpu.dynamic_rotate %44 by %c16_i32 dim 1 : vector<2x256xf32>, i32 -> vector<2x256xf32>
    %c34 = arith.constant 34 : index
    %c0_37 = arith.constant 0 : index
    %116 = vector.load %arg4[%c34, %c0_37] : memref<98x256xf32, #tpu.memory_space<vmem>>, vector<2x256xf32>
    %117 = arith.mulf %116, %115 : vector<2x256xf32>
    %118 = arith.addf %110, %117 : vector<2x256xf32>
    %c15_i32 = arith.constant 15 : i32
    %119 = tpu.dynamic_rotate %44 by %c15_i32 dim 1 : vector<2x256xf32>, i32 -> vector<2x256xf32>
    %c36 = arith.constant 36 : index
    %c0_38 = arith.constant 0 : index
    %120 = vector.load %arg4[%c36, %c0_38] : memref<98x256xf32, #tpu.memory_space<vmem>>, vector<2x256xf32>
    %121 = arith.mulf %120, %119 : vector<2x256xf32>
    %122 = arith.addf %114, %121 : vector<2x256xf32>
    %c14_i32 = arith.constant 14 : i32
    %123 = tpu.dynamic_rotate %44 by %c14_i32 dim 1 : vector<2x256xf32>, i32 -> vector<2x256xf32>
    %c38 = arith.constant 38 : index
    %c0_39 = arith.constant 0 : index
    %124 = vector.load %arg4[%c38, %c0_39] : memref<98x256xf32, #tpu.memory_space<vmem>>, vector<2x256xf32>
    %125 = arith.mulf %124, %123 : vector<2x256xf32>
    %126 = arith.addf %118, %125 : vector<2x256xf32>
    %c13_i32 = arith.constant 13 : i32
    %127 = tpu.dynamic_rotate %44 by %c13_i32 dim 1 : vector<2x256xf32>, i32 -> vector<2x256xf32>
    %c40 = arith.constant 40 : index
    %c0_40 = arith.constant 0 : index
    %128 = vector.load %arg4[%c40, %c0_40] : memref<98x256xf32, #tpu.memory_space<vmem>>, vector<2x256xf32>
    %129 = arith.mulf %128, %127 : vector<2x256xf32>
    %130 = arith.addf %122, %129 : vector<2x256xf32>
    %c3_i32 = arith.constant 3 : i32
    %131 = tpu.dynamic_rotate %44 by %c3_i32 dim 1 : vector<2x256xf32>, i32 -> vector<2x256xf32>
    %c42 = arith.constant 42 : index
    %c0_41 = arith.constant 0 : index
    %132 = vector.load %arg4[%c42, %c0_41] : memref<98x256xf32, #tpu.memory_space<vmem>>, vector<2x256xf32>
    %133 = arith.mulf %132, %131 : vector<2x256xf32>
    %134 = arith.addf %126, %133 : vector<2x256xf32>
    %c2_i32 = arith.constant 2 : i32
    %135 = tpu.dynamic_rotate %44 by %c2_i32 dim 1 : vector<2x256xf32>, i32 -> vector<2x256xf32>
    %c44 = arith.constant 44 : index
    %c0_42 = arith.constant 0 : index
    %136 = vector.load %arg4[%c44, %c0_42] : memref<98x256xf32, #tpu.memory_space<vmem>>, vector<2x256xf32>
    %137 = arith.mulf %136, %135 : vector<2x256xf32>
    %138 = arith.addf %130, %137 : vector<2x256xf32>
    %c1_i32 = arith.constant 1 : i32
    %139 = tpu.dynamic_rotate %44 by %c1_i32 dim 1 : vector<2x256xf32>, i32 -> vector<2x256xf32>
    %c46 = arith.constant 46 : index
    %c0_43 = arith.constant 0 : index
    %140 = vector.load %arg4[%c46, %c0_43] : memref<98x256xf32, #tpu.memory_space<vmem>>, vector<2x256xf32>
    %141 = arith.mulf %140, %139 : vector<2x256xf32>
    %142 = arith.addf %134, %141 : vector<2x256xf32>
    %c48 = arith.constant 48 : index
    %c0_44 = arith.constant 0 : index
    %143 = vector.load %arg4[%c48, %c0_44] : memref<98x256xf32, #tpu.memory_space<vmem>>, vector<2x256xf32>
    %144 = arith.mulf %143, %44 : vector<2x256xf32>
    %145 = arith.addf %138, %144 : vector<2x256xf32>
    %c255_i32 = arith.constant 255 : i32
    %146 = tpu.dynamic_rotate %44 by %c255_i32 dim 1 : vector<2x256xf32>, i32 -> vector<2x256xf32>
    %c50 = arith.constant 50 : index
    %c0_45 = arith.constant 0 : index
    %147 = vector.load %arg4[%c50, %c0_45] : memref<98x256xf32, #tpu.memory_space<vmem>>, vector<2x256xf32>
    %148 = arith.mulf %147, %146 : vector<2x256xf32>
    %149 = arith.addf %142, %148 : vector<2x256xf32>
    %c254_i32 = arith.constant 254 : i32
    %150 = tpu.dynamic_rotate %44 by %c254_i32 dim 1 : vector<2x256xf32>, i32 -> vector<2x256xf32>
    %c52 = arith.constant 52 : index
    %c0_46 = arith.constant 0 : index
    %151 = vector.load %arg4[%c52, %c0_46] : memref<98x256xf32, #tpu.memory_space<vmem>>, vector<2x256xf32>
    %152 = arith.mulf %151, %150 : vector<2x256xf32>
    %153 = arith.addf %145, %152 : vector<2x256xf32>
    %c253_i32 = arith.constant 253 : i32
    %154 = tpu.dynamic_rotate %44 by %c253_i32 dim 1 : vector<2x256xf32>, i32 -> vector<2x256xf32>
    %c54 = arith.constant 54 : index
    %c0_47 = arith.constant 0 : index
    %155 = vector.load %arg4[%c54, %c0_47] : memref<98x256xf32, #tpu.memory_space<vmem>>, vector<2x256xf32>
    %156 = arith.mulf %155, %154 : vector<2x256xf32>
    %157 = arith.addf %149, %156 : vector<2x256xf32>
    %c243_i32 = arith.constant 243 : i32
    %158 = tpu.dynamic_rotate %44 by %c243_i32 dim 1 : vector<2x256xf32>, i32 -> vector<2x256xf32>
    %c56 = arith.constant 56 : index
    %c0_48 = arith.constant 0 : index
    %159 = vector.load %arg4[%c56, %c0_48] : memref<98x256xf32, #tpu.memory_space<vmem>>, vector<2x256xf32>
    %160 = arith.mulf %159, %158 : vector<2x256xf32>
    %161 = arith.addf %153, %160 : vector<2x256xf32>
    %c242_i32 = arith.constant 242 : i32
    %162 = tpu.dynamic_rotate %44 by %c242_i32 dim 1 : vector<2x256xf32>, i32 -> vector<2x256xf32>
    %c58 = arith.constant 58 : index
    %c0_49 = arith.constant 0 : index
    %163 = vector.load %arg4[%c58, %c0_49] : memref<98x256xf32, #tpu.memory_space<vmem>>, vector<2x256xf32>
    %164 = arith.mulf %163, %162 : vector<2x256xf32>
    %165 = arith.addf %157, %164 : vector<2x256xf32>
    %c241_i32 = arith.constant 241 : i32
    %166 = tpu.dynamic_rotate %44 by %c241_i32 dim 1 : vector<2x256xf32>, i32 -> vector<2x256xf32>
    %c60 = arith.constant 60 : index
    %c0_50 = arith.constant 0 : index
    %167 = vector.load %arg4[%c60, %c0_50] : memref<98x256xf32, #tpu.memory_space<vmem>>, vector<2x256xf32>
    %168 = arith.mulf %167, %166 : vector<2x256xf32>
    %169 = arith.addf %161, %168 : vector<2x256xf32>
    %c240_i32 = arith.constant 240 : i32
    %170 = tpu.dynamic_rotate %44 by %c240_i32 dim 1 : vector<2x256xf32>, i32 -> vector<2x256xf32>
    %c62 = arith.constant 62 : index
    %c0_51 = arith.constant 0 : index
    %171 = vector.load %arg4[%c62, %c0_51] : memref<98x256xf32, #tpu.memory_space<vmem>>, vector<2x256xf32>
    %172 = arith.mulf %171, %170 : vector<2x256xf32>
    %173 = arith.addf %165, %172 : vector<2x256xf32>
    %c239_i32 = arith.constant 239 : i32
    %174 = tpu.dynamic_rotate %44 by %c239_i32 dim 1 : vector<2x256xf32>, i32 -> vector<2x256xf32>
    %c64 = arith.constant 64 : index
    %c0_52 = arith.constant 0 : index
    %175 = vector.load %arg4[%c64, %c0_52] : memref<98x256xf32, #tpu.memory_space<vmem>>, vector<2x256xf32>
    %176 = arith.mulf %175, %174 : vector<2x256xf32>
    %177 = arith.addf %169, %176 : vector<2x256xf32>
    %c238_i32 = arith.constant 238 : i32
    %178 = tpu.dynamic_rotate %44 by %c238_i32 dim 1 : vector<2x256xf32>, i32 -> vector<2x256xf32>
    %c66 = arith.constant 66 : index
    %c0_53 = arith.constant 0 : index
    %179 = vector.load %arg4[%c66, %c0_53] : memref<98x256xf32, #tpu.memory_space<vmem>>, vector<2x256xf32>
    %180 = arith.mulf %179, %178 : vector<2x256xf32>
    %181 = arith.addf %173, %180 : vector<2x256xf32>
    %c237_i32 = arith.constant 237 : i32
    %182 = tpu.dynamic_rotate %44 by %c237_i32 dim 1 : vector<2x256xf32>, i32 -> vector<2x256xf32>
    %c68 = arith.constant 68 : index
    %c0_54 = arith.constant 0 : index
    %183 = vector.load %arg4[%c68, %c0_54] : memref<98x256xf32, #tpu.memory_space<vmem>>, vector<2x256xf32>
    %184 = arith.mulf %183, %182 : vector<2x256xf32>
    %185 = arith.addf %177, %184 : vector<2x256xf32>
    %c227_i32 = arith.constant 227 : i32
    %186 = tpu.dynamic_rotate %44 by %c227_i32 dim 1 : vector<2x256xf32>, i32 -> vector<2x256xf32>
    %c70 = arith.constant 70 : index
    %c0_55 = arith.constant 0 : index
    %187 = vector.load %arg4[%c70, %c0_55] : memref<98x256xf32, #tpu.memory_space<vmem>>, vector<2x256xf32>
    %188 = arith.mulf %187, %186 : vector<2x256xf32>
    %189 = arith.addf %181, %188 : vector<2x256xf32>
    %c226_i32 = arith.constant 226 : i32
    %190 = tpu.dynamic_rotate %44 by %c226_i32 dim 1 : vector<2x256xf32>, i32 -> vector<2x256xf32>
    %c72 = arith.constant 72 : index
    %c0_56 = arith.constant 0 : index
    %191 = vector.load %arg4[%c72, %c0_56] : memref<98x256xf32, #tpu.memory_space<vmem>>, vector<2x256xf32>
    %192 = arith.mulf %191, %190 : vector<2x256xf32>
    %193 = arith.addf %185, %192 : vector<2x256xf32>
    %c225_i32 = arith.constant 225 : i32
    %194 = tpu.dynamic_rotate %44 by %c225_i32 dim 1 : vector<2x256xf32>, i32 -> vector<2x256xf32>
    %c74 = arith.constant 74 : index
    %c0_57 = arith.constant 0 : index
    %195 = vector.load %arg4[%c74, %c0_57] : memref<98x256xf32, #tpu.memory_space<vmem>>, vector<2x256xf32>
    %196 = arith.mulf %195, %194 : vector<2x256xf32>
    %197 = arith.addf %189, %196 : vector<2x256xf32>
    %c224_i32 = arith.constant 224 : i32
    %198 = tpu.dynamic_rotate %44 by %c224_i32 dim 1 : vector<2x256xf32>, i32 -> vector<2x256xf32>
    %c76 = arith.constant 76 : index
    %c0_58 = arith.constant 0 : index
    %199 = vector.load %arg4[%c76, %c0_58] : memref<98x256xf32, #tpu.memory_space<vmem>>, vector<2x256xf32>
    %200 = arith.mulf %199, %198 : vector<2x256xf32>
    %201 = arith.addf %193, %200 : vector<2x256xf32>
    %c223_i32 = arith.constant 223 : i32
    %202 = tpu.dynamic_rotate %44 by %c223_i32 dim 1 : vector<2x256xf32>, i32 -> vector<2x256xf32>
    %c78 = arith.constant 78 : index
    %c0_59 = arith.constant 0 : index
    %203 = vector.load %arg4[%c78, %c0_59] : memref<98x256xf32, #tpu.memory_space<vmem>>, vector<2x256xf32>
    %204 = arith.mulf %203, %202 : vector<2x256xf32>
    %205 = arith.addf %197, %204 : vector<2x256xf32>
    %c222_i32 = arith.constant 222 : i32
    %206 = tpu.dynamic_rotate %44 by %c222_i32 dim 1 : vector<2x256xf32>, i32 -> vector<2x256xf32>
    %c80 = arith.constant 80 : index
    %c0_60 = arith.constant 0 : index
    %207 = vector.load %arg4[%c80, %c0_60] : memref<98x256xf32, #tpu.memory_space<vmem>>, vector<2x256xf32>
    %208 = arith.mulf %207, %206 : vector<2x256xf32>
    %209 = arith.addf %201, %208 : vector<2x256xf32>
    %c221_i32 = arith.constant 221 : i32
    %210 = tpu.dynamic_rotate %44 by %c221_i32 dim 1 : vector<2x256xf32>, i32 -> vector<2x256xf32>
    %c82 = arith.constant 82 : index
    %c0_61 = arith.constant 0 : index
    %211 = vector.load %arg4[%c82, %c0_61] : memref<98x256xf32, #tpu.memory_space<vmem>>, vector<2x256xf32>
    %212 = arith.mulf %211, %210 : vector<2x256xf32>
    %213 = arith.addf %205, %212 : vector<2x256xf32>
    %c211_i32 = arith.constant 211 : i32
    %214 = tpu.dynamic_rotate %44 by %c211_i32 dim 1 : vector<2x256xf32>, i32 -> vector<2x256xf32>
    %c84 = arith.constant 84 : index
    %c0_62 = arith.constant 0 : index
    %215 = vector.load %arg4[%c84, %c0_62] : memref<98x256xf32, #tpu.memory_space<vmem>>, vector<2x256xf32>
    %216 = arith.mulf %215, %214 : vector<2x256xf32>
    %217 = arith.addf %209, %216 : vector<2x256xf32>
    %c210_i32 = arith.constant 210 : i32
    %218 = tpu.dynamic_rotate %44 by %c210_i32 dim 1 : vector<2x256xf32>, i32 -> vector<2x256xf32>
    %c86 = arith.constant 86 : index
    %c0_63 = arith.constant 0 : index
    %219 = vector.load %arg4[%c86, %c0_63] : memref<98x256xf32, #tpu.memory_space<vmem>>, vector<2x256xf32>
    %220 = arith.mulf %219, %218 : vector<2x256xf32>
    %221 = arith.addf %213, %220 : vector<2x256xf32>
    %c209_i32 = arith.constant 209 : i32
    %222 = tpu.dynamic_rotate %44 by %c209_i32 dim 1 : vector<2x256xf32>, i32 -> vector<2x256xf32>
    %c88 = arith.constant 88 : index
    %c0_64 = arith.constant 0 : index
    %223 = vector.load %arg4[%c88, %c0_64] : memref<98x256xf32, #tpu.memory_space<vmem>>, vector<2x256xf32>
    %224 = arith.mulf %223, %222 : vector<2x256xf32>
    %225 = arith.addf %217, %224 : vector<2x256xf32>
    %c208_i32 = arith.constant 208 : i32
    %226 = tpu.dynamic_rotate %44 by %c208_i32 dim 1 : vector<2x256xf32>, i32 -> vector<2x256xf32>
    %c90 = arith.constant 90 : index
    %c0_65 = arith.constant 0 : index
    %227 = vector.load %arg4[%c90, %c0_65] : memref<98x256xf32, #tpu.memory_space<vmem>>, vector<2x256xf32>
    %228 = arith.mulf %227, %226 : vector<2x256xf32>
    %229 = arith.addf %221, %228 : vector<2x256xf32>
    %c207_i32 = arith.constant 207 : i32
    %230 = tpu.dynamic_rotate %44 by %c207_i32 dim 1 : vector<2x256xf32>, i32 -> vector<2x256xf32>
    %c92 = arith.constant 92 : index
    %c0_66 = arith.constant 0 : index
    %231 = vector.load %arg4[%c92, %c0_66] : memref<98x256xf32, #tpu.memory_space<vmem>>, vector<2x256xf32>
    %232 = arith.mulf %231, %230 : vector<2x256xf32>
    %233 = arith.addf %225, %232 : vector<2x256xf32>
    %c206_i32 = arith.constant 206 : i32
    %234 = tpu.dynamic_rotate %44 by %c206_i32 dim 1 : vector<2x256xf32>, i32 -> vector<2x256xf32>
    %c94 = arith.constant 94 : index
    %c0_67 = arith.constant 0 : index
    %235 = vector.load %arg4[%c94, %c0_67] : memref<98x256xf32, #tpu.memory_space<vmem>>, vector<2x256xf32>
    %236 = arith.mulf %235, %234 : vector<2x256xf32>
    %237 = arith.addf %229, %236 : vector<2x256xf32>
    %c205_i32 = arith.constant 205 : i32
    %238 = tpu.dynamic_rotate %44 by %c205_i32 dim 1 : vector<2x256xf32>, i32 -> vector<2x256xf32>
    %c96 = arith.constant 96 : index
    %c0_68 = arith.constant 0 : index
    %239 = vector.load %arg4[%c96, %c0_68] : memref<98x256xf32, #tpu.memory_space<vmem>>, vector<2x256xf32>
    %240 = arith.mulf %239, %238 : vector<2x256xf32>
    %241 = arith.addf %233, %240 : vector<2x256xf32>
    %242 = arith.addf %241, %237 : vector<2x256xf32>
    %cst_69 = arith.constant dense<0.000000e+00> : vector<256xf32>
    %243 = vector.multi_reduction <add>, %242, %cst_69 [0] : vector<2x256xf32> to vector<256xf32>
    %244 = vector.shape_cast %243 : vector<256xf32> to vector<1x256xf32>
    %245 = arith.negf %244 : vector<1x256xf32>
    %246 = math.exp %245 : vector<1x256xf32>
    %cst_70 = arith.constant 1.000000e+00 : f32
    %247 = vector.broadcast %cst_70 : f32 to vector<1x256xf32>
    %248 = arith.addf %247, %246 : vector<1x256xf32>
    %249 = arith.divf %247, %248 : vector<1x256xf32>
    %250 = vector.broadcast %249 : vector<1x256xf32> to vector<64x256xf32>
    %251 = arith.mulf %30, %250 : vector<64x256xf32>
    %c0_71 = arith.constant 0 : index
    %c0_72 = arith.constant 0 : index
    %c0_73 = arith.constant 0 : index
    %252 = vector.load %arg5[%c0_71, %c0_72, %c0_73] : memref<2x64x256xf32, #tpu.memory_space<vmem>>, vector<1x64x256xf32>
    %253 = vector.shape_cast %252 : vector<1x64x256xf32> to vector<64x256xf32>
    %254 = vector.shape_cast %251 : vector<64x256xf32> to vector<1x64x256xf32>
    tpu.vector_store %arg5[%c0_71, %c0_72, %c0_73], %254 {strides = array<i32>} : memref<2x64x256xf32, #tpu.memory_space<vmem>>, vector<1x64x256xf32>,
    %c1 = arith.constant 1 : index
    %c0_74 = arith.constant 0 : index
    %c0_75 = arith.constant 0 : index
    %255 = vector.load %arg1[%c1, %c0_74, %c0_75] : memref<2x64x256xf32, #tpu.memory_space<vmem>>, vector<1x64x256xf32>
    %256 = vector.shape_cast %255 : vector<1x64x256xf32> to vector<64x256xf32>
    %cst_76 = arith.constant dense<0xFF800000> : vector<64xf32>
    %257 = vector.multi_reduction <maximumf>, %256, %cst_76 [1] : vector<64x256xf32> to vector<64xf32>
    %258 = vector.shape_cast %257 : vector<64xf32> to vector<64x1xf32>
    %cst_77 = arith.constant dense<0.000000e+00> : vector<64xf32>
    %259 = vector.multi_reduction <add>, %256, %cst_77 [1] : vector<64x256xf32> to vector<64xf32>
    %260 = vector.shape_cast %259 : vector<64xf32> to vector<64x1xf32>
    %cst_78 = arith.constant 3.906250e-03 : f32
    %261 = vector.broadcast %cst_78 : f32 to vector<64x1xf32>
    %262 = arith.mulf %260, %261 : vector<64x1xf32>
    %263 = tpu.iota {dimensions = array<i32: 1>} : vector<64x2xi32>
    %c0_i32_79 = arith.constant 0 : i32
    %264 = vector.broadcast %c0_i32_79 : i32 to vector<64x2xi32>
    %265 = arith.cmpi eq, %263, %264 : vector<64x2xi32>
    %266 = vector.shape_cast %258 : vector<64x1xf32> to vector<64x1xf32>
    %267 = vector.broadcast %266 : vector<64x1xf32> to vector<64x2xf32>
    %268 = vector.shape_cast %262 : vector<64x1xf32> to vector<64x1xf32>
    %269 = vector.broadcast %268 : vector<64x1xf32> to vector<64x2xf32>
    %270 = arith.select %265, %267, %269 : vector<64x2xi1>, vector<64x2xf32>
    %cst_80 = arith.constant dense<0.000000e+00> : vector<4x2xf32>
    %271 = tpu.matmul %0, %270, %cst_80 {dimension_numbers = #tpu.dot_dimension_numbers<[1], [0], [0], [1], [0, 0, 1, 1], [], []>, precision = #tpu.contract_precision<fp32>} : vector<4x64xf32>, vector<64x2xf32>, vector<4x2xf32> -> vector<4x2xf32>
    %cst_81 = arith.constant 0.000000e+00 : f32
    %272 = vector.broadcast %cst_81 : f32 to vector<4x2xf32>
    %273 = arith.maximumf %271, %272 : vector<4x2xf32>
    %cst_82 = arith.constant dense<0.000000e+00> : vector<64x2xf32>
    %274 = tpu.matmul %1, %273, %cst_82 {dimension_numbers = #tpu.dot_dimension_numbers<[1], [0], [0], [1], [0, 0, 1, 1], [], []>, precision = #tpu.contract_precision<fp32>} : vector<64x4xf32>, vector<4x2xf32>, vector<64x2xf32> -> vector<64x2xf32>
    %cst_83 = arith.constant dense<0.000000e+00> : vector<64xf32>
    %275 = vector.multi_reduction <add>, %274, %cst_83 [1] : vector<64x2xf32> to vector<64xf32>
    %276 = vector.shape_cast %275 : vector<64xf32> to vector<64x1xf32>
    %277 = arith.negf %276 : vector<64x1xf32>
    %278 = math.exp %277 : vector<64x1xf32>
    %cst_84 = arith.constant 1.000000e+00 : f32
    %279 = vector.broadcast %cst_84 : f32 to vector<64x1xf32>
    %280 = arith.addf %279, %278 : vector<64x1xf32>
    %281 = arith.divf %279, %280 : vector<64x1xf32>
    %282 = vector.broadcast %281 : vector<64x1xf32> to vector<64x256xf32>
    %283 = arith.mulf %256, %282 : vector<64x256xf32>
    %cst_85 = arith.constant dense<0xFF800000> : vector<256xf32>
    %284 = vector.multi_reduction <maximumf>, %283, %cst_85 [0] : vector<64x256xf32> to vector<256xf32>
    %285 = vector.shape_cast %284 : vector<256xf32> to vector<1x256xf32>
    %cst_86 = arith.constant dense<0.000000e+00> : vector<256xf32>
    %286 = vector.multi_reduction <add>, %283, %cst_86 [0] : vector<64x256xf32> to vector<256xf32>
    %287 = vector.shape_cast %286 : vector<256xf32> to vector<1x256xf32>
    %cst_87 = arith.constant 1.562500e-02 : f32
    %288 = vector.broadcast %cst_87 : f32 to vector<1x256xf32>
    %289 = arith.mulf %287, %288 : vector<1x256xf32>
    %290 = tpu.iota {dimensions = array<i32: 0>} : vector<2x256xi32>
    %c0_i32_88 = arith.constant 0 : i32
    %291 = vector.broadcast %c0_i32_88 : i32 to vector<2x256xi32>
    %292 = arith.cmpi eq, %290, %291 : vector<2x256xi32>
    %293 = vector.shape_cast %285 : vector<1x256xf32> to vector<1x256xf32>
    %294 = vector.broadcast %293 : vector<1x256xf32> to vector<2x256xf32>
    %295 = vector.shape_cast %289 : vector<1x256xf32> to vector<1x256xf32>
    %296 = vector.broadcast %295 : vector<1x256xf32> to vector<2x256xf32>
    %297 = arith.select %292, %294, %296 : vector<2x256xi1>, vector<2x256xf32>
    %cst_89 = arith.constant 0.000000e+00 : f32
    %298 = vector.broadcast %cst_89 : f32 to vector<2x256xf32>
    %cst_90 = arith.constant 0.000000e+00 : f32
    %299 = vector.broadcast %cst_90 : f32 to vector<2x256xf32>
    %c51_i32_91 = arith.constant 51 : i32
    %300 = tpu.dynamic_rotate %297 by %c51_i32_91 dim 1 : vector<2x256xf32>, i32 -> vector<2x256xf32>
    %c0_92 = arith.constant 0 : index
    %c0_93 = arith.constant 0 : index
    %301 = vector.load %arg4[%c0_92, %c0_93] : memref<98x256xf32, #tpu.memory_space<vmem>>, vector<2x256xf32>
    %302 = arith.mulf %301, %300 : vector<2x256xf32>
    %303 = arith.addf %298, %302 : vector<2x256xf32>
    %c50_i32_94 = arith.constant 50 : i32
    %304 = tpu.dynamic_rotate %297 by %c50_i32_94 dim 1 : vector<2x256xf32>, i32 -> vector<2x256xf32>
    %c2_95 = arith.constant 2 : index
    %c0_96 = arith.constant 0 : index
    %305 = vector.load %arg4[%c2_95, %c0_96] : memref<98x256xf32, #tpu.memory_space<vmem>>, vector<2x256xf32>
    %306 = arith.mulf %305, %304 : vector<2x256xf32>
    %307 = arith.addf %299, %306 : vector<2x256xf32>
    %c49_i32_97 = arith.constant 49 : i32
    %308 = tpu.dynamic_rotate %297 by %c49_i32_97 dim 1 : vector<2x256xf32>, i32 -> vector<2x256xf32>
    %c4_98 = arith.constant 4 : index
    %c0_99 = arith.constant 0 : index
    %309 = vector.load %arg4[%c4_98, %c0_99] : memref<98x256xf32, #tpu.memory_space<vmem>>, vector<2x256xf32>
    %310 = arith.mulf %309, %308 : vector<2x256xf32>
    %311 = arith.addf %303, %310 : vector<2x256xf32>
    %c48_i32_100 = arith.constant 48 : i32
    %312 = tpu.dynamic_rotate %297 by %c48_i32_100 dim 1 : vector<2x256xf32>, i32 -> vector<2x256xf32>
    %c6_101 = arith.constant 6 : index
    %c0_102 = arith.constant 0 : index
    %313 = vector.load %arg4[%c6_101, %c0_102] : memref<98x256xf32, #tpu.memory_space<vmem>>, vector<2x256xf32>
    %314 = arith.mulf %313, %312 : vector<2x256xf32>
    %315 = arith.addf %307, %314 : vector<2x256xf32>
    %c47_i32_103 = arith.constant 47 : i32
    %316 = tpu.dynamic_rotate %297 by %c47_i32_103 dim 1 : vector<2x256xf32>, i32 -> vector<2x256xf32>
    %c8_104 = arith.constant 8 : index
    %c0_105 = arith.constant 0 : index
    %317 = vector.load %arg4[%c8_104, %c0_105] : memref<98x256xf32, #tpu.memory_space<vmem>>, vector<2x256xf32>
    %318 = arith.mulf %317, %316 : vector<2x256xf32>
    %319 = arith.addf %311, %318 : vector<2x256xf32>
    %c46_i32_106 = arith.constant 46 : i32
    %320 = tpu.dynamic_rotate %297 by %c46_i32_106 dim 1 : vector<2x256xf32>, i32 -> vector<2x256xf32>
    %c10_107 = arith.constant 10 : index
    %c0_108 = arith.constant 0 : index
    %321 = vector.load %arg4[%c10_107, %c0_108] : memref<98x256xf32, #tpu.memory_space<vmem>>, vector<2x256xf32>
    %322 = arith.mulf %321, %320 : vector<2x256xf32>
    %323 = arith.addf %315, %322 : vector<2x256xf32>
    %c45_i32_109 = arith.constant 45 : i32
    %324 = tpu.dynamic_rotate %297 by %c45_i32_109 dim 1 : vector<2x256xf32>, i32 -> vector<2x256xf32>
    %c12_110 = arith.constant 12 : index
    %c0_111 = arith.constant 0 : index
    %325 = vector.load %arg4[%c12_110, %c0_111] : memref<98x256xf32, #tpu.memory_space<vmem>>, vector<2x256xf32>
    %326 = arith.mulf %325, %324 : vector<2x256xf32>
    %327 = arith.addf %319, %326 : vector<2x256xf32>
    %c35_i32_112 = arith.constant 35 : i32
    %328 = tpu.dynamic_rotate %297 by %c35_i32_112 dim 1 : vector<2x256xf32>, i32 -> vector<2x256xf32>
    %c14_113 = arith.constant 14 : index
    %c0_114 = arith.constant 0 : index
    %329 = vector.load %arg4[%c14_113, %c0_114] : memref<98x256xf32, #tpu.memory_space<vmem>>, vector<2x256xf32>
    %330 = arith.mulf %329, %328 : vector<2x256xf32>
    %331 = arith.addf %323, %330 : vector<2x256xf32>
    %c34_i32_115 = arith.constant 34 : i32
    %332 = tpu.dynamic_rotate %297 by %c34_i32_115 dim 1 : vector<2x256xf32>, i32 -> vector<2x256xf32>
    %c16_116 = arith.constant 16 : index
    %c0_117 = arith.constant 0 : index
    %333 = vector.load %arg4[%c16_116, %c0_117] : memref<98x256xf32, #tpu.memory_space<vmem>>, vector<2x256xf32>
    %334 = arith.mulf %333, %332 : vector<2x256xf32>
    %335 = arith.addf %327, %334 : vector<2x256xf32>
    %c33_i32_118 = arith.constant 33 : i32
    %336 = tpu.dynamic_rotate %297 by %c33_i32_118 dim 1 : vector<2x256xf32>, i32 -> vector<2x256xf32>
    %c18_119 = arith.constant 18 : index
    %c0_120 = arith.constant 0 : index
    %337 = vector.load %arg4[%c18_119, %c0_120] : memref<98x256xf32, #tpu.memory_space<vmem>>, vector<2x256xf32>
    %338 = arith.mulf %337, %336 : vector<2x256xf32>
    %339 = arith.addf %331, %338 : vector<2x256xf32>
    %c32_i32_121 = arith.constant 32 : i32
    %340 = tpu.dynamic_rotate %297 by %c32_i32_121 dim 1 : vector<2x256xf32>, i32 -> vector<2x256xf32>
    %c20_122 = arith.constant 20 : index
    %c0_123 = arith.constant 0 : index
    %341 = vector.load %arg4[%c20_122, %c0_123] : memref<98x256xf32, #tpu.memory_space<vmem>>, vector<2x256xf32>
    %342 = arith.mulf %341, %340 : vector<2x256xf32>
    %343 = arith.addf %335, %342 : vector<2x256xf32>
    %c31_i32_124 = arith.constant 31 : i32
    %344 = tpu.dynamic_rotate %297 by %c31_i32_124 dim 1 : vector<2x256xf32>, i32 -> vector<2x256xf32>
    %c22_125 = arith.constant 22 : index
    %c0_126 = arith.constant 0 : index
    %345 = vector.load %arg4[%c22_125, %c0_126] : memref<98x256xf32, #tpu.memory_space<vmem>>, vector<2x256xf32>
    %346 = arith.mulf %345, %344 : vector<2x256xf32>
    %347 = arith.addf %339, %346 : vector<2x256xf32>
    %c30_i32_127 = arith.constant 30 : i32
    %348 = tpu.dynamic_rotate %297 by %c30_i32_127 dim 1 : vector<2x256xf32>, i32 -> vector<2x256xf32>
    %c24_128 = arith.constant 24 : index
    %c0_129 = arith.constant 0 : index
    %349 = vector.load %arg4[%c24_128, %c0_129] : memref<98x256xf32, #tpu.memory_space<vmem>>, vector<2x256xf32>
    %350 = arith.mulf %349, %348 : vector<2x256xf32>
    %351 = arith.addf %343, %350 : vector<2x256xf32>
    %c29_i32_130 = arith.constant 29 : i32
    %352 = tpu.dynamic_rotate %297 by %c29_i32_130 dim 1 : vector<2x256xf32>, i32 -> vector<2x256xf32>
    %c26_131 = arith.constant 26 : index
    %c0_132 = arith.constant 0 : index
    %353 = vector.load %arg4[%c26_131, %c0_132] : memref<98x256xf32, #tpu.memory_space<vmem>>, vector<2x256xf32>
    %354 = arith.mulf %353, %352 : vector<2x256xf32>
    %355 = arith.addf %347, %354 : vector<2x256xf32>
    %c19_i32_133 = arith.constant 19 : i32
    %356 = tpu.dynamic_rotate %297 by %c19_i32_133 dim 1 : vector<2x256xf32>, i32 -> vector<2x256xf32>
    %c28_134 = arith.constant 28 : index
    %c0_135 = arith.constant 0 : index
    %357 = vector.load %arg4[%c28_134, %c0_135] : memref<98x256xf32, #tpu.memory_space<vmem>>, vector<2x256xf32>
    %358 = arith.mulf %357, %356 : vector<2x256xf32>
    %359 = arith.addf %351, %358 : vector<2x256xf32>
    %c18_i32_136 = arith.constant 18 : i32
    %360 = tpu.dynamic_rotate %297 by %c18_i32_136 dim 1 : vector<2x256xf32>, i32 -> vector<2x256xf32>
    %c30_137 = arith.constant 30 : index
    %c0_138 = arith.constant 0 : index
    %361 = vector.load %arg4[%c30_137, %c0_138] : memref<98x256xf32, #tpu.memory_space<vmem>>, vector<2x256xf32>
    %362 = arith.mulf %361, %360 : vector<2x256xf32>
    %363 = arith.addf %355, %362 : vector<2x256xf32>
    %c17_i32_139 = arith.constant 17 : i32
    %364 = tpu.dynamic_rotate %297 by %c17_i32_139 dim 1 : vector<2x256xf32>, i32 -> vector<2x256xf32>
    %c32_140 = arith.constant 32 : index
    %c0_141 = arith.constant 0 : index
    %365 = vector.load %arg4[%c32_140, %c0_141] : memref<98x256xf32, #tpu.memory_space<vmem>>, vector<2x256xf32>
    %366 = arith.mulf %365, %364 : vector<2x256xf32>
    %367 = arith.addf %359, %366 : vector<2x256xf32>
    %c16_i32_142 = arith.constant 16 : i32
    %368 = tpu.dynamic_rotate %297 by %c16_i32_142 dim 1 : vector<2x256xf32>, i32 -> vector<2x256xf32>
    %c34_143 = arith.constant 34 : index
    %c0_144 = arith.constant 0 : index
    %369 = vector.load %arg4[%c34_143, %c0_144] : memref<98x256xf32, #tpu.memory_space<vmem>>, vector<2x256xf32>
    %370 = arith.mulf %369, %368 : vector<2x256xf32>
    %371 = arith.addf %363, %370 : vector<2x256xf32>
    %c15_i32_145 = arith.constant 15 : i32
    %372 = tpu.dynamic_rotate %297 by %c15_i32_145 dim 1 : vector<2x256xf32>, i32 -> vector<2x256xf32>
    %c36_146 = arith.constant 36 : index
    %c0_147 = arith.constant 0 : index
    %373 = vector.load %arg4[%c36_146, %c0_147] : memref<98x256xf32, #tpu.memory_space<vmem>>, vector<2x256xf32>
    %374 = arith.mulf %373, %372 : vector<2x256xf32>
    %375 = arith.addf %367, %374 : vector<2x256xf32>
    %c14_i32_148 = arith.constant 14 : i32
    %376 = tpu.dynamic_rotate %297 by %c14_i32_148 dim 1 : vector<2x256xf32>, i32 -> vector<2x256xf32>
    %c38_149 = arith.constant 38 : index
    %c0_150 = arith.constant 0 : index
    %377 = vector.load %arg4[%c38_149, %c0_150] : memref<98x256xf32, #tpu.memory_space<vmem>>, vector<2x256xf32>
    %378 = arith.mulf %377, %376 : vector<2x256xf32>
    %379 = arith.addf %371, %378 : vector<2x256xf32>
    %c13_i32_151 = arith.constant 13 : i32
    %380 = tpu.dynamic_rotate %297 by %c13_i32_151 dim 1 : vector<2x256xf32>, i32 -> vector<2x256xf32>
    %c40_152 = arith.constant 40 : index
    %c0_153 = arith.constant 0 : index
    %381 = vector.load %arg4[%c40_152, %c0_153] : memref<98x256xf32, #tpu.memory_space<vmem>>, vector<2x256xf32>
    %382 = arith.mulf %381, %380 : vector<2x256xf32>
    %383 = arith.addf %375, %382 : vector<2x256xf32>
    %c3_i32_154 = arith.constant 3 : i32
    %384 = tpu.dynamic_rotate %297 by %c3_i32_154 dim 1 : vector<2x256xf32>, i32 -> vector<2x256xf32>
    %c42_155 = arith.constant 42 : index
    %c0_156 = arith.constant 0 : index
    %385 = vector.load %arg4[%c42_155, %c0_156] : memref<98x256xf32, #tpu.memory_space<vmem>>, vector<2x256xf32>
    %386 = arith.mulf %385, %384 : vector<2x256xf32>
    %387 = arith.addf %379, %386 : vector<2x256xf32>
    %c2_i32_157 = arith.constant 2 : i32
    %388 = tpu.dynamic_rotate %297 by %c2_i32_157 dim 1 : vector<2x256xf32>, i32 -> vector<2x256xf32>
    %c44_158 = arith.constant 44 : index
    %c0_159 = arith.constant 0 : index
    %389 = vector.load %arg4[%c44_158, %c0_159] : memref<98x256xf32, #tpu.memory_space<vmem>>, vector<2x256xf32>
    %390 = arith.mulf %389, %388 : vector<2x256xf32>
    %391 = arith.addf %383, %390 : vector<2x256xf32>
    %c1_i32_160 = arith.constant 1 : i32
    %392 = tpu.dynamic_rotate %297 by %c1_i32_160 dim 1 : vector<2x256xf32>, i32 -> vector<2x256xf32>
    %c46_161 = arith.constant 46 : index
    %c0_162 = arith.constant 0 : index
    %393 = vector.load %arg4[%c46_161, %c0_162] : memref<98x256xf32, #tpu.memory_space<vmem>>, vector<2x256xf32>
    %394 = arith.mulf %393, %392 : vector<2x256xf32>
    %395 = arith.addf %387, %394 : vector<2x256xf32>
    %c48_163 = arith.constant 48 : index
    %c0_164 = arith.constant 0 : index
    %396 = vector.load %arg4[%c48_163, %c0_164] : memref<98x256xf32, #tpu.memory_space<vmem>>, vector<2x256xf32>
    %397 = arith.mulf %396, %297 : vector<2x256xf32>
    %398 = arith.addf %391, %397 : vector<2x256xf32>
    %c255_i32_165 = arith.constant 255 : i32
    %399 = tpu.dynamic_rotate %297 by %c255_i32_165 dim 1 : vector<2x256xf32>, i32 -> vector<2x256xf32>
    %c50_166 = arith.constant 50 : index
    %c0_167 = arith.constant 0 : index
    %400 = vector.load %arg4[%c50_166, %c0_167] : memref<98x256xf32, #tpu.memory_space<vmem>>, vector<2x256xf32>
    %401 = arith.mulf %400, %399 : vector<2x256xf32>
    %402 = arith.addf %395, %401 : vector<2x256xf32>
    %c254_i32_168 = arith.constant 254 : i32
    %403 = tpu.dynamic_rotate %297 by %c254_i32_168 dim 1 : vector<2x256xf32>, i32 -> vector<2x256xf32>
    %c52_169 = arith.constant 52 : index
    %c0_170 = arith.constant 0 : index
    %404 = vector.load %arg4[%c52_169, %c0_170] : memref<98x256xf32, #tpu.memory_space<vmem>>, vector<2x256xf32>
    %405 = arith.mulf %404, %403 : vector<2x256xf32>
    %406 = arith.addf %398, %405 : vector<2x256xf32>
    %c253_i32_171 = arith.constant 253 : i32
    %407 = tpu.dynamic_rotate %297 by %c253_i32_171 dim 1 : vector<2x256xf32>, i32 -> vector<2x256xf32>
    %c54_172 = arith.constant 54 : index
    %c0_173 = arith.constant 0 : index
    %408 = vector.load %arg4[%c54_172, %c0_173] : memref<98x256xf32, #tpu.memory_space<vmem>>, vector<2x256xf32>
    %409 = arith.mulf %408, %407 : vector<2x256xf32>
    %410 = arith.addf %402, %409 : vector<2x256xf32>
    %c243_i32_174 = arith.constant 243 : i32
    %411 = tpu.dynamic_rotate %297 by %c243_i32_174 dim 1 : vector<2x256xf32>, i32 -> vector<2x256xf32>
    %c56_175 = arith.constant 56 : index
    %c0_176 = arith.constant 0 : index
    %412 = vector.load %arg4[%c56_175, %c0_176] : memref<98x256xf32, #tpu.memory_space<vmem>>, vector<2x256xf32>
    %413 = arith.mulf %412, %411 : vector<2x256xf32>
    %414 = arith.addf %406, %413 : vector<2x256xf32>
    %c242_i32_177 = arith.constant 242 : i32
    %415 = tpu.dynamic_rotate %297 by %c242_i32_177 dim 1 : vector<2x256xf32>, i32 -> vector<2x256xf32>
    %c58_178 = arith.constant 58 : index
    %c0_179 = arith.constant 0 : index
    %416 = vector.load %arg4[%c58_178, %c0_179] : memref<98x256xf32, #tpu.memory_space<vmem>>, vector<2x256xf32>
    %417 = arith.mulf %416, %415 : vector<2x256xf32>
    %418 = arith.addf %410, %417 : vector<2x256xf32>
    %c241_i32_180 = arith.constant 241 : i32
    %419 = tpu.dynamic_rotate %297 by %c241_i32_180 dim 1 : vector<2x256xf32>, i32 -> vector<2x256xf32>
    %c60_181 = arith.constant 60 : index
    %c0_182 = arith.constant 0 : index
    %420 = vector.load %arg4[%c60_181, %c0_182] : memref<98x256xf32, #tpu.memory_space<vmem>>, vector<2x256xf32>
    %421 = arith.mulf %420, %419 : vector<2x256xf32>
    %422 = arith.addf %414, %421 : vector<2x256xf32>
    %c240_i32_183 = arith.constant 240 : i32
    %423 = tpu.dynamic_rotate %297 by %c240_i32_183 dim 1 : vector<2x256xf32>, i32 -> vector<2x256xf32>
    %c62_184 = arith.constant 62 : index
    %c0_185 = arith.constant 0 : index
    %424 = vector.load %arg4[%c62_184, %c0_185] : memref<98x256xf32, #tpu.memory_space<vmem>>, vector<2x256xf32>
    %425 = arith.mulf %424, %423 : vector<2x256xf32>
    %426 = arith.addf %418, %425 : vector<2x256xf32>
    %c239_i32_186 = arith.constant 239 : i32
    %427 = tpu.dynamic_rotate %297 by %c239_i32_186 dim 1 : vector<2x256xf32>, i32 -> vector<2x256xf32>
    %c64_187 = arith.constant 64 : index
    %c0_188 = arith.constant 0 : index
    %428 = vector.load %arg4[%c64_187, %c0_188] : memref<98x256xf32, #tpu.memory_space<vmem>>, vector<2x256xf32>
    %429 = arith.mulf %428, %427 : vector<2x256xf32>
    %430 = arith.addf %422, %429 : vector<2x256xf32>
    %c238_i32_189 = arith.constant 238 : i32
    %431 = tpu.dynamic_rotate %297 by %c238_i32_189 dim 1 : vector<2x256xf32>, i32 -> vector<2x256xf32>
    %c66_190 = arith.constant 66 : index
    %c0_191 = arith.constant 0 : index
    %432 = vector.load %arg4[%c66_190, %c0_191] : memref<98x256xf32, #tpu.memory_space<vmem>>, vector<2x256xf32>
    %433 = arith.mulf %432, %431 : vector<2x256xf32>
    %434 = arith.addf %426, %433 : vector<2x256xf32>
    %c237_i32_192 = arith.constant 237 : i32
    %435 = tpu.dynamic_rotate %297 by %c237_i32_192 dim 1 : vector<2x256xf32>, i32 -> vector<2x256xf32>
    %c68_193 = arith.constant 68 : index
    %c0_194 = arith.constant 0 : index
    %436 = vector.load %arg4[%c68_193, %c0_194] : memref<98x256xf32, #tpu.memory_space<vmem>>, vector<2x256xf32>
    %437 = arith.mulf %436, %435 : vector<2x256xf32>
    %438 = arith.addf %430, %437 : vector<2x256xf32>
    %c227_i32_195 = arith.constant 227 : i32
    %439 = tpu.dynamic_rotate %297 by %c227_i32_195 dim 1 : vector<2x256xf32>, i32 -> vector<2x256xf32>
    %c70_196 = arith.constant 70 : index
    %c0_197 = arith.constant 0 : index
    %440 = vector.load %arg4[%c70_196, %c0_197] : memref<98x256xf32, #tpu.memory_space<vmem>>, vector<2x256xf32>
    %441 = arith.mulf %440, %439 : vector<2x256xf32>
    %442 = arith.addf %434, %441 : vector<2x256xf32>
    %c226_i32_198 = arith.constant 226 : i32
    %443 = tpu.dynamic_rotate %297 by %c226_i32_198 dim 1 : vector<2x256xf32>, i32 -> vector<2x256xf32>
    %c72_199 = arith.constant 72 : index
    %c0_200 = arith.constant 0 : index
    %444 = vector.load %arg4[%c72_199, %c0_200] : memref<98x256xf32, #tpu.memory_space<vmem>>, vector<2x256xf32>
    %445 = arith.mulf %444, %443 : vector<2x256xf32>
    %446 = arith.addf %438, %445 : vector<2x256xf32>
    %c225_i32_201 = arith.constant 225 : i32
    %447 = tpu.dynamic_rotate %297 by %c225_i32_201 dim 1 : vector<2x256xf32>, i32 -> vector<2x256xf32>
    %c74_202 = arith.constant 74 : index
    %c0_203 = arith.constant 0 : index
    %448 = vector.load %arg4[%c74_202, %c0_203] : memref<98x256xf32, #tpu.memory_space<vmem>>, vector<2x256xf32>
    %449 = arith.mulf %448, %447 : vector<2x256xf32>
    %450 = arith.addf %442, %449 : vector<2x256xf32>
    %c224_i32_204 = arith.constant 224 : i32
    %451 = tpu.dynamic_rotate %297 by %c224_i32_204 dim 1 : vector<2x256xf32>, i32 -> vector<2x256xf32>
    %c76_205 = arith.constant 76 : index
    %c0_206 = arith.constant 0 : index
    %452 = vector.load %arg4[%c76_205, %c0_206] : memref<98x256xf32, #tpu.memory_space<vmem>>, vector<2x256xf32>
    %453 = arith.mulf %452, %451 : vector<2x256xf32>
    %454 = arith.addf %446, %453 : vector<2x256xf32>
    %c223_i32_207 = arith.constant 223 : i32
    %455 = tpu.dynamic_rotate %297 by %c223_i32_207 dim 1 : vector<2x256xf32>, i32 -> vector<2x256xf32>
    %c78_208 = arith.constant 78 : index
    %c0_209 = arith.constant 0 : index
    %456 = vector.load %arg4[%c78_208, %c0_209] : memref<98x256xf32, #tpu.memory_space<vmem>>, vector<2x256xf32>
    %457 = arith.mulf %456, %455 : vector<2x256xf32>
    %458 = arith.addf %450, %457 : vector<2x256xf32>
    %c222_i32_210 = arith.constant 222 : i32
    %459 = tpu.dynamic_rotate %297 by %c222_i32_210 dim 1 : vector<2x256xf32>, i32 -> vector<2x256xf32>
    %c80_211 = arith.constant 80 : index
    %c0_212 = arith.constant 0 : index
    %460 = vector.load %arg4[%c80_211, %c0_212] : memref<98x256xf32, #tpu.memory_space<vmem>>, vector<2x256xf32>
    %461 = arith.mulf %460, %459 : vector<2x256xf32>
    %462 = arith.addf %454, %461 : vector<2x256xf32>
    %c221_i32_213 = arith.constant 221 : i32
    %463 = tpu.dynamic_rotate %297 by %c221_i32_213 dim 1 : vector<2x256xf32>, i32 -> vector<2x256xf32>
    %c82_214 = arith.constant 82 : index
    %c0_215 = arith.constant 0 : index
    %464 = vector.load %arg4[%c82_214, %c0_215] : memref<98x256xf32, #tpu.memory_space<vmem>>, vector<2x256xf32>
    %465 = arith.mulf %464, %463 : vector<2x256xf32>
    %466 = arith.addf %458, %465 : vector<2x256xf32>
    %c211_i32_216 = arith.constant 211 : i32
    %467 = tpu.dynamic_rotate %297 by %c211_i32_216 dim 1 : vector<2x256xf32>, i32 -> vector<2x256xf32>
    %c84_217 = arith.constant 84 : index
    %c0_218 = arith.constant 0 : index
    %468 = vector.load %arg4[%c84_217, %c0_218] : memref<98x256xf32, #tpu.memory_space<vmem>>, vector<2x256xf32>
    %469 = arith.mulf %468, %467 : vector<2x256xf32>
    %470 = arith.addf %462, %469 : vector<2x256xf32>
    %c210_i32_219 = arith.constant 210 : i32
    %471 = tpu.dynamic_rotate %297 by %c210_i32_219 dim 1 : vector<2x256xf32>, i32 -> vector<2x256xf32>
    %c86_220 = arith.constant 86 : index
    %c0_221 = arith.constant 0 : index
    %472 = vector.load %arg4[%c86_220, %c0_221] : memref<98x256xf32, #tpu.memory_space<vmem>>, vector<2x256xf32>
    %473 = arith.mulf %472, %471 : vector<2x256xf32>
    %474 = arith.addf %466, %473 : vector<2x256xf32>
    %c209_i32_222 = arith.constant 209 : i32
    %475 = tpu.dynamic_rotate %297 by %c209_i32_222 dim 1 : vector<2x256xf32>, i32 -> vector<2x256xf32>
    %c88_223 = arith.constant 88 : index
    %c0_224 = arith.constant 0 : index
    %476 = vector.load %arg4[%c88_223, %c0_224] : memref<98x256xf32, #tpu.memory_space<vmem>>, vector<2x256xf32>
    %477 = arith.mulf %476, %475 : vector<2x256xf32>
    %478 = arith.addf %470, %477 : vector<2x256xf32>
    %c208_i32_225 = arith.constant 208 : i32
    %479 = tpu.dynamic_rotate %297 by %c208_i32_225 dim 1 : vector<2x256xf32>, i32 -> vector<2x256xf32>
    %c90_226 = arith.constant 90 : index
    %c0_227 = arith.constant 0 : index
    %480 = vector.load %arg4[%c90_226, %c0_227] : memref<98x256xf32, #tpu.memory_space<vmem>>, vector<2x256xf32>
    %481 = arith.mulf %480, %479 : vector<2x256xf32>
    %482 = arith.addf %474, %481 : vector<2x256xf32>
    %c207_i32_228 = arith.constant 207 : i32
    %483 = tpu.dynamic_rotate %297 by %c207_i32_228 dim 1 : vector<2x256xf32>, i32 -> vector<2x256xf32>
    %c92_229 = arith.constant 92 : index
    %c0_230 = arith.constant 0 : index
    %484 = vector.load %arg4[%c92_229, %c0_230] : memref<98x256xf32, #tpu.memory_space<vmem>>, vector<2x256xf32>
    %485 = arith.mulf %484, %483 : vector<2x256xf32>
    %486 = arith.addf %478, %485 : vector<2x256xf32>
    %c206_i32_231 = arith.constant 206 : i32
    %487 = tpu.dynamic_rotate %297 by %c206_i32_231 dim 1 : vector<2x256xf32>, i32 -> vector<2x256xf32>
    %c94_232 = arith.constant 94 : index
    %c0_233 = arith.constant 0 : index
    %488 = vector.load %arg4[%c94_232, %c0_233] : memref<98x256xf32, #tpu.memory_space<vmem>>, vector<2x256xf32>
    %489 = arith.mulf %488, %487 : vector<2x256xf32>
    %490 = arith.addf %482, %489 : vector<2x256xf32>
    %c205_i32_234 = arith.constant 205 : i32
    %491 = tpu.dynamic_rotate %297 by %c205_i32_234 dim 1 : vector<2x256xf32>, i32 -> vector<2x256xf32>
    %c96_235 = arith.constant 96 : index
    %c0_236 = arith.constant 0 : index
    %492 = vector.load %arg4[%c96_235, %c0_236] : memref<98x256xf32, #tpu.memory_space<vmem>>, vector<2x256xf32>
    %493 = arith.mulf %492, %491 : vector<2x256xf32>
    %494 = arith.addf %486, %493 : vector<2x256xf32>
    %495 = arith.addf %494, %490 : vector<2x256xf32>
    %cst_237 = arith.constant dense<0.000000e+00> : vector<256xf32>
    %496 = vector.multi_reduction <add>, %495, %cst_237 [0] : vector<2x256xf32> to vector<256xf32>
    %497 = vector.shape_cast %496 : vector<256xf32> to vector<1x256xf32>
    %498 = arith.negf %497 : vector<1x256xf32>
    %499 = math.exp %498 : vector<1x256xf32>
    %cst_238 = arith.constant 1.000000e+00 : f32
    %500 = vector.broadcast %cst_238 : f32 to vector<1x256xf32>
    %501 = arith.addf %500, %499 : vector<1x256xf32>
    %502 = arith.divf %500, %501 : vector<1x256xf32>
    %503 = vector.broadcast %502 : vector<1x256xf32> to vector<64x256xf32>
    %504 = arith.mulf %283, %503 : vector<64x256xf32>
    %c1_239 = arith.constant 1 : index
    %c0_240 = arith.constant 0 : index
    %c0_241 = arith.constant 0 : index
    %505 = vector.load %arg5[%c1_239, %c0_240, %c0_241] : memref<2x64x256xf32, #tpu.memory_space<vmem>>, vector<1x64x256xf32>
    %506 = vector.shape_cast %505 : vector<1x64x256xf32> to vector<64x256xf32>
    %507 = vector.shape_cast %504 : vector<64x256xf32> to vector<1x64x256xf32>
    tpu.vector_store %arg5[%c1_239, %c0_240, %c0_241], %507 {strides = array<i32>} : memref<2x64x256xf32, #tpu.memory_space<vmem>>, vector<1x64x256xf32>,
    return
  }
  func.func @transform_0(%arg0: i32) -> (i32, i32, i32) {
    %c0_i32 = arith.constant 0 : i32
    %c0_i32_0 = arith.constant 0 : i32
    %c0_i32_1 = arith.constant 0 : i32
    return %arg0, %c0_i32, %c0_i32_0 : i32, i32, i32
  }
  func.func @transform_1(%arg0: i32) -> (i32, i32) {
    %c0_i32 = arith.constant 0 : i32
    %c0_i32_0 = arith.constant 0 : i32
    %c0_i32_1 = arith.constant 0 : i32
    return %c0_i32, %c0_i32_0 : i32, i32
  }
  func.func @transform_2(%arg0: i32) -> (i32, i32) {
    %c0_i32 = arith.constant 0 : i32
    %c0_i32_0 = arith.constant 0 : i32
    %c0_i32_1 = arith.constant 0 : i32
    return %c0_i32, %c0_i32_0 : i32, i32
  }
  func.func @transform_3(%arg0: i32) -> (i32, i32) {
    %c0_i32 = arith.constant 0 : i32
    %c0_i32_0 = arith.constant 0 : i32
    %c0_i32_1 = arith.constant 0 : i32
    return %c0_i32, %c0_i32_0 : i32, i32
  }
  func.func @transform_4(%arg0: i32) -> (i32, i32, i32) {
    %c0_i32 = arith.constant 0 : i32
    %c0_i32_0 = arith.constant 0 : i32
    %c0_i32_1 = arith.constant 0 : i32
    return %arg0, %c0_i32, %c0_i32_0 : i32, i32, i32
  }
}

</mosaic_0001>

<llo_original>
// kernel: tpu_custom_call.1
$region0: #{tpu_custom_call.1}
  #allocation0 [shape = 'u32[]', space=smem, size = 0x4, offset = 0x4, fixed_abs, tag = 'smem constant byte address 0x4 - core index']
  #allocation1 [shape = 'u32[72,128]{1,0:T(1,128)}', space=vmem, size = 0x9000, scoped, tag = 'internal scratch']
  %s0 = inlined_call_operand.hbm [shape: f32[2,64,256], index: 0, kind: input, shape index: {}]
  %s1 = inlined_call_operand.vmem [shape: f32[4,64], index: 1, kind: input, shape index: {}]
  %s2 = inlined_call_operand.vmem [shape: f32[64,4], index: 2, kind: input, shape index: {}]
  %s3 = inlined_call_operand.hbm [shape: f32[98,256], index: 3, kind: input, shape index: {}]
  %s4 = inlined_call_operand.hbm [shape: f32[2,64,256], index: 4, kind: output, shape index: {}]
  %s5 = sld [smem:[#allocation0]]
  $region34: #{tpu_custom_call.1} parent=0
    _
  %s7 = ssub.s32 1, %s5
  %s8 = scalar_select 0, %s7, %s5
  $region1: #{tpu_custom_call.1} parent=0
    #allocation2 [shape = 'u8[131072]{0}', space=vmem, size = 0x20000, scoped, tag = 'input window, operand 0, single buffered']
    #allocation3 [shape = 's32[1]{0}', space=sflag, size = 0x4, scoped, tag = 'scoped memory for tpu_custom_call.1']
    #allocation4 [shape = 's32[1]{0}', space=sflag, size = 0x4, scoped, tag = 'scoped memory for tpu_custom_call.1']
    #allocation5 [shape = 'u8[106496]{0}', space=vmem, size = 0x1a000, scoped, tag = 'input window, operand 3, single buffered']
    #allocation6 [shape = 's32[1]{0}', space=sflag, size = 0x4, scoped, tag = 'scoped memory for tpu_custom_call.1']
    #allocation7 [shape = 'u8[131072]{0}', space=vmem, size = 0x20000, scoped, tag = 'output window, operand 0, single buffered']
    %9 = vsyncpa [#allocation3], 0
    %10 = vsyncpa [#allocation6], 0
    %11 = vsyncpa [#allocation4], 0
    // Predicated region
    $region2: #{tpu_custom_call.1} parent=1 // pred_check
      _
    $region3: #{tpu_custom_call.1} parent=1 // pred_check_branch
      %13 = sbr.rel (0) target = $region5
    $region4: #{tpu_custom_call.1} parent=1 // pred_region
      %15 = vsyncadd [#allocation3], 0
      %s16 = sshll.u32 %s0, 4
      %s17 = int_to_ptr.hbm [resolvable:$true] %s16
      %s18 = sshll.u32 [#allocation2], 4
      %s19 = int_to_ptr.vmem [resolvable:$true] %s18
      %24 = dma.hbm_to_vmem [thread:$0]  %s17, 4096, %s19, [#allocation3], 256, 256, 16
    $region5: #{tpu_custom_call.1} parent=1 // pred_fallthru
      _
    // Predicated region
    $region6: #{tpu_custom_call.1} parent=1 // pred_check
      _
    $region7: #{tpu_custom_call.1} parent=1 // pred_check_branch
      %26 = sbr.rel (0) target = $region9
    $region8: #{tpu_custom_call.1} parent=1 // pred_region
      _
    $region9: #{tpu_custom_call.1} parent=1 // pred_fallthru
      _
    // Predicated region
    $region10: #{tpu_custom_call.1} parent=1 // pred_check
      _
    $region11: #{tpu_custom_call.1} parent=1 // pred_check_branch
      %28 = sbr.rel (0) target = $region13
    $region12: #{tpu_custom_call.1} parent=1 // pred_region
      _
    $region13: #{tpu_custom_call.1} parent=1 // pred_fallthru
      _
    // Predicated region
    $region14: #{tpu_custom_call.1} parent=1 // pred_check
      _
    $region15: #{tpu_custom_call.1} parent=1 // pred_check_branch
      %30 = sbr.rel (0) target = $region17
    $region16: #{tpu_custom_call.1} parent=1 // pred_region
      %32 = vsyncadd [#allocation6], 0
      %s33 = sshll.u32 %s3, 4
      %s34 = int_to_ptr.hbm [resolvable:$true] %s33
      %s35 = sshll.u32 [#allocation5], 4
      %s36 = int_to_ptr.vmem [resolvable:$true] %s35
      %41 = dma.hbm_to_vmem [thread:$0]  %s34, 3328, %s36, [#allocation6], 256, 256, 16
    $region17: #{tpu_custom_call.1} parent=1 // pred_fallthru
      _
    // Predicated region
    $region18: #{tpu_custom_call.1} parent=1 // pred_check
      _
    $region19: #{tpu_custom_call.1} parent=1 // pred_check_branch
      %43 = sbr.rel (0) target = $region21
    $region20: #{tpu_custom_call.1} parent=1 // pred_region
      %45 = dma.done [#allocation3], 4096
    $region21: #{tpu_custom_call.1} parent=1 // pred_fallthru
      _
    // Predicated region
    $region22: #{tpu_custom_call.1} parent=1 // pred_check
      _
    $region23: #{tpu_custom_call.1} parent=1 // pred_check_branch
      %47 = sbr.rel (0) target = $region25
    $region24: #{tpu_custom_call.1} parent=1 // pred_region
      %49 = dma.done [#allocation6], 3328
    $region25: #{tpu_custom_call.1} parent=1 // pred_fallthru
      _
    %v50 = vld [vmem:[%s1] sm:$0xf]
    %v51 = vld [vmem:[%s2] sm:$0xff]
    %v52 = vld [vmem:[%s2 + $0x8] sm:$0xff]
    %v53 = vld [vmem:[%s2 + $0x10] sm:$0xff]
    %v54 = vld [vmem:[%s2 + $0x18] sm:$0xff]
    %v55 = vld [vmem:[%s2 + $0x20] sm:$0xff]
    %v56 = vld [vmem:[%s2 + $0x28] sm:$0xff]
    %v57 = vld [vmem:[%s2 + $0x30] sm:$0xff]
    %v58 = vld [vmem:[%s2 + $0x38] sm:$0xff]
    %v59 = vld [vmem:[#allocation2] sm:$0xff]
    %v60 = vld [vmem:[#allocation2 + $0x8] sm:$0xff]
    %v61 = vld [vmem:[#allocation2 + $0x10] sm:$0xff]
    %v62 = vld [vmem:[#allocation2 + $0x18] sm:$0xff]
    %v63 = vld [vmem:[#allocation2 + $0x20] sm:$0xff]
    %v64 = vld [vmem:[#allocation2 + $0x28] sm:$0xff]
    %v65 = vld [vmem:[#allocation2 + $0x30] sm:$0xff]
    %v66 = vld [vmem:[#allocation2 + $0x38] sm:$0xff]
    %v67 = vld [vmem:[#allocation2 + $0x40] sm:$0xff]
    %v68 = vld [vmem:[#allocation2 + $0x48] sm:$0xff]
    %v69 = vld [vmem:[#allocation2 + $0x50] sm:$0xff]
    %v70 = vld [vmem:[#allocation2 + $0x58] sm:$0xff]
    %v71 = vld [vmem:[#allocation2 + $0x60] sm:$0xff]
    %v72 = vld [vmem:[#allocation2 + $0x68] sm:$0xff]
    %v73 = vld [vmem:[#allocation2 + $0x70] sm:$0xff]
    %v74 = vld [vmem:[#allocation2 + $0x78] sm:$0xff]
    %v75 = vmax.f32 %v59, %v60
    %76 = vmax.xlane.f32.xlu0 %v75
    %v77 = vpop.xlane.xlu0 %76
    %v78 = vmax.f32 %v61, %v62
    %79 = vmax.xlane.f32.xlu0 %v78
    %v80 = vpop.xlane.xlu0 %79
    %v81 = vmax.f32 %v63, %v64
    %82 = vmax.xlane.f32.xlu0 %v81
    %v83 = vpop.xlane.xlu0 %82
    %v84 = vmax.f32 %v65, %v66
    %85 = vmax.xlane.f32.xlu0 %v84
    %v86 = vpop.xlane.xlu0 %85
    %v87 = vmax.f32 %v67, %v68
    %88 = vmax.xlane.f32.xlu0 %v87
    %v89 = vpop.xlane.xlu0 %88
    %v90 = vmax.f32 %v69, %v70
    %91 = vmax.xlane.f32.xlu0 %v90
    %v92 = vpop.xlane.xlu0 %91
    %v93 = vmax.f32 %v71, %v72
    %94 = vmax.xlane.f32.xlu0 %v93
    %v95 = vpop.xlane.xlu0 %94
    %v96 = vmax.f32 %v73, %v74
    %97 = vmax.xlane.f32.xlu0 %v96
    %v98 = vpop.xlane.xlu0 %97
    %v99 = vadd.f32 %v59, %v60
    %100 = vadd.xlane.f32.xlu0 %v99
    %v101 = vpop.xlane.xlu0 %100
    %v102 = vadd.f32 %v61, %v62
    %103 = vadd.xlane.f32.xlu0 %v102
    %v104 = vpop.xlane.xlu0 %103
    %v105 = vadd.f32 %v63, %v64
    %106 = vadd.xlane.f32.xlu0 %v105
    %v107 = vpop.xlane.xlu0 %106
    %v108 = vadd.f32 %v65, %v66
    %109 = vadd.xlane.f32.xlu0 %v108
    %v110 = vpop.xlane.xlu0 %109
    %v111 = vadd.f32 %v67, %v68
    %112 = vadd.xlane.f32.xlu0 %v111
    %v113 = vpop.xlane.xlu0 %112
    %v114 = vadd.f32 %v69, %v70
    %115 = vadd.xlane.f32.xlu0 %v114
    %v116 = vpop.xlane.xlu0 %115
    %v117 = vadd.f32 %v71, %v72
    %118 = vadd.xlane.f32.xlu0 %v117
    %v119 = vpop.xlane.xlu0 %118
    %v120 = vadd.f32 %v73, %v74
    %121 = vadd.xlane.f32.xlu0 %v120
    %v122 = vpop.xlane.xlu0 %121
    %v123 = vmul.f32 %v101, 0.00390625
    %v124 = vmul.f32 %v104, 0.00390625
    %v125 = vmul.f32 %v107, 0.00390625
    %v126 = vmul.f32 %v110, 0.00390625
    %v127 = vmul.f32 %v113, 0.00390625
    %v128 = vmul.f32 %v116, 0.00390625
    %v129 = vmul.f32 %v119, 0.00390625
    %v130 = vmul.f32 %v122, 0.00390625
    %v131 = vlaneseq
    %v132 = vand.u32 %v131, 127
    %vm133 = vcmp.eq.s32.totalorder %v132, 0
    %v134 = vsel %vm133, %v77, %v123
    %v135 = vsel %vm133, %v80, %v124
    %v136 = vsel %vm133, %v83, %v125
    %v137 = vsel %vm133, %v86, %v126
    %v138 = vsel %vm133, %v89, %v127
    %v139 = vsel %vm133, %v92, %v128
    %v140 = vsel %vm133, %v95, %v129
    %v141 = vsel %vm133, %v98, %v130
    %vm142 = vcmask 523264
    %v144 = vsel %vm142, %v50, 0
    %146 = vmatpush.msra.mxu0 0.0
    %147 = vmatpush.msra.mxu0 0.0
    %148 = vmatpush.msra.mxu0 0.0
    %149 = vmatpush.msra.mxu0 0.0
    %150 = vmatpush.msra.mxu0 0.0
    %151 = vmatpush.msra.mxu0 0.0
    %152 = vmatpush.msra.mxu0 0.0
    %153 = vmatpush.msra.mxu0 0.0
    %v154 = vand.u32 %v141, 4294901760
    %155 = vmatpush.msra.mxu0 %v154
    %v156 = vand.u32 %v140, 4294901760
    %157 = vmatpush.msra.mxu0 %v156
    %v158 = vand.u32 %v139, 4294901760
    %159 = vmatpush.msra.mxu0 %v158
    %v160 = vand.u32 %v138, 4294901760
    %161 = vmatpush.msra.mxu0 %v160
    %v162 = vand.u32 %v137, 4294901760
    %163 = vmatpush.msra.mxu0 %v162
    %v164 = vand.u32 %v136, 4294901760
    %165 = vmatpush.msra.mxu0 %v164
    %v166 = vand.u32 %v135, 4294901760
    %167 = vmatpush.msra.mxu0 %v166
    %v168 = vand.u32 %v134, 4294901760
    %169 = vmatpush.msra.mxu0 %v168
    %v170 = vand.u32 %v144, 4294901760
    %v171 = vsub.f32 %v144, %v170
    %v172 = vand.u32 %v171, 4294901760
    %v173 = vsub.f32 %v171, %v172
    %v174 = vand.u32 %v173, 4294901760
    %175 = vmatmul.f32.gmra.mxu0 %v174
    %v176 = vpop.f32.mrf.mxu0
    %v177 = vadd.f32 0.0, %v176
    %178 = vdwg.mxu0
    %179 = vmatpush.msra.mxu0 0.0
    %180 = vmatpush.msra.mxu0 0.0
    %181 = vmatpush.msra.mxu0 0.0
    %182 = vmatpush.msra.mxu0 0.0
    %183 = vmatpush.msra.mxu0 0.0
    %184 = vmatpush.msra.mxu0 0.0
    %185 = vmatpush.msra.mxu0 0.0
    %186 = vmatpush.msra.mxu0 0.0
    %v187 = vand.u32 %v141, 4294901760
    %v188 = vsub.f32 %v141, %v187
    %v189 = vand.u32 %v188, 4294901760
    %v190 = vsub.f32 %v188, %v189
    %v191 = vand.u32 %v190, 4294901760
    %192 = vmatpush.msra.mxu0 %v191
    %v193 = vand.u32 %v140, 4294901760
    %v194 = vsub.f32 %v140, %v193
    %v195 = vand.u32 %v194, 4294901760
    %v196 = vsub.f32 %v194, %v195
    %v197 = vand.u32 %v196, 4294901760
    %198 = vmatpush.msra.mxu0 %v197
    %v199 = vand.u32 %v139, 4294901760
    %v200 = vsub.f32 %v139, %v199
    %v201 = vand.u32 %v200, 4294901760
    %v202 = vsub.f32 %v200, %v201
    %v203 = vand.u32 %v202, 4294901760
    %204 = vmatpush.msra.mxu0 %v203
    %v205 = vand.u32 %v138, 4294901760
    %v206 = vsub.f32 %v138, %v205
    %v207 = vand.u32 %v206, 4294901760
    %v208 = vsub.f32 %v206, %v207
    %v209 = vand.u32 %v208, 4294901760
    %210 = vmatpush.msra.mxu0 %v209
    %v211 = vand.u32 %v137, 4294901760
    %v212 = vsub.f32 %v137, %v211
    %v213 = vand.u32 %v212, 4294901760
    %v214 = vsub.f32 %v212, %v213
    %v215 = vand.u32 %v214, 4294901760
    %216 = vmatpush.msra.mxu0 %v215
    %v217 = vand.u32 %v136, 4294901760
    %v218 = vsub.f32 %v136, %v217
    %v219 = vand.u32 %v218, 4294901760
    %v220 = vsub.f32 %v218, %v219
    %v221 = vand.u32 %v220, 4294901760
    %222 = vmatpush.msra.mxu0 %v221
    %v223 = vand.u32 %v135, 4294901760
    %v224 = vsub.f32 %v135, %v223
    %v225 = vand.u32 %v224, 4294901760
    %v226 = vsub.f32 %v224, %v225
    %v227 = vand.u32 %v226, 4294901760
    %228 = vmatpush.msra.mxu0 %v227
    %v229 = vand.u32 %v134, 4294901760
    %v230 = vsub.f32 %v134, %v229
    %v231 = vand.u32 %v230, 4294901760
    %v232 = vsub.f32 %v230, %v231
    %v233 = vand.u32 %v232, 4294901760
    %234 = vmatpush.msra.mxu0 %v233
    %v235 = vand.u32 %v144, 4294901760
    %236 = vmatmul.f32.gmra.mxu0 %v235
    %v237 = vpop.f32.mrf.mxu0
    %v238 = vadd.f32 %v177, %v237
    %239 = vdwg.mxu0
    %240 = vmatpush.msra.mxu0 0.0
    %241 = vmatpush.msra.mxu0 0.0
    %242 = vmatpush.msra.mxu0 0.0
    %243 = vmatpush.msra.mxu0 0.0
    %244 = vmatpush.msra.mxu0 0.0
    %245 = vmatpush.msra.mxu0 0.0
    %246 = vmatpush.msra.mxu0 0.0
    %247 = vmatpush.msra.mxu0 0.0
    %v248 = vand.u32 %v141, 4294901760
    %v249 = vsub.f32 %v141, %v248
    %250 = vmatpush.msra.mxu0 %v249
    %v251 = vand.u32 %v140, 4294901760
    %v252 = vsub.f32 %v140, %v251
    %253 = vmatpush.msra.mxu0 %v252
    %v254 = vand.u32 %v139, 4294901760
    %v255 = vsub.f32 %v139, %v254
    %256 = vmatpush.msra.mxu0 %v255
    %v257 = vand.u32 %v138, 4294901760
    %v258 = vsub.f32 %v138, %v257
    %259 = vmatpush.msra.mxu0 %v258
    %v260 = vand.u32 %v137, 4294901760
    %v261 = vsub.f32 %v137, %v260
    %262 = vmatpush.msra.mxu0 %v261
    %v263 = vand.u32 %v136, 4294901760
    %v264 = vsub.f32 %v136, %v263
    %265 = vmatpush.msra.mxu0 %v264
    %v266 = vand.u32 %v135, 4294901760
    %v267 = vsub.f32 %v135, %v266
    %268 = vmatpush.msra.mxu0 %v267
    %v269 = vand.u32 %v134, 4294901760
    %v270 = vsub.f32 %v134, %v269
    %271 = vmatpush.msra.mxu0 %v270
    %v272 = vand.u32 %v144, 4294901760
    %v273 = vsub.f32 %v144, %v272
    %274 = vmatmul.f32.gmra.mxu0 %v273
    %v275 = vpop.f32.mrf.mxu0
    %v276 = vadd.f32 %v238, %v275
    %277 = vdwg.mxu0
    %278 = vmatpush.msra.mxu0 0.0
    %279 = vmatpush.msra.mxu0 0.0
    %280 = vmatpush.msra.mxu0 0.0
    %281 = vmatpush.msra.mxu0 0.0
    %282 = vmatpush.msra.mxu0 0.0
    %283 = vmatpush.msra.mxu0 0.0
    %284 = vmatpush.msra.mxu0 0.0
    %285 = vmatpush.msra.mxu0 0.0
    %v286 = vand.u32 %v141, 4294901760
    %287 = vmatpush.msra.mxu0 %v286
    %v288 = vand.u32 %v140, 4294901760
    %289 = vmatpush.msra.mxu0 %v288
    %v290 = vand.u32 %v139, 4294901760
    %291 = vmatpush.msra.mxu0 %v290
    %v292 = vand.u32 %v138, 4294901760
    %293 = vmatpush.msra.mxu0 %v292
    %v294 = vand.u32 %v137, 4294901760
    %295 = vmatpush.msra.mxu0 %v294
    %v296 = vand.u32 %v136, 4294901760
    %297 = vmatpush.msra.mxu0 %v296
    %v298 = vand.u32 %v135, 4294901760
    %299 = vmatpush.msra.mxu0 %v298
    %v300 = vand.u32 %v134, 4294901760
    %301 = vmatpush.msra.mxu0 %v300
    %v302 = vand.u32 %v144, 4294901760
    %v303 = vsub.f32 %v144, %v302
    %v304 = vand.u32 %v303, 4294901760
    %305 = vmatmul.f32.gmra.mxu0 %v304
    %v306 = vpop.f32.mrf.mxu0
    %v307 = vadd.f32 %v276, %v306
    %308 = vdwg.mxu0
    %309 = vmatpush.msra.mxu0 0.0
    %310 = vmatpush.msra.mxu0 0.0
    %311 = vmatpush.msra.mxu0 0.0
    %312 = vmatpush.msra.mxu0 0.0
    %313 = vmatpush.msra.mxu0 0.0
    %314 = vmatpush.msra.mxu0 0.0
    %315 = vmatpush.msra.mxu0 0.0
    %316 = vmatpush.msra.mxu0 0.0
    %v317 = vand.u32 %v141, 4294901760
    %v318 = vsub.f32 %v141, %v317
    %v319 = vand.u32 %v318, 4294901760
    %320 = vmatpush.msra.mxu0 %v319
    %v321 = vand.u32 %v140, 4294901760
    %v322 = vsub.f32 %v140, %v321
    %v323 = vand.u32 %v322, 4294901760
    %324 = vmatpush.msra.mxu0 %v323
    %v325 = vand.u32 %v139, 4294901760
    %v326 = vsub.f32 %v139, %v325
    %v327 = vand.u32 %v326, 4294901760
    %328 = vmatpush.msra.mxu0 %v327
    %v329 = vand.u32 %v138, 4294901760
    %v330 = vsub.f32 %v138, %v329
    %v331 = vand.u32 %v330, 4294901760
    %332 = vmatpush.msra.mxu0 %v331
    %v333 = vand.u32 %v137, 4294901760
    %v334 = vsub.f32 %v137, %v333
    %v335 = vand.u32 %v334, 4294901760
    %336 = vmatpush.msra.mxu0 %v335
    %v337 = vand.u32 %v136, 4294901760
    %v338 = vsub.f32 %v136, %v337
    %v339 = vand.u32 %v338, 4294901760
    %340 = vmatpush.msra.mxu0 %v339
    %v341 = vand.u32 %v135, 4294901760
    %v342 = vsub.f32 %v135, %v341
    %v343 = vand.u32 %v342, 4294901760
    %344 = vmatpush.msra.mxu0 %v343
    %v345 = vand.u32 %v134, 4294901760
    %v346 = vsub.f32 %v134, %v345
    %v347 = vand.u32 %v346, 4294901760
    %348 = vmatpush.msra.mxu0 %v347
    %v349 = vand.u32 %v144, 4294901760
    %350 = vmatmul.f32.gmra.mxu0 %v349
    %v351 = vpop.f32.mrf.mxu0
    %v352 = vadd.f32 %v307, %v351
    %353 = vdwg.mxu0
    %354 = vmatpush.msra.mxu0 0.0
    %355 = vmatpush.msra.mxu0 0.0
    %356 = vmatpush.msra.mxu0 0.0
    %357 = vmatpush.msra.mxu0 0.0
    %358 = vmatpush.msra.mxu0 0.0
    %359 = vmatpush.msra.mxu0 0.0
    %360 = vmatpush.msra.mxu0 0.0
    %361 = vmatpush.msra.mxu0 0.0
    %v362 = vand.u32 %v141, 4294901760
    %363 = vmatpush.msra.mxu0 %v362
    %v364 = vand.u32 %v140, 4294901760
    %365 = vmatpush.msra.mxu0 %v364
    %v366 = vand.u32 %v139, 4294901760
    %367 = vmatpush.msra.mxu0 %v366
    %v368 = vand.u32 %v138, 4294901760
    %369 = vmatpush.msra.mxu0 %v368
    %v370 = vand.u32 %v137, 4294901760
    %371 = vmatpush.msra.mxu0 %v370
    %v372 = vand.u32 %v136, 4294901760
    %373 = vmatpush.msra.mxu0 %v372
    %v374 = vand.u32 %v135, 4294901760
    %375 = vmatpush.msra.mxu0 %v374
    %v376 = vand.u32 %v134, 4294901760
    %377 = vmatpush.msra.mxu0 %v376
    %v378 = vand.u32 %v144, 4294901760
    %379 = vmatmul.f32.gmra.mxu0 %v378
    %v380 = vpop.f32.mrf.mxu0
    %v381 = vadd.f32 %v352, %v380
    %382 = vdwg.mxu0
    %v383 = vmax.f32 %v381, 0.0
    %vm384 = vcmask 31744
    %v386 = vsel %vm384, %v51, 0
    %v389 = vsel %vm384, %v52, 0
    %v392 = vsel %vm384, %v53, 0
    %v395 = vsel %vm384, %v54, 0
    %v398 = vsel %vm384, %v55, 0
    %v401 = vsel %vm384, %v56, 0
    %v404 = vsel %vm384, %v57, 0
    %v407 = vsel %vm384, %v58, 0
    %vm409 = vcmask 1043456
    %v411 = vsel %vm409, %v383, 0
    %413 = vmatpush.msra.mxu0 0.0
    %414 = vmatpush.msra.mxu0 0.0
    %415 = vmatpush.msra.mxu0 0.0
    %416 = vmatpush.msra.mxu0 0.0
    %417 = vmatpush.msra.mxu0 0.0
    %418 = vmatpush.msra.mxu0 0.0
    %419 = vmatpush.msra.mxu0 0.0
    %420 = vmatpush.msra.mxu0 0.0
    %421 = vmatpush.msra.mxu0 0.0
    %422 = vmatpush.msra.mxu0 0.0
    %423 = vmatpush.msra.mxu0 0.0
    %424 = vmatpush.msra.mxu0 0.0
    %425 = vmatpush.msra.mxu0 0.0
    %426 = vmatpush.msra.mxu0 0.0
    %427 = vmatpush.msra.mxu0 0.0
    %v428 = vand.u32 %v411, 4294901760
    %429 = vmatpush.msra.mxu0 %v428
    %v430 = vand.u32 %v386, 4294901760
    %v431 = vsub.f32 %v386, %v430
    %v432 = vand.u32 %v431, 4294901760
    %v433 = vsub.f32 %v431, %v432
    %v434 = vand.u32 %v433, 4294901760
    %435 = vmatmul.f32.gmra.mxu0 %v434
    %v436 = vpop.f32.mrf.mxu0
    %v437 = vadd.f32 0.0, %v436
    %v438 = vand.u32 %v389, 4294901760
    %v439 = vsub.f32 %v389, %v438
    %v440 = vand.u32 %v439, 4294901760
    %v441 = vsub.f32 %v439, %v440
    %v442 = vand.u32 %v441, 4294901760
    %443 = vmatmul.f32.gmra.mxu0 %v442
    %v444 = vpop.f32.mrf.mxu0
    %v445 = vadd.f32 0.0, %v444
    %v446 = vand.u32 %v392, 4294901760
    %v447 = vsub.f32 %v392, %v446
    %v448 = vand.u32 %v447, 4294901760
    %v449 = vsub.f32 %v447, %v448
    %v450 = vand.u32 %v449, 4294901760
    %451 = vmatmul.f32.gmra.mxu0 %v450
    %v452 = vpop.f32.mrf.mxu0
    %v453 = vadd.f32 0.0, %v452
    %v454 = vand.u32 %v395, 4294901760
    %v455 = vsub.f32 %v395, %v454
    %v456 = vand.u32 %v455, 4294901760
    %v457 = vsub.f32 %v455, %v456
    %v458 = vand.u32 %v457, 4294901760
    %459 = vmatmul.f32.gmra.mxu0 %v458
    %v460 = vpop.f32.mrf.mxu0
    %v461 = vadd.f32 0.0, %v460
    %v462 = vand.u32 %v398, 4294901760
    %v463 = vsub.f32 %v398, %v462
    %v464 = vand.u32 %v463, 4294901760
    %v465 = vsub.f32 %v463, %v464
    %v466 = vand.u32 %v465, 4294901760
    %467 = vmatmul.f32.gmra.mxu0 %v466
    %v468 = vpop.f32.mrf.mxu0
    %v469 = vadd.f32 0.0, %v468
    %v470 = vand.u32 %v401, 4294901760
    %v471 = vsub.f32 %v401, %v470
    %v472 = vand.u32 %v471, 4294901760
    %v473 = vsub.f32 %v471, %v472
    %v474 = vand.u32 %v473, 4294901760
    %475 = vmatmul.f32.gmra.mxu0 %v474
    %v476 = vpop.f32.mrf.mxu0
    %v477 = vadd.f32 0.0, %v476
    %v478 = vand.u32 %v404, 4294901760
    %v479 = vsub.f32 %v404, %v478
    %v480 = vand.u32 %v479, 4294901760
    %v481 = vsub.f32 %v479, %v480
    %v482 = vand.u32 %v481, 4294901760
    %483 = vmatmul.f32.gmra.mxu0 %v482
    %v484 = vpop.f32.mrf.mxu0
    %v485 = vadd.f32 0.0, %v484
    %v486 = vand.u32 %v407, 4294901760
    %v487 = vsub.f32 %v407, %v486
    %v488 = vand.u32 %v487, 4294901760
    %v489 = vsub.f32 %v487, %v488
    %v490 = vand.u32 %v489, 4294901760
    %491 = vmatmul.f32.gmra.mxu0 %v490
    %v492 = vpop.f32.mrf.mxu0
    %v493 = vadd.f32 0.0, %v492
    %494 = vdwg.mxu0
    %495 = vmatpush.msra.mxu0 0.0
    %496 = vmatpush.msra.mxu0 0.0
    %497 = vmatpush.msra.mxu0 0.0
    %498 = vmatpush.msra.mxu0 0.0
    %499 = vmatpush.msra.mxu0 0.0
    %500 = vmatpush.msra.mxu0 0.0
    %501 = vmatpush.msra.mxu0 0.0
    %502 = vmatpush.msra.mxu0 0.0
    %503 = vmatpush.msra.mxu0 0.0
    %504 = vmatpush.msra.mxu0 0.0
    %505 = vmatpush.msra.mxu0 0.0
    %506 = vmatpush.msra.mxu0 0.0
    %507 = vmatpush.msra.mxu0 0.0
    %508 = vmatpush.msra.mxu0 0.0
    %509 = vmatpush.msra.mxu0 0.0
    %v510 = vand.u32 %v411, 4294901760
    %v511 = vsub.f32 %v411, %v510
    %v512 = vand.u32 %v511, 4294901760
    %v513 = vsub.f32 %v511, %v512
    %v514 = vand.u32 %v513, 4294901760
    %515 = vmatpush.msra.mxu0 %v514
    %v516 = vand.u32 %v386, 4294901760
    %517 = vmatmul.f32.gmra.mxu0 %v516
    %v518 = vpop.f32.mrf.mxu0
    %v519 = vadd.f32 %v437, %v518
    %v520 = vand.u32 %v389, 4294901760
    %521 = vmatmul.f32.gmra.mxu0 %v520
    %v522 = vpop.f32.mrf.mxu0
    %v523 = vadd.f32 %v445, %v522
    %v524 = vand.u32 %v392, 4294901760
    %525 = vmatmul.f32.gmra.mxu0 %v524
    %v526 = vpop.f32.mrf.mxu0
    %v527 = vadd.f32 %v453, %v526
    %v528 = vand.u32 %v395, 4294901760
    %529 = vmatmul.f32.gmra.mxu0 %v528
    %v530 = vpop.f32.mrf.mxu0
    %v531 = vadd.f32 %v461, %v530
    %v532 = vand.u32 %v398, 4294901760
    %533 = vmatmul.f32.gmra.mxu0 %v532
    %v534 = vpop.f32.mrf.mxu0
    %v535 = vadd.f32 %v469, %v534
    %v536 = vand.u32 %v401, 4294901760
    %537 = vmatmul.f32.gmra.mxu0 %v536
    %v538 = vpop.f32.mrf.mxu0
    %v539 = vadd.f32 %v477, %v538
    %v540 = vand.u32 %v404, 4294901760
    %541 = vmatmul.f32.gmra.mxu0 %v540
    %v542 = vpop.f32.mrf.mxu0
    %v543 = vadd.f32 %v485, %v542
    %v544 = vand.u32 %v407, 4294901760
    %545 = vmatmul.f32.gmra.mxu0 %v544
    %v546 = vpop.f32.mrf.mxu0
    %v547 = vadd.f32 %v493, %v546
    %548 = vdwg.mxu0
    %549 = vmatpush.msra.mxu0 0.0
    %550 = vmatpush.msra.mxu0 0.0
    %551 = vmatpush.msra.mxu0 0.0
    %552 = vmatpush.msra.mxu0 0.0
    %553 = vmatpush.msra.mxu0 0.0
    %554 = vmatpush.msra.mxu0 0.0
    %555 = vmatpush.msra.mxu0 0.0
    %556 = vmatpush.msra.mxu0 0.0
    %557 = vmatpush.msra.mxu0 0.0
    %558 = vmatpush.msra.mxu0 0.0
    %559 = vmatpush.msra.mxu0 0.0
    %560 = vmatpush.msra.mxu0 0.0
    %561 = vmatpush.msra.mxu0 0.0
    %562 = vmatpush.msra.mxu0 0.0
    %563 = vmatpush.msra.mxu0 0.0
    %v564 = vand.u32 %v411, 4294901760
    %v565 = vsub.f32 %v411, %v564
    %566 = vmatpush.msra.mxu0 %v565
    %v567 = vand.u32 %v386, 4294901760
    %v568 = vsub.f32 %v386, %v567
    %569 = vmatmul.f32.gmra.mxu0 %v568
    %v570 = vpop.f32.mrf.mxu0
    %v571 = vadd.f32 %v519, %v570
    %v572 = vand.u32 %v389, 4294901760
    %v573 = vsub.f32 %v389, %v572
    %574 = vmatmul.f32.gmra.mxu0 %v573
    %v575 = vpop.f32.mrf.mxu0
    %v576 = vadd.f32 %v523, %v575
    %v577 = vand.u32 %v392, 4294901760
    %v578 = vsub.f32 %v392, %v577
    %579 = vmatmul.f32.gmra.mxu0 %v578
    %v580 = vpop.f32.mrf.mxu0
    %v581 = vadd.f32 %v527, %v580
    %v582 = vand.u32 %v395, 4294901760
    %v583 = vsub.f32 %v395, %v582
    %584 = vmatmul.f32.gmra.mxu0 %v583
    %v585 = vpop.f32.mrf.mxu0
    %v586 = vadd.f32 %v531, %v585
    %v587 = vand.u32 %v398, 4294901760
    %v588 = vsub.f32 %v398, %v587
    %589 = vmatmul.f32.gmra.mxu0 %v588
    %v590 = vpop.f32.mrf.mxu0
    %v591 = vadd.f32 %v535, %v590
    %v592 = vand.u32 %v401, 4294901760
    %v593 = vsub.f32 %v401, %v592
    %594 = vmatmul.f32.gmra.mxu0 %v593
    %v595 = vpop.f32.mrf.mxu0
    %v596 = vadd.f32 %v539, %v595
    %v597 = vand.u32 %v404, 4294901760
    %v598 = vsub.f32 %v404, %v597
    %599 = vmatmul.f32.gmra.mxu0 %v598
    %v600 = vpop.f32.mrf.mxu0
    %v601 = vadd.f32 %v543, %v600
    %v602 = vand.u32 %v407, 4294901760
    %v603 = vsub.f32 %v407, %v602
    %604 = vmatmul.f32.gmra.mxu0 %v603
    %v605 = vpop.f32.mrf.mxu0
    %v606 = vadd.f32 %v547, %v605
    %607 = vdwg.mxu0
    %608 = vmatpush.msra.mxu0 0.0
    %609 = vmatpush.msra.mxu0 0.0
    %610 = vmatpush.msra.mxu0 0.0
    %611 = vmatpush.msra.mxu0 0.0
    %612 = vmatpush.msra.mxu0 0.0
    %613 = vmatpush.msra.mxu0 0.0
    %614 = vmatpush.msra.mxu0 0.0
    %615 = vmatpush.msra.mxu0 0.0
    %616 = vmatpush.msra.mxu0 0.0
    %617 = vmatpush.msra.mxu0 0.0
    %618 = vmatpush.msra.mxu0 0.0
    %619 = vmatpush.msra.mxu0 0.0
    %620 = vmatpush.msra.mxu0 0.0
    %621 = vmatpush.msra.mxu0 0.0
    %622 = vmatpush.msra.mxu0 0.0
    %v623 = vand.u32 %v411, 4294901760
    %624 = vmatpush.msra.mxu0 %v623
    %v625 = vand.u32 %v386, 4294901760
    %v626 = vsub.f32 %v386, %v625
    %v627 = vand.u32 %v626, 4294901760
    %628 = vmatmul.f32.gmra.mxu0 %v627
    %v629 = vpop.f32.mrf.mxu0
    %v630 = vadd.f32 %v571, %v629
    %v631 = vand.u32 %v389, 4294901760
    %v632 = vsub.f32 %v389, %v631
    %v633 = vand.u32 %v632, 4294901760
    %634 = vmatmul.f32.gmra.mxu0 %v633
    %v635 = vpop.f32.mrf.mxu0
    %v636 = vadd.f32 %v576, %v635
    %v637 = vand.u32 %v392, 4294901760
    %v638 = vsub.f32 %v392, %v637
    %v639 = vand.u32 %v638, 4294901760
    %640 = vmatmul.f32.gmra.mxu0 %v639
    %v641 = vpop.f32.mrf.mxu0
    %v642 = vadd.f32 %v581, %v641
    %v643 = vand.u32 %v395, 4294901760
    %v644 = vsub.f32 %v395, %v643
    %v645 = vand.u32 %v644, 4294901760
    %646 = vmatmul.f32.gmra.mxu0 %v645
    %v647 = vpop.f32.mrf.mxu0
    %v648 = vadd.f32 %v586, %v647
    %v649 = vand.u32 %v398, 4294901760
    %v650 = vsub.f32 %v398, %v649
    %v651 = vand.u32 %v650, 4294901760
    %652 = vmatmul.f32.gmra.mxu0 %v651
    %v653 = vpop.f32.mrf.mxu0
    %v654 = vadd.f32 %v591, %v653
    %v655 = vand.u32 %v401, 4294901760
    %v656 = vsub.f32 %v401, %v655
    %v657 = vand.u32 %v656, 4294901760
    %658 = vmatmul.f32.gmra.mxu0 %v657
    %v659 = vpop.f32.mrf.mxu0
    %v660 = vadd.f32 %v596, %v659
    %v661 = vand.u32 %v404, 4294901760
    %v662 = vsub.f32 %v404, %v661
    %v663 = vand.u32 %v662, 4294901760
    %664 = vmatmul.f32.gmra.mxu0 %v663
    %v665 = vpop.f32.mrf.mxu0
    %v666 = vadd.f32 %v601, %v665
    %v667 = vand.u32 %v407, 4294901760
    %v668 = vsub.f32 %v407, %v667
    %v669 = vand.u32 %v668, 4294901760
    %670 = vmatmul.f32.gmra.mxu0 %v669
    %v671 = vpop.f32.mrf.mxu0
    %v672 = vadd.f32 %v606, %v671
    %673 = vdwg.mxu0
    %674 = vmatpush.msra.mxu0 0.0
    %675 = vmatpush.msra.mxu0 0.0
    %676 = vmatpush.msra.mxu0 0.0
    %677 = vmatpush.msra.mxu0 0.0
    %678 = vmatpush.msra.mxu0 0.0
    %679 = vmatpush.msra.mxu0 0.0
    %680 = vmatpush.msra.mxu0 0.0
    %681 = vmatpush.msra.mxu0 0.0
    %682 = vmatpush.msra.mxu0 0.0
    %683 = vmatpush.msra.mxu0 0.0
    %684 = vmatpush.msra.mxu0 0.0
    %685 = vmatpush.msra.mxu0 0.0
    %686 = vmatpush.msra.mxu0 0.0
    %687 = vmatpush.msra.mxu0 0.0
    %688 = vmatpush.msra.mxu0 0.0
    %v689 = vand.u32 %v411, 4294901760
    %v690 = vsub.f32 %v411, %v689
    %v691 = vand.u32 %v690, 4294901760
    %692 = vmatpush.msra.mxu0 %v691
    %v693 = vand.u32 %v386, 4294901760
    %694 = vmatmul.f32.gmra.mxu0 %v693
    %v695 = vpop.f32.mrf.mxu0
    %v696 = vadd.f32 %v630, %v695
    %v697 = vand.u32 %v389, 4294901760
    %698 = vmatmul.f32.gmra.mxu0 %v697
    %v699 = vpop.f32.mrf.mxu0
    %v700 = vadd.f32 %v636, %v699
    %v701 = vand.u32 %v392, 4294901760
    %702 = vmatmul.f32.gmra.mxu0 %v701
    %v703 = vpop.f32.mrf.mxu0
    %v704 = vadd.f32 %v642, %v703
    %v705 = vand.u32 %v395, 4294901760
    %706 = vmatmul.f32.gmra.mxu0 %v705
    %v707 = vpop.f32.mrf.mxu0
    %v708 = vadd.f32 %v648, %v707
    %v709 = vand.u32 %v398, 4294901760
    %710 = vmatmul.f32.gmra.mxu0 %v709
    %v711 = vpop.f32.mrf.mxu0
    %v712 = vadd.f32 %v654, %v711
    %v713 = vand.u32 %v401, 4294901760
    %714 = vmatmul.f32.gmra.mxu0 %v713
    %v715 = vpop.f32.mrf.mxu0
    %v716 = vadd.f32 %v660, %v715
    %v717 = vand.u32 %v404, 4294901760
    %718 = vmatmul.f32.gmra.mxu0 %v717
    %v719 = vpop.f32.mrf.mxu0
    %v720 = vadd.f32 %v666, %v719
    %v721 = vand.u32 %v407, 4294901760
    %722 = vmatmul.f32.gmra.mxu0 %v721
    %v723 = vpop.f32.mrf.mxu0
    %v724 = vadd.f32 %v672, %v723
    %725 = vdwg.mxu0
    %726 = vmatpush.msra.mxu0 0.0
    %727 = vmatpush.msra.mxu0 0.0
    %728 = vmatpush.msra.mxu0 0.0
    %729 = vmatpush.msra.mxu0 0.0
    %730 = vmatpush.msra.mxu0 0.0
    %731 = vmatpush.msra.mxu0 0.0
    %732 = vmatpush.msra.mxu0 0.0
    %733 = vmatpush.msra.mxu0 0.0
    %734 = vmatpush.msra.mxu0 0.0
    %735 = vmatpush.msra.mxu0 0.0
    %736 = vmatpush.msra.mxu0 0.0
    %737 = vmatpush.msra.mxu0 0.0
    %738 = vmatpush.msra.mxu0 0.0
    %739 = vmatpush.msra.mxu0 0.0
    %740 = vmatpush.msra.mxu0 0.0
    %v741 = vand.u32 %v411, 4294901760
    %742 = vmatpush.msra.mxu0 %v741
    %v743 = vand.u32 %v386, 4294901760
    %744 = vmatmul.f32.gmra.mxu0 %v743
    %v745 = vpop.f32.mrf.mxu0
    %v746 = vadd.f32 %v696, %v745
    %v747 = vand.u32 %v389, 4294901760
    %748 = vmatmul.f32.gmra.mxu0 %v747
    %v749 = vpop.f32.mrf.mxu0
    %v750 = vadd.f32 %v700, %v749
    %v751 = vand.u32 %v392, 4294901760
    %752 = vmatmul.f32.gmra.mxu0 %v751
    %v753 = vpop.f32.mrf.mxu0
    %v754 = vadd.f32 %v704, %v753
    %v755 = vand.u32 %v395, 4294901760
    %756 = vmatmul.f32.gmra.mxu0 %v755
    %v757 = vpop.f32.mrf.mxu0
    %v758 = vadd.f32 %v708, %v757
    %v759 = vand.u32 %v398, 4294901760
    %760 = vmatmul.f32.gmra.mxu0 %v759
    %v761 = vpop.f32.mrf.mxu0
    %v762 = vadd.f32 %v712, %v761
    %v763 = vand.u32 %v401, 4294901760
    %764 = vmatmul.f32.gmra.mxu0 %v763
    %v765 = vpop.f32.mrf.mxu0
    %v766 = vadd.f32 %v716, %v765
    %v767 = vand.u32 %v404, 4294901760
    %768 = vmatmul.f32.gmra.mxu0 %v767
    %v769 = vpop.f32.mrf.mxu0
    %v770 = vadd.f32 %v720, %v769
    %v771 = vand.u32 %v407, 4294901760
    %772 = vmatmul.f32.gmra.mxu0 %v771
    %v773 = vpop.f32.mrf.mxu0
    %v774 = vadd.f32 %v724, %v773
    %775 = vdwg.mxu0
    %vm776 = vcmask 15360
    %v777 = vsel %vm776, %v746, 0.0
    %778 = vadd.xlane.f32.xlu0 %v777
    %v779 = vpop.xlane.xlu0 %778
    %v780 = vsel %vm776, %v750, 0.0
    %781 = vadd.xlane.f32.xlu0 %v780
    %v782 = vpop.xlane.xlu0 %781
    %v783 = vsel %vm776, %v754, 0.0
    %784 = vadd.xlane.f32.xlu0 %v783
    %v785 = vpop.xlane.xlu0 %784
    %v786 = vsel %vm776, %v758, 0.0
    %787 = vadd.xlane.f32.xlu0 %v786
    %v788 = vpop.xlane.xlu0 %787
    %v789 = vsel %vm776, %v762, 0.0
    %790 = vadd.xlane.f32.xlu0 %v789
    %v791 = vpop.xlane.xlu0 %790
    %v792 = vsel %vm776, %v766, 0.0
    %793 = vadd.xlane.f32.xlu0 %v792
    %v794 = vpop.xlane.xlu0 %793
    %v795 = vsel %vm776, %v770, 0.0
    %796 = vadd.xlane.f32.xlu0 %v795
    %v797 = vpop.xlane.xlu0 %796
    %v798 = vsel %vm776, %v774, 0.0
    %799 = vadd.xlane.f32.xlu0 %v798
    %v800 = vpop.xlane.xlu0 %799
    %v801 = vxor.u32 %v779, 2147483648
    %v802 = vxor.u32 %v782, 2147483648
    %v803 = vxor.u32 %v785, 2147483648
    %v804 = vxor.u32 %v788, 2147483648
    %v805 = vxor.u32 %v791, 2147483648
    %v806 = vxor.u32 %v794, 2147483648
    %v807 = vxor.u32 %v797, 2147483648
    %v808 = vxor.u32 %v800, 2147483648
    %v809 = vmul.f32 %v801, 1.442695
    %v810 = vpow.pop %v809
    %v811 = vmul.f32 %v802, 1.442695
    %v812 = vpow.pop %v811
    %v813 = vmul.f32 %v803, 1.442695
    %v814 = vpow.pop %v813
    %v815 = vmul.f32 %v804, 1.442695
    %v816 = vpow.pop %v815
    %v817 = vmul.f32 %v805, 1.442695
    %v818 = vpow.pop %v817
    %v819 = vmul.f32 %v806, 1.442695
    %v820 = vpow.pop %v819
    %v821 = vmul.f32 %v807, 1.442695
    %v822 = vpow.pop %v821
    %v823 = vmul.f32 %v808, 1.442695
    %v824 = vpow.pop %v823
    %v825 = vadd.f32 %v810, 1.0
    %v826 = vadd.f32 %v812, 1.0
    %v827 = vadd.f32 %v814, 1.0
    %v828 = vadd.f32 %v816, 1.0
    %v829 = vadd.f32 %v818, 1.0
    %v830 = vadd.f32 %v820, 1.0
    %v831 = vadd.f32 %v822, 1.0
    %v832 = vadd.f32 %v824, 1.0
    %v833 = vrcp.pop %v825
    %v834 = vmul.f32 %v825, %v833
    %v835 = vsub.f32 1.0, %v834
    %v836 = vmul.f32 %v833, %v835
    %v837 = vadd.f32 %v833, %v836
    %vm838 = vweird.f32 %v825
    %vm839 = vweird.f32 %v833
    %vm840 = vmor %vm838, %vm839
    %v841 = vsel %vm840, %v833, %v837
    %v842 = vand.u32 2147483647, %v825
    %vm843 = vcmp.eq.f32.partialorder %v842, 8.507059e+37
    %v844 = vand.u32 %v825, 2147483648
    %v845 = vor.u32 1.1754944e-38, %v844
    %v846 = vsel %vm843, %v845, %v841
    %v847 = vmul.f32 1.0, %v846
    %v848 = vrcp.pop %v826
    %v849 = vmul.f32 %v826, %v848
    %v850 = vsub.f32 1.0, %v849
    %v851 = vmul.f32 %v848, %v850
    %v852 = vadd.f32 %v848, %v851
    %vm853 = vweird.f32 %v826
    %vm854 = vweird.f32 %v848
    %vm855 = vmor %vm853, %vm854
    %v856 = vsel %vm855, %v848, %v852
    %v857 = vand.u32 2147483647, %v826
    %vm858 = vcmp.eq.f32.partialorder %v857, 8.507059e+37
    %v859 = vand.u32 %v826, 2147483648
    %v860 = vor.u32 1.1754944e-38, %v859
    %v861 = vsel %vm858, %v860, %v856
    %v862 = vmul.f32 1.0, %v861
    %v863 = vrcp.pop %v827
    %v864 = vmul.f32 %v827, %v863
    %v865 = vsub.f32 1.0, %v864
    %v866 = vmul.f32 %v863, %v865
    %v867 = vadd.f32 %v863, %v866
    %vm868 = vweird.f32 %v827
    %vm869 = vweird.f32 %v863
    %vm870 = vmor %vm868, %vm869
    %v871 = vsel %vm870, %v863, %v867
    %v872 = vand.u32 2147483647, %v827
    %vm873 = vcmp.eq.f32.partialorder %v872, 8.507059e+37
    %v874 = vand.u32 %v827, 2147483648
    %v875 = vor.u32 1.1754944e-38, %v874
    %v876 = vsel %vm873, %v875, %v871
    %v877 = vmul.f32 1.0, %v876
    %v878 = vrcp.pop %v828
    %v879 = vmul.f32 %v828, %v878
    %v880 = vsub.f32 1.0, %v879
    %v881 = vmul.f32 %v878, %v880
    %v882 = vadd.f32 %v878, %v881
    %vm883 = vweird.f32 %v828
    %vm884 = vweird.f32 %v878
    %vm885 = vmor %vm883, %vm884
    %v886 = vsel %vm885, %v878, %v882
    %v887 = vand.u32 2147483647, %v828
    %vm888 = vcmp.eq.f32.partialorder %v887, 8.507059e+37
    %v889 = vand.u32 %v828, 2147483648
    %v890 = vor.u32 1.1754944e-38, %v889
    %v891 = vsel %vm888, %v890, %v886
    %v892 = vmul.f32 1.0, %v891
    %v893 = vrcp.pop %v829
    %v894 = vmul.f32 %v829, %v893
    %v895 = vsub.f32 1.0, %v894
    %v896 = vmul.f32 %v893, %v895
    %v897 = vadd.f32 %v893, %v896
    %vm898 = vweird.f32 %v829
    %vm899 = vweird.f32 %v893
    %vm900 = vmor %vm898, %vm899
    %v901 = vsel %vm900, %v893, %v897
    %v902 = vand.u32 2147483647, %v829
    %vm903 = vcmp.eq.f32.partialorder %v902, 8.507059e+37
    %v904 = vand.u32 %v829, 2147483648
    %v905 = vor.u32 1.1754944e-38, %v904
    %v906 = vsel %vm903, %v905, %v901
    %v907 = vmul.f32 1.0, %v906
    %v908 = vrcp.pop %v830
    %v909 = vmul.f32 %v830, %v908
    %v910 = vsub.f32 1.0, %v909
    %v911 = vmul.f32 %v908, %v910
    %v912 = vadd.f32 %v908, %v911
    %vm913 = vweird.f32 %v830
    %vm914 = vweird.f32 %v908
    %vm915 = vmor %vm913, %vm914
    %v916 = vsel %vm915, %v908, %v912
    %v917 = vand.u32 2147483647, %v830
    %vm918 = vcmp.eq.f32.partialorder %v917, 8.507059e+37
    %v919 = vand.u32 %v830, 2147483648
    %v920 = vor.u32 1.1754944e-38, %v919
    %v921 = vsel %vm918, %v920, %v916
    %v922 = vmul.f32 1.0, %v921
    %v923 = vrcp.pop %v831
    %v924 = vmul.f32 %v831, %v923
    %v925 = vsub.f32 1.0, %v924
    %v926 = vmul.f32 %v923, %v925
    %v927 = vadd.f32 %v923, %v926
    %vm928 = vweird.f32 %v831
    %vm929 = vweird.f32 %v923
    %vm930 = vmor %vm928, %vm929
    %v931 = vsel %vm930, %v923, %v927
    %v932 = vand.u32 2147483647, %v831
    %vm933 = vcmp.eq.f32.partialorder %v932, 8.507059e+37
    %v934 = vand.u32 %v831, 2147483648
    %v935 = vor.u32 1.1754944e-38, %v934
    %v936 = vsel %vm933, %v935, %v931
    %v937 = vmul.f32 1.0, %v936
    %v938 = vrcp.pop %v832
    %v939 = vmul.f32 %v832, %v938
    %v940 = vsub.f32 1.0, %v939
    %v941 = vmul.f32 %v938, %v940
    %v942 = vadd.f32 %v938, %v941
    %vm943 = vweird.f32 %v832
    %vm944 = vweird.f32 %v938
    %vm945 = vmor %vm943, %vm944
    %v946 = vsel %vm945, %v938, %v942
    %v947 = vand.u32 2147483647, %v832
    %vm948 = vcmp.eq.f32.partialorder %v947, 8.507059e+37
    %v949 = vand.u32 %v832, 2147483648
    %v950 = vor.u32 1.1754944e-38, %v949
    %v951 = vsel %vm948, %v950, %v946
    %v952 = vmul.f32 1.0, %v951
    %v953 = vmul.f32 %v59, %v847
    %v954 = vmul.f32 %v60, %v847
    %v955 = vmul.f32 %v61, %v862
    %v956 = vmul.f32 %v62, %v862
    %v957 = vmul.f32 %v63, %v877
    %v958 = vmul.f32 %v64, %v877
    %v959 = vmul.f32 %v65, %v892
    %v960 = vmul.f32 %v66, %v892
    %v961 = vmul.f32 %v67, %v907
    %v962 = vmul.f32 %v68, %v907
    %v963 = vmul.f32 %v69, %v922
    %v964 = vmul.f32 %v70, %v922
    %v965 = vmul.f32 %v71, %v937
    %v966 = vmul.f32 %v72, %v937
    %v967 = vmul.f32 %v73, %v952
    %v968 = vmul.f32 %v74, %v952
    %v969 = vmax.f32 %v953, %v957
    %v970 = vmax.f32 %v955, %v959
    %v971 = vmax.f32 %v969, %v961
    %v972 = vmax.f32 %v970, %v963
    %v973 = vmax.f32 %v971, %v965
    %v974 = vmax.f32 %v972, %v967
    %v975 = vmax.f32 %v973, %v974
    %v976 = vrot.slane %v975, 4
    %v977 = vmax.f32 %v975, %v976
    %v978 = vrot.slane %v977, 2
    %v979 = vmax.f32 %v977, %v978
    %v980 = vrot.slane %v979, 1
    %v981 = vmax.f32 %v979, %v980
    %v982 = vmax.f32 %v954, %v958
    %v983 = vmax.f32 %v956, %v960
    %v984 = vmax.f32 %v982, %v962
    %v985 = vmax.f32 %v983, %v964
    %v986 = vmax.f32 %v984, %v966
    %v987 = vmax.f32 %v985, %v968
    %v988 = vmax.f32 %v986, %v987
    %v989 = vrot.slane %v988, 4
    %v990 = vmax.f32 %v988, %v989
    %v991 = vrot.slane %v990, 2
    %v992 = vmax.f32 %v990, %v991
    %v993 = vrot.slane %v992, 1
    %v994 = vmax.f32 %v992, %v993
    %v995 = vadd.f32 %v953, %v955
    %v996 = vadd.f32 %v995, %v957
    %v997 = vadd.f32 %v996, %v959
    %v998 = vadd.f32 %v997, %v961
    %v999 = vadd.f32 %v998, %v963
    %v1000 = vadd.f32 %v999, %v965
    %v1001 = vadd.f32 %v1000, %v967
    %v1002 = vrot.slane %v1001, 4
    %v1003 = vadd.f32 %v1001, %v1002
    %v1004 = vrot.slane %v1003, 2
    %v1005 = vadd.f32 %v1003, %v1004
    %v1006 = vrot.slane %v1005, 1
    %v1007 = vadd.f32 %v1005, %v1006
    %v1008 = vadd.f32 %v954, %v956
    %v1009 = vadd.f32 %v1008, %v958
    %v1010 = vadd.f32 %v1009, %v960
    %v1011 = vadd.f32 %v1010, %v962
    %v1012 = vadd.f32 %v1011, %v964
    %v1013 = vadd.f32 %v1012, %v966
    %v1014 = vadd.f32 %v1013, %v968
    %v1015 = vrot.slane %v1014, 4
    %v1016 = vadd.f32 %v1014, %v1015
    %v1017 = vrot.slane %v1016, 2
    %v1018 = vadd.f32 %v1016, %v1017
    %v1019 = vrot.slane %v1018, 1
    %v1020 = vadd.f32 %v1018, %v1019
    %v1021 = vmul.f32 %v1007, 0.015625
    %v1022 = vmul.f32 %v1020, 0.015625
    %v1023 = vlaneseq
    %v1024 = vshrl.u32 %v1023, 7
    %vm1025 = vcmp.eq.s32.totalorder %v1024, 0
    %v1026 = vsel %vm1025, %v981, %v1021
    %v1027 = vsel %vm1025, %v994, %v1022
    %1028 = vrot.lane.b32.xlu0 %v1026, 51
    %v1029 = vpop.permute.xlu0 %1028
    %1030 = vrot.lane.b32.xlu0 %v1027, 51
    %v1031 = vpop.permute.xlu0 %1030
    %vm1032 = vcmp.lt.s32.totalorder %v132, 51
    %v1033 = vsel %vm1032, %v1029, %v1031
    %v1034 = vsel %vm1032, %v1031, %v1029
    %v1035 = vld [vmem:[#allocation5] sm:$0x3]
    %v1036 = vld [vmem:[#allocation5 + $0x8] sm:$0x3]
    %v1037 = vmul.f32 %v1035, %v1034
    %v1038 = vmul.f32 %v1036, %v1033
    %v1039 = vadd.f32 %v1037, 0.0
    %v1040 = vadd.f32 %v1038, 0.0
    %1041 = vrot.lane.b32.xlu0 %v1026, 50
    %v1042 = vpop.permute.xlu0 %1041
    %1043 = vrot.lane.b32.xlu0 %v1027, 50
    %v1044 = vpop.permute.xlu0 %1043
    %vm1045 = vcmp.lt.s32.totalorder %v132, 50
    %v1046 = vsel %vm1045, %v1042, %v1044
    %v1047 = vsel %vm1045, %v1044, %v1042
    %v1048 = vld [vmem:[#allocation5] sm:$0xc]
    %v1049 = vld [vmem:[#allocation5 + $0x8] sm:$0xc]
    %v1052 = vrot.slane %v1047, 6
    %v1053 = vrot.slane %v1046, 6
    %v1056 = vmul.f32 %v1048, %v1052
    %v1057 = vmul.f32 %v1049, %v1053
    %v1058 = vadd.f32 %v1056, 0.0
    %v1059 = vadd.f32 %v1057, 0.0
    %1060 = vrot.lane.b32.xlu0 %v1026, 49
    %v1061 = vpop.permute.xlu0 %1060
    %1062 = vrot.lane.b32.xlu0 %v1027, 49
    %v1063 = vpop.permute.xlu0 %1062
    %vm1064 = vcmp.lt.s32.totalorder %v132, 49
    %v1065 = vsel %vm1064, %v1061, %v1063
    %v1066 = vsel %vm1064, %v1063, %v1061
    %v1067 = vld [vmem:[#allocation5] sm:$0x30]
    %v1068 = vld [vmem:[#allocation5 + $0x8] sm:$0x30]
    %v1071 = vrot.slane %v1066, 4
    %v1072 = vrot.slane %v1065, 4
    %v1075 = vmul.f32 %v1067, %v1071
    %v1076 = vmul.f32 %v1068, %v1072
    %v1079 = vrot.slane %v1075, 4
    %v1080 = vrot.slane %v1076, 4
    %v1083 = vadd.f32 %v1039, %v1079
    %v1084 = vadd.f32 %v1040, %v1080
    %1085 = vrot.lane.b32.xlu0 %v1026, 48
    %v1086 = vpop.permute.xlu0 %1085
    %1087 = vrot.lane.b32.xlu0 %v1027, 48
    %v1088 = vpop.permute.xlu0 %1087
    %vm1089 = vcmp.lt.s32.totalorder %v132, 48
    %v1090 = vsel %vm1089, %v1086, %v1088
    %v1091 = vsel %vm1089, %v1088, %v1086
    %v1092 = vld [vmem:[#allocation5] sm:$0xc0]
    %v1093 = vld [vmem:[#allocation5 + $0x8] sm:$0xc0]
    %v1096 = vrot.slane %v1091, 2
    %v1097 = vrot.slane %v1090, 2
    %v1100 = vmul.f32 %v1092, %v1096
    %v1101 = vmul.f32 %v1093, %v1097
    %v1104 = vrot.slane %v1100, 4
    %v1105 = vrot.slane %v1101, 4
    %v1108 = vadd.f32 %v1058, %v1104
    %v1109 = vadd.f32 %v1059, %v1105
    %1110 = vrot.lane.b32.xlu0 %v1026, 47
    %v1111 = vpop.permute.xlu0 %1110
    %1112 = vrot.lane.b32.xlu0 %v1027, 47
    %v1113 = vpop.permute.xlu0 %1112
    %vm1114 = vcmp.lt.s32.totalorder %v132, 47
    %v1115 = vsel %vm1114, %v1111, %v1113
    %v1116 = vsel %vm1114, %v1113, %v1111
    %v1117 = vld [vmem:[#allocation5 + $0x10] sm:$0x3]
    %v1118 = vld [vmem:[#allocation5 + $0x18] sm:$0x3]
    %v1119 = vmul.f32 %v1117, %v1116
    %v1120 = vmul.f32 %v1118, %v1115
    %v1121 = vadd.f32 %v1083, %v1119
    %v1122 = vadd.f32 %v1084, %v1120
    %1123 = vrot.lane.b32.xlu0 %v1026, 46
    %v1124 = vpop.permute.xlu0 %1123
    %1125 = vrot.lane.b32.xlu0 %v1027, 46
    %v1126 = vpop.permute.xlu0 %1125
    %vm1127 = vcmp.lt.s32.totalorder %v132, 46
    %v1128 = vsel %vm1127, %v1124, %v1126
    %v1129 = vsel %vm1127, %v1126, %v1124
    %v1130 = vld [vmem:[#allocation5 + $0x10] sm:$0xc]
    %v1131 = vld [vmem:[#allocation5 + $0x18] sm:$0xc]
    %v1134 = vrot.slane %v1129, 6
    %v1135 = vrot.slane %v1128, 6
    %v1138 = vmul.f32 %v1130, %v1134
    %v1139 = vmul.f32 %v1131, %v1135
    %v1140 = vadd.f32 %v1108, %v1138
    %v1141 = vadd.f32 %v1109, %v1139
    %1142 = vrot.lane.b32.xlu0 %v1026, 45
    %v1143 = vpop.permute.xlu0 %1142
    %1144 = vrot.lane.b32.xlu0 %v1027, 45
    %v1145 = vpop.permute.xlu0 %1144
    %vm1146 = vcmp.lt.s32.totalorder %v132, 45
    %v1147 = vsel %vm1146, %v1143, %v1145
    %v1148 = vsel %vm1146, %v1145, %v1143
    %v1149 = vld [vmem:[#allocation5 + $0x10] sm:$0x30]
    %v1150 = vld [vmem:[#allocation5 + $0x18] sm:$0x30]
    %v1153 = vrot.slane %v1148, 4
    %v1154 = vrot.slane %v1147, 4
    %v1157 = vmul.f32 %v1149, %v1153
    %v1158 = vmul.f32 %v1150, %v1154
    %v1161 = vrot.slane %v1157, 4
    %v1162 = vrot.slane %v1158, 4
    %v1165 = vadd.f32 %v1121, %v1161
    %v1166 = vadd.f32 %v1122, %v1162
    %1167 = vrot.lane.b32.xlu0 %v1026, 35
    %v1168 = vpop.permute.xlu0 %1167
    %1169 = vrot.lane.b32.xlu0 %v1027, 35
    %v1170 = vpop.permute.xlu0 %1169
    %vm1171 = vcmp.lt.s32.totalorder %v132, 35
    %v1172 = vsel %vm1171, %v1168, %v1170
    %v1173 = vsel %vm1171, %v1170, %v1168
    %v1174 = vld [vmem:[#allocation5 + $0x10] sm:$0xc0]
    %v1175 = vld [vmem:[#allocation5 + $0x18] sm:$0xc0]
    %v1178 = vrot.slane %v1173, 2
    %v1179 = vrot.slane %v1172, 2
    %v1182 = vmul.f32 %v1174, %v1178
    %v1183 = vmul.f32 %v1175, %v1179
    %v1186 = vrot.slane %v1182, 4
    %v1187 = vrot.slane %v1183, 4
    %v1190 = vadd.f32 %v1140, %v1186
    %v1191 = vadd.f32 %v1141, %v1187
    %1192 = vrot.lane.b32.xlu0 %v1026, 34
    %v1193 = vpop.permute.xlu0 %1192
    %1194 = vrot.lane.b32.xlu0 %v1027, 34
    %v1195 = vpop.permute.xlu0 %1194
    %vm1196 = vcmp.lt.s32.totalorder %v132, 34
    %v1197 = vsel %vm1196, %v1193, %v1195
    %v1198 = vsel %vm1196, %v1195, %v1193
    %v1199 = vld [vmem:[#allocation5 + $0x20] sm:$0x3]
    %v1200 = vld [vmem:[#allocation5 + $0x28] sm:$0x3]
    %v1201 = vmul.f32 %v1199, %v1198
    %v1202 = vmul.f32 %v1200, %v1197
    %v1203 = vadd.f32 %v1165, %v1201
    %v1204 = vadd.f32 %v1166, %v1202
    %1205 = vrot.lane.b32.xlu0 %v1026, 33
    %v1206 = vpop.permute.xlu0 %1205
    %1207 = vrot.lane.b32.xlu0 %v1027, 33
    %v1208 = vpop.permute.xlu0 %1207
    %vm1209 = vcmp.lt.s32.totalorder %v132, 33
    %v1210 = vsel %vm1209, %v1206, %v1208
    %v1211 = vsel %vm1209, %v1208, %v1206
    %v1212 = vld [vmem:[#allocation5 + $0x20] sm:$0xc]
    %v1213 = vld [vmem:[#allocation5 + $0x28] sm:$0xc]
    %v1216 = vrot.slane %v1211, 6
    %v1217 = vrot.slane %v1210, 6
    %v1220 = vmul.f32 %v1212, %v1216
    %v1221 = vmul.f32 %v1213, %v1217
    %v1222 = vadd.f32 %v1190, %v1220
    %v1223 = vadd.f32 %v1191, %v1221
    %1224 = vrot.lane.b32.xlu0 %v1026, 32
    %v1225 = vpop.permute.xlu0 %1224
    %1226 = vrot.lane.b32.xlu0 %v1027, 32
    %v1227 = vpop.permute.xlu0 %1226
    %vm1228 = vcmp.lt.s32.totalorder %v132, 32
    %v1229 = vsel %vm1228, %v1225, %v1227
    %v1230 = vsel %vm1228, %v1227, %v1225
    %v1231 = vld [vmem:[#allocation5 + $0x20] sm:$0x30]
    %v1232 = vld [vmem:[#allocation5 + $0x28] sm:$0x30]
    %v1235 = vrot.slane %v1230, 4
    %v1236 = vrot.slane %v1229, 4
    %v1239 = vmul.f32 %v1231, %v1235
    %v1240 = vmul.f32 %v1232, %v1236
    %v1243 = vrot.slane %v1239, 4
    %v1244 = vrot.slane %v1240, 4
    %v1247 = vadd.f32 %v1203, %v1243
    %v1248 = vadd.f32 %v1204, %v1244
    %1249 = vrot.lane.b32.xlu0 %v1026, 31
    %v1250 = vpop.permute.xlu0 %1249
    %1251 = vrot.lane.b32.xlu0 %v1027, 31
    %v1252 = vpop.permute.xlu0 %1251
    %vm1253 = vcmp.lt.s32.totalorder %v132, 31
    %v1254 = vsel %vm1253, %v1250, %v1252
    %v1255 = vsel %vm1253, %v1252, %v1250
    %v1256 = vld [vmem:[#allocation5 + $0x20] sm:$0xc0]
    %v1257 = vld [vmem:[#allocation5 + $0x28] sm:$0xc0]
    %v1260 = vrot.slane %v1255, 2
    %v1261 = vrot.slane %v1254, 2
    %v1264 = vmul.f32 %v1256, %v1260
    %v1265 = vmul.f32 %v1257, %v1261
    %v1268 = vrot.slane %v1264, 4
    %v1269 = vrot.slane %v1265, 4
    %v1272 = vadd.f32 %v1222, %v1268
    %v1273 = vadd.f32 %v1223, %v1269
    %1274 = vrot.lane.b32.xlu0 %v1026, 30
    %v1275 = vpop.permute.xlu0 %1274
    %1276 = vrot.lane.b32.xlu0 %v1027, 30
    %v1277 = vpop.permute.xlu0 %1276
    %vm1278 = vcmp.lt.s32.totalorder %v132, 30
    %v1279 = vsel %vm1278, %v1275, %v1277
    %v1280 = vsel %vm1278, %v1277, %v1275
    %v1281 = vld [vmem:[#allocation5 + $0x30] sm:$0x3]
    %v1282 = vld [vmem:[#allocation5 + $0x38] sm:$0x3]
    %v1283 = vmul.f32 %v1281, %v1280
    %v1284 = vmul.f32 %v1282, %v1279
    %v1285 = vadd.f32 %v1247, %v1283
    %v1286 = vadd.f32 %v1248, %v1284
    %1287 = vrot.lane.b32.xlu0 %v1026, 29
    %v1288 = vpop.permute.xlu0 %1287
    %1289 = vrot.lane.b32.xlu0 %v1027, 29
    %v1290 = vpop.permute.xlu0 %1289
    %vm1291 = vcmp.lt.s32.totalorder %v132, 29
    %v1292 = vsel %vm1291, %v1288, %v1290
    %v1293 = vsel %vm1291, %v1290, %v1288
    %v1294 = vld [vmem:[#allocation5 + $0x30] sm:$0xc]
    %v1295 = vld [vmem:[#allocation5 + $0x38] sm:$0xc]
    %v1298 = vrot.slane %v1293, 6
    %v1299 = vrot.slane %v1292, 6
    %v1302 = vmul.f32 %v1294, %v1298
    %v1303 = vmul.f32 %v1295, %v1299
    %v1304 = vadd.f32 %v1272, %v1302
    %v1305 = vadd.f32 %v1273, %v1303
    %1306 = vrot.lane.b32.xlu0 %v1026, 19
    %v1307 = vpop.permute.xlu0 %1306
    %1308 = vrot.lane.b32.xlu0 %v1027, 19
    %v1309 = vpop.permute.xlu0 %1308
    %vm1310 = vcmp.lt.s32.totalorder %v132, 19
    %v1311 = vsel %vm1310, %v1307, %v1309
    %v1312 = vsel %vm1310, %v1309, %v1307
    %v1313 = vld [vmem:[#allocation5 + $0x30] sm:$0x30]
    %v1314 = vld [vmem:[#allocation5 + $0x38] sm:$0x30]
    %v1317 = vrot.slane %v1312, 4
    %v1318 = vrot.slane %v1311, 4
    %v1321 = vmul.f32 %v1313, %v1317
    %v1322 = vmul.f32 %v1314, %v1318
    %v1325 = vrot.slane %v1321, 4
    %v1326 = vrot.slane %v1322, 4
    %v1329 = vadd.f32 %v1285, %v1325
    %v1330 = vadd.f32 %v1286, %v1326
    %1331 = vrot.lane.b32.xlu0 %v1026, 18
    %v1332 = vpop.permute.xlu0 %1331
    %1333 = vrot.lane.b32.xlu0 %v1027, 18
    %v1334 = vpop.permute.xlu0 %1333
    %vm1335 = vcmp.lt.s32.totalorder %v132, 18
    %v1336 = vsel %vm1335, %v1332, %v1334
    %v1337 = vsel %vm1335, %v1334, %v1332
    %v1338 = vld [vmem:[#allocation5 + $0x30] sm:$0xc0]
    %v1339 = vld [vmem:[#allocation5 + $0x38] sm:$0xc0]
    %v1342 = vrot.slane %v1337, 2
    %v1343 = vrot.slane %v1336, 2
    %v1346 = vmul.f32 %v1338, %v1342
    %v1347 = vmul.f32 %v1339, %v1343
    %v1350 = vrot.slane %v1346, 4
    %v1351 = vrot.slane %v1347, 4
    %v1354 = vadd.f32 %v1304, %v1350
    %v1355 = vadd.f32 %v1305, %v1351
    %1356 = vrot.lane.b32.xlu0 %v1026, 17
    %v1357 = vpop.permute.xlu0 %1356
    %1358 = vrot.lane.b32.xlu0 %v1027, 17
    %v1359 = vpop.permute.xlu0 %1358
    %vm1360 = vcmp.lt.s32.totalorder %v132, 17
    %v1361 = vsel %vm1360, %v1357, %v1359
    %v1362 = vsel %vm1360, %v1359, %v1357
    %v1363 = vld [vmem:[#allocation5 + $0x40] sm:$0x3]
    %v1364 = vld [vmem:[#allocation5 + $0x48] sm:$0x3]
    %v1365 = vmul.f32 %v1363, %v1362
    %v1366 = vmul.f32 %v1364, %v1361
    %v1367 = vadd.f32 %v1329, %v1365
    %v1368 = vadd.f32 %v1330, %v1366
    %1369 = vrot.lane.b32.xlu0 %v1026, 16
    %v1370 = vpop.permute.xlu0 %1369
    %1371 = vrot.lane.b32.xlu0 %v1027, 16
    %v1372 = vpop.permute.xlu0 %1371
    %vm1373 = vcmp.lt.s32.totalorder %v132, 16
    %v1374 = vsel %vm1373, %v1370, %v1372
    %v1375 = vsel %vm1373, %v1372, %v1370
    %v1376 = vld [vmem:[#allocation5 + $0x40] sm:$0xc]
    %v1377 = vld [vmem:[#allocation5 + $0x48] sm:$0xc]
    %v1380 = vrot.slane %v1375, 6
    %v1381 = vrot.slane %v1374, 6
    %v1384 = vmul.f32 %v1376, %v1380
    %v1385 = vmul.f32 %v1377, %v1381
    %v1386 = vadd.f32 %v1354, %v1384
    %v1387 = vadd.f32 %v1355, %v1385
    %1388 = vrot.lane.b32.xlu0 %v1026, 15
    %v1389 = vpop.permute.xlu0 %1388
    %1390 = vrot.lane.b32.xlu0 %v1027, 15
    %v1391 = vpop.permute.xlu0 %1390
    %vm1392 = vcmp.lt.s32.totalorder %v132, 15
    %v1393 = vsel %vm1392, %v1389, %v1391
    %v1394 = vsel %vm1392, %v1391, %v1389
    %v1395 = vld [vmem:[#allocation5 + $0x40] sm:$0x30]
    %v1396 = vld [vmem:[#allocation5 + $0x48] sm:$0x30]
    %v1399 = vrot.slane %v1394, 4
    %v1400 = vrot.slane %v1393, 4
    %v1403 = vmul.f32 %v1395, %v1399
    %v1404 = vmul.f32 %v1396, %v1400
    %v1407 = vrot.slane %v1403, 4
    %v1408 = vrot.slane %v1404, 4
    %v1411 = vadd.f32 %v1367, %v1407
    %v1412 = vadd.f32 %v1368, %v1408
    %1413 = vrot.lane.b32.xlu0 %v1026, 14
    %v1414 = vpop.permute.xlu0 %1413
    %1415 = vrot.lane.b32.xlu0 %v1027, 14
    %v1416 = vpop.permute.xlu0 %1415
    %vm1417 = vcmp.lt.s32.totalorder %v132, 14
    %v1418 = vsel %vm1417, %v1414, %v1416
    %v1419 = vsel %vm1417, %v1416, %v1414
    %v1420 = vld [vmem:[#allocation5 + $0x40] sm:$0xc0]
    %v1421 = vld [vmem:[#allocation5 + $0x48] sm:$0xc0]
    %v1424 = vrot.slane %v1419, 2
    %v1425 = vrot.slane %v1418, 2
    %v1428 = vmul.f32 %v1420, %v1424
    %v1429 = vmul.f32 %v1421, %v1425
    %v1432 = vrot.slane %v1428, 4
    %v1433 = vrot.slane %v1429, 4
    %v1436 = vadd.f32 %v1386, %v1432
    %v1437 = vadd.f32 %v1387, %v1433
    %1438 = vrot.lane.b32.xlu0 %v1026, 13
    %v1439 = vpop.permute.xlu0 %1438
    %1440 = vrot.lane.b32.xlu0 %v1027, 13
    %v1441 = vpop.permute.xlu0 %1440
    %vm1442 = vcmp.lt.s32.totalorder %v132, 13
    %v1443 = vsel %vm1442, %v1439, %v1441
    %v1444 = vsel %vm1442, %v1441, %v1439
    %v1445 = vld [vmem:[#allocation5 + $0x50] sm:$0x3]
    %v1446 = vld [vmem:[#allocation5 + $0x58] sm:$0x3]
    %v1447 = vmul.f32 %v1445, %v1444
    %v1448 = vmul.f32 %v1446, %v1443
    %v1449 = vadd.f32 %v1411, %v1447
    %v1450 = vadd.f32 %v1412, %v1448
    %1451 = vrot.lane.b32.xlu0 %v1026, 3
    %v1452 = vpop.permute.xlu0 %1451
    %1453 = vrot.lane.b32.xlu0 %v1027, 3
    %v1454 = vpop.permute.xlu0 %1453
    %vm1455 = vcmp.lt.s32.totalorder %v132, 3
    %v1456 = vsel %vm1455, %v1452, %v1454
    %v1457 = vsel %vm1455, %v1454, %v1452
    %v1458 = vld [vmem:[#allocation5 + $0x50] sm:$0xc]
    %v1459 = vld [vmem:[#allocation5 + $0x58] sm:$0xc]
    %v1462 = vrot.slane %v1457, 6
    %v1463 = vrot.slane %v1456, 6
    %v1466 = vmul.f32 %v1458, %v1462
    %v1467 = vmul.f32 %v1459, %v1463
    %v1468 = vadd.f32 %v1436, %v1466
    %v1469 = vadd.f32 %v1437, %v1467
    %1470 = vrot.lane.b32.xlu0 %v1026, 2
    %v1471 = vpop.permute.xlu0 %1470
    %1472 = vrot.lane.b32.xlu0 %v1027, 2
    %v1473 = vpop.permute.xlu0 %1472
    %vm1474 = vcmp.lt.s32.totalorder %v132, 2
    %v1475 = vsel %vm1474, %v1471, %v1473
    %v1476 = vsel %vm1474, %v1473, %v1471
    %v1477 = vld [vmem:[#allocation5 + $0x50] sm:$0x30]
    %v1478 = vld [vmem:[#allocation5 + $0x58] sm:$0x30]
    %v1481 = vrot.slane %v1476, 4
    %v1482 = vrot.slane %v1475, 4
    %v1485 = vmul.f32 %v1477, %v1481
    %v1486 = vmul.f32 %v1478, %v1482
    %v1489 = vrot.slane %v1485, 4
    %v1490 = vrot.slane %v1486, 4
    %v1493 = vadd.f32 %v1449, %v1489
    %v1494 = vadd.f32 %v1450, %v1490
    %1495 = vrot.lane.b32.xlu0 %v1026, 1
    %v1496 = vpop.permute.xlu0 %1495
    %1497 = vrot.lane.b32.xlu0 %v1027, 1
    %v1498 = vpop.permute.xlu0 %1497
    %vm1499 = vcmp.lt.s32.totalorder %v132, 1
    %v1500 = vsel %vm1499, %v1496, %v1498
    %v1501 = vsel %vm1499, %v1498, %v1496
    %v1502 = vld [vmem:[#allocation5 + $0x50] sm:$0xc0]
    %v1503 = vld [vmem:[#allocation5 + $0x58] sm:$0xc0]
    %v1506 = vrot.slane %v1501, 2
    %v1507 = vrot.slane %v1500, 2
    %v1510 = vmul.f32 %v1502, %v1506
    %v1511 = vmul.f32 %v1503, %v1507
    %v1514 = vrot.slane %v1510, 4
    %v1515 = vrot.slane %v1511, 4
    %v1518 = vadd.f32 %v1468, %v1514
    %v1519 = vadd.f32 %v1469, %v1515
    %v1520 = vld [vmem:[#allocation5 + $0x60] sm:$0x3]
    %v1521 = vld [vmem:[#allocation5 + $0x68] sm:$0x3]
    %v1522 = vmul.f32 %v1520, %v1026
    %v1523 = vmul.f32 %v1521, %v1027
    %v1524 = vadd.f32 %v1493, %v1522
    %v1525 = vadd.f32 %v1494, %v1523
    %1526 = vrot.lane.b32.xlu0 %v1026, 127
    %v1527 = vpop.permute.xlu0 %1526
    %1528 = vrot.lane.b32.xlu0 %v1027, 127
    %v1529 = vpop.permute.xlu0 %1528
    %vm1530 = vcmp.lt.s32.totalorder %v132, 127
    %v1531 = vsel %vm1530, %v1527, %v1529
    %v1532 = vsel %vm1530, %v1529, %v1527
    %v1533 = vld [vmem:[#allocation5 + $0x60] sm:$0xc]
    %v1534 = vld [vmem:[#allocation5 + $0x68] sm:$0xc]
    %v1537 = vrot.slane %v1531, 6
    %v1538 = vrot.slane %v1532, 6
    %v1541 = vmul.f32 %v1533, %v1537
    %v1542 = vmul.f32 %v1534, %v1538
    %v1543 = vadd.f32 %v1518, %v1541
    %v1544 = vadd.f32 %v1519, %v1542
    %1545 = vrot.lane.b32.xlu0 %v1026, 126
    %v1546 = vpop.permute.xlu0 %1545
    %1547 = vrot.lane.b32.xlu0 %v1027, 126
    %v1548 = vpop.permute.xlu0 %1547
    %vm1549 = vcmp.lt.s32.totalorder %v132, 126
    %v1550 = vsel %vm1549, %v1546, %v1548
    %v1551 = vsel %vm1549, %v1548, %v1546
    %v1552 = vld [vmem:[#allocation5 + $0x60] sm:$0x30]
    %v1553 = vld [vmem:[#allocation5 + $0x68] sm:$0x30]
    %v1556 = vrot.slane %v1550, 4
    %v1557 = vrot.slane %v1551, 4
    %v1560 = vmul.f32 %v1552, %v1556
    %v1561 = vmul.f32 %v1553, %v1557
    %v1564 = vrot.slane %v1560, 4
    %v1565 = vrot.slane %v1561, 4
    %v1568 = vadd.f32 %v1524, %v1564
    %v1569 = vadd.f32 %v1525, %v1565
    %1570 = vrot.lane.b32.xlu0 %v1026, 125
    %v1571 = vpop.permute.xlu0 %1570
    %1572 = vrot.lane.b32.xlu0 %v1027, 125
    %v1573 = vpop.permute.xlu0 %1572
    %vm1574 = vcmp.lt.s32.totalorder %v132, 125
    %v1575 = vsel %vm1574, %v1571, %v1573
    %v1576 = vsel %vm1574, %v1573, %v1571
    %v1577 = vld [vmem:[#allocation5 + $0x60] sm:$0xc0]
    %v1578 = vld [vmem:[#allocation5 + $0x68] sm:$0xc0]
    %v1581 = vrot.slane %v1575, 2
    %v1582 = vrot.slane %v1576, 2
    %v1585 = vmul.f32 %v1577, %v1581
    %v1586 = vmul.f32 %v1578, %v1582
    %v1589 = vrot.slane %v1585, 4
    %v1590 = vrot.slane %v1586, 4
    %v1593 = vadd.f32 %v1543, %v1589
    %v1594 = vadd.f32 %v1544, %v1590
    %1595 = vrot.lane.b32.xlu0 %v1026, 115
    %v1596 = vpop.permute.xlu0 %1595
    %1597 = vrot.lane.b32.xlu0 %v1027, 115
    %v1598 = vpop.permute.xlu0 %1597
    %vm1599 = vcmp.lt.s32.totalorder %v132, 115
    %v1600 = vsel %vm1599, %v1596, %v1598
    %v1601 = vsel %vm1599, %v1598, %v1596
    %v1602 = vld [vmem:[#allocation5 + $0x70] sm:$0x3]
    %v1603 = vld [vmem:[#allocation5 + $0x78] sm:$0x3]
    %v1604 = vmul.f32 %v1602, %v1600
    %v1605 = vmul.f32 %v1603, %v1601
    %v1606 = vadd.f32 %v1568, %v1604
    %v1607 = vadd.f32 %v1569, %v1605
    %1608 = vrot.lane.b32.xlu0 %v1026, 114
    %v1609 = vpop.permute.xlu0 %1608
    %1610 = vrot.lane.b32.xlu0 %v1027, 114
    %v1611 = vpop.permute.xlu0 %1610
    %vm1612 = vcmp.lt.s32.totalorder %v132, 114
    %v1613 = vsel %vm1612, %v1609, %v1611
    %v1614 = vsel %vm1612, %v1611, %v1609
    %v1615 = vld [vmem:[#allocation5 + $0x70] sm:$0xc]
    %v1616 = vld [vmem:[#allocation5 + $0x78] sm:$0xc]
    %v1619 = vrot.slane %v1613, 6
    %v1620 = vrot.slane %v1614, 6
    %v1623 = vmul.f32 %v1615, %v1619
    %v1624 = vmul.f32 %v1616, %v1620
    %v1625 = vadd.f32 %v1593, %v1623
    %v1626 = vadd.f32 %v1594, %v1624
    %1627 = vrot.lane.b32.xlu0 %v1026, 113
    %v1628 = vpop.permute.xlu0 %1627
    %1629 = vrot.lane.b32.xlu0 %v1027, 113
    %v1630 = vpop.permute.xlu0 %1629
    %vm1631 = vcmp.lt.s32.totalorder %v132, 113
    %v1632 = vsel %vm1631, %v1628, %v1630
    %v1633 = vsel %vm1631, %v1630, %v1628
    %v1634 = vld [vmem:[#allocation5 + $0x70] sm:$0x30]
    %v1635 = vld [vmem:[#allocation5 + $0x78] sm:$0x30]
    %v1638 = vrot.slane %v1632, 4
    %v1639 = vrot.slane %v1633, 4
    %v1642 = vmul.f32 %v1634, %v1638
    %v1643 = vmul.f32 %v1635, %v1639
    %v1646 = vrot.slane %v1642, 4
    %v1647 = vrot.slane %v1643, 4
    %v1650 = vadd.f32 %v1606, %v1646
    %v1651 = vadd.f32 %v1607, %v1647
    %1652 = vrot.lane.b32.xlu0 %v1026, 112
    %v1653 = vpop.permute.xlu0 %1652
    %1654 = vrot.lane.b32.xlu0 %v1027, 112
    %v1655 = vpop.permute.xlu0 %1654
    %vm1656 = vcmp.lt.s32.totalorder %v132, 112
    %v1657 = vsel %vm1656, %v1653, %v1655
    %v1658 = vsel %vm1656, %v1655, %v1653
    %v1659 = vld [vmem:[#allocation5 + $0x70] sm:$0xc0]
    %v1660 = vld [vmem:[#allocation5 + $0x78] sm:$0xc0]
    %v1663 = vrot.slane %v1657, 2
    %v1664 = vrot.slane %v1658, 2
    %v1667 = vmul.f32 %v1659, %v1663
    %v1668 = vmul.f32 %v1660, %v1664
    %v1671 = vrot.slane %v1667, 4
    %v1672 = vrot.slane %v1668, 4
    %v1675 = vadd.f32 %v1625, %v1671
    %v1676 = vadd.f32 %v1626, %v1672
    %1677 = vrot.lane.b32.xlu0 %v1026, 111
    %v1678 = vpop.permute.xlu0 %1677
    %1679 = vrot.lane.b32.xlu0 %v1027, 111
    %v1680 = vpop.permute.xlu0 %1679
    %vm1681 = vcmp.lt.s32.totalorder %v132, 111
    %v1682 = vsel %vm1681, %v1678, %v1680
    %v1683 = vsel %vm1681, %v1680, %v1678
    %v1684 = vld [vmem:[#allocation5 + $0x80] sm:$0x3]
    %v1685 = vld [vmem:[#allocation5 + $0x88] sm:$0x3]
    %v1686 = vmul.f32 %v1684, %v1682
    %v1687 = vmul.f32 %v1685, %v1683
    %v1688 = vadd.f32 %v1650, %v1686
    %v1689 = vadd.f32 %v1651, %v1687
    %1690 = vrot.lane.b32.xlu0 %v1026, 110
    %v1691 = vpop.permute.xlu0 %1690
    %1692 = vrot.lane.b32.xlu0 %v1027, 110
    %v1693 = vpop.permute.xlu0 %1692
    %vm1694 = vcmp.lt.s32.totalorder %v132, 110
    %v1695 = vsel %vm1694, %v1691, %v1693
    %v1696 = vsel %vm1694, %v1693, %v1691
    %v1697 = vld [vmem:[#allocation5 + $0x80] sm:$0xc]
    %v1698 = vld [vmem:[#allocation5 + $0x88] sm:$0xc]
    %v1701 = vrot.slane %v1695, 6
    %v1702 = vrot.slane %v1696, 6
    %v1705 = vmul.f32 %v1697, %v1701
    %v1706 = vmul.f32 %v1698, %v1702
    %v1707 = vadd.f32 %v1675, %v1705
    %v1708 = vadd.f32 %v1676, %v1706
    %1709 = vrot.lane.b32.xlu0 %v1026, 109
    %v1710 = vpop.permute.xlu0 %1709
    %1711 = vrot.lane.b32.xlu0 %v1027, 109
    %v1712 = vpop.permute.xlu0 %1711
    %vm1713 = vcmp.lt.s32.totalorder %v132, 109
    %v1714 = vsel %vm1713, %v1710, %v1712
    %v1715 = vsel %vm1713, %v1712, %v1710
    %v1716 = vld [vmem:[#allocation5 + $0x80] sm:$0x30]
    %v1717 = vld [vmem:[#allocation5 + $0x88] sm:$0x30]
    %v1720 = vrot.slane %v1714, 4
    %v1721 = vrot.slane %v1715, 4
    %v1724 = vmul.f32 %v1716, %v1720
    %v1725 = vmul.f32 %v1717, %v1721
    %v1728 = vrot.slane %v1724, 4
    %v1729 = vrot.slane %v1725, 4
    %v1732 = vadd.f32 %v1688, %v1728
    %v1733 = vadd.f32 %v1689, %v1729
    %1734 = vrot.lane.b32.xlu0 %v1026, 99
    %v1735 = vpop.permute.xlu0 %1734
    %1736 = vrot.lane.b32.xlu0 %v1027, 99
    %v1737 = vpop.permute.xlu0 %1736
    %vm1738 = vcmp.lt.s32.totalorder %v132, 99
    %v1739 = vsel %vm1738, %v1735, %v1737
    %v1740 = vsel %vm1738, %v1737, %v1735
    %v1741 = vld [vmem:[#allocation5 + $0x80] sm:$0xc0]
    %v1742 = vld [vmem:[#allocation5 + $0x88] sm:$0xc0]
    %v1745 = vrot.slane %v1739, 2
    %v1746 = vrot.slane %v1740, 2
    %v1749 = vmul.f32 %v1741, %v1745
    %v1750 = vmul.f32 %v1742, %v1746
    %v1753 = vrot.slane %v1749, 4
    %v1754 = vrot.slane %v1750, 4
    %v1757 = vadd.f32 %v1707, %v1753
    %v1758 = vadd.f32 %v1708, %v1754
    %1759 = vrot.lane.b32.xlu0 %v1026, 98
    %v1760 = vpop.permute.xlu0 %1759
    %1761 = vrot.lane.b32.xlu0 %v1027, 98
    %v1762 = vpop.permute.xlu0 %1761
    %vm1763 = vcmp.lt.s32.totalorder %v132, 98
    %v1764 = vsel %vm1763, %v1760, %v1762
    %v1765 = vsel %vm1763, %v1762, %v1760
    %v1766 = vld [vmem:[#allocation5 + $0x90] sm:$0x3]
    %v1767 = vld [vmem:[#allocation5 + $0x98] sm:$0x3]
    %v1768 = vmul.f32 %v1766, %v1764
    %v1769 = vmul.f32 %v1767, %v1765
    %v1770 = vadd.f32 %v1732, %v1768
    %v1771 = vadd.f32 %v1733, %v1769
    %1772 = vrot.lane.b32.xlu0 %v1026, 97
    %v1773 = vpop.permute.xlu0 %1772
    %1774 = vrot.lane.b32.xlu0 %v1027, 97
    %v1775 = vpop.permute.xlu0 %1774
    %vm1776 = vcmp.lt.s32.totalorder %v132, 97
    %v1777 = vsel %vm1776, %v1773, %v1775
    %v1778 = vsel %vm1776, %v1775, %v1773
    %v1779 = vld [vmem:[#allocation5 + $0x90] sm:$0xc]
    %v1780 = vld [vmem:[#allocation5 + $0x98] sm:$0xc]
    %v1783 = vrot.slane %v1777, 6
    %v1784 = vrot.slane %v1778, 6
    %v1787 = vmul.f32 %v1779, %v1783
    %v1788 = vmul.f32 %v1780, %v1784
    %v1789 = vadd.f32 %v1757, %v1787
    %v1790 = vadd.f32 %v1758, %v1788
    %1791 = vrot.lane.b32.xlu0 %v1026, 96
    %v1792 = vpop.permute.xlu0 %1791
    %1793 = vrot.lane.b32.xlu0 %v1027, 96
    %v1794 = vpop.permute.xlu0 %1793
    %vm1795 = vcmp.lt.s32.totalorder %v132, 96
    %v1796 = vsel %vm1795, %v1792, %v1794
    %v1797 = vsel %vm1795, %v1794, %v1792
    %v1798 = vld [vmem:[#allocation5 + $0x90] sm:$0x30]
    %v1799 = vld [vmem:[#allocation5 + $0x98] sm:$0x30]
    %v1802 = vrot.slane %v1796, 4
    %v1803 = vrot.slane %v1797, 4
    %v1806 = vmul.f32 %v1798, %v1802
    %v1807 = vmul.f32 %v1799, %v1803
    %v1810 = vrot.slane %v1806, 4
    %v1811 = vrot.slane %v1807, 4
    %v1814 = vadd.f32 %v1770, %v1810
    %v1815 = vadd.f32 %v1771, %v1811
    %1816 = vrot.lane.b32.xlu0 %v1026, 95
    %v1817 = vpop.permute.xlu0 %1816
    %1818 = vrot.lane.b32.xlu0 %v1027, 95
    %v1819 = vpop.permute.xlu0 %1818
    %vm1820 = vcmp.lt.s32.totalorder %v132, 95
    %v1821 = vsel %vm1820, %v1817, %v1819
    %v1822 = vsel %vm1820, %v1819, %v1817
    %v1823 = vld [vmem:[#allocation5 + $0x90] sm:$0xc0]
    %v1824 = vld [vmem:[#allocation5 + $0x98] sm:$0xc0]
    %v1827 = vrot.slane %v1821, 2
    %v1828 = vrot.slane %v1822, 2
    %v1831 = vmul.f32 %v1823, %v1827
    %v1832 = vmul.f32 %v1824, %v1828
    %v1835 = vrot.slane %v1831, 4
    %v1836 = vrot.slane %v1832, 4
    %v1839 = vadd.f32 %v1789, %v1835
    %v1840 = vadd.f32 %v1790, %v1836
    %1841 = vrot.lane.b32.xlu0 %v1026, 94
    %v1842 = vpop.permute.xlu0 %1841
    %1843 = vrot.lane.b32.xlu0 %v1027, 94
    %v1844 = vpop.permute.xlu0 %1843
    %vm1845 = vcmp.lt.s32.totalorder %v132, 94
    %v1846 = vsel %vm1845, %v1842, %v1844
    %v1847 = vsel %vm1845, %v1844, %v1842
    %v1848 = vld [vmem:[#allocation5 + $0xa0] sm:$0x3]
    %v1849 = vld [vmem:[#allocation5 + $0xa8] sm:$0x3]
    %v1850 = vmul.f32 %v1848, %v1846
    %v1851 = vmul.f32 %v1849, %v1847
    %v1852 = vadd.f32 %v1814, %v1850
    %v1853 = vadd.f32 %v1815, %v1851
    %1854 = vrot.lane.b32.xlu0 %v1026, 93
    %v1855 = vpop.permute.xlu0 %1854
    %1856 = vrot.lane.b32.xlu0 %v1027, 93
    %v1857 = vpop.permute.xlu0 %1856
    %vm1858 = vcmp.lt.s32.totalorder %v132, 93
    %v1859 = vsel %vm1858, %v1855, %v1857
    %v1860 = vsel %vm1858, %v1857, %v1855
    %v1861 = vld [vmem:[#allocation5 + $0xa0] sm:$0xc]
    %v1862 = vld [vmem:[#allocation5 + $0xa8] sm:$0xc]
    %v1865 = vrot.slane %v1859, 6
    %v1866 = vrot.slane %v1860, 6
    %v1869 = vmul.f32 %v1861, %v1865
    %v1870 = vmul.f32 %v1862, %v1866
    %v1871 = vadd.f32 %v1839, %v1869
    %v1872 = vadd.f32 %v1840, %v1870
    %1873 = vrot.lane.b32.xlu0 %v1026, 83
    %v1874 = vpop.permute.xlu0 %1873
    %1875 = vrot.lane.b32.xlu0 %v1027, 83
    %v1876 = vpop.permute.xlu0 %1875
    %vm1877 = vcmp.lt.s32.totalorder %v132, 83
    %v1878 = vsel %vm1877, %v1874, %v1876
    %v1879 = vsel %vm1877, %v1876, %v1874
    %v1880 = vld [vmem:[#allocation5 + $0xa0] sm:$0x30]
    %v1881 = vld [vmem:[#allocation5 + $0xa8] sm:$0x30]
    %v1884 = vrot.slane %v1878, 4
    %v1885 = vrot.slane %v1879, 4
    %v1888 = vmul.f32 %v1880, %v1884
    %v1889 = vmul.f32 %v1881, %v1885
    %v1892 = vrot.slane %v1888, 4
    %v1893 = vrot.slane %v1889, 4
    %v1896 = vadd.f32 %v1852, %v1892
    %v1897 = vadd.f32 %v1853, %v1893
    %1898 = vrot.lane.b32.xlu0 %v1026, 82
    %v1899 = vpop.permute.xlu0 %1898
    %1900 = vrot.lane.b32.xlu0 %v1027, 82
    %v1901 = vpop.permute.xlu0 %1900
    %vm1902 = vcmp.lt.s32.totalorder %v132, 82
    %v1903 = vsel %vm1902, %v1899, %v1901
    %v1904 = vsel %vm1902, %v1901, %v1899
    %v1905 = vld [vmem:[#allocation5 + $0xa0] sm:$0xc0]
    %v1906 = vld [vmem:[#allocation5 + $0xa8] sm:$0xc0]
    %v1909 = vrot.slane %v1903, 2
    %v1910 = vrot.slane %v1904, 2
    %v1913 = vmul.f32 %v1905, %v1909
    %v1914 = vmul.f32 %v1906, %v1910
    %v1917 = vrot.slane %v1913, 4
    %v1918 = vrot.slane %v1914, 4
    %v1921 = vadd.f32 %v1871, %v1917
    %v1922 = vadd.f32 %v1872, %v1918
    %1923 = vrot.lane.b32.xlu0 %v1026, 81
    %v1924 = vpop.permute.xlu0 %1923
    %1925 = vrot.lane.b32.xlu0 %v1027, 81
    %v1926 = vpop.permute.xlu0 %1925
    %vm1927 = vcmp.lt.s32.totalorder %v132, 81
    %v1928 = vsel %vm1927, %v1924, %v1926
    %v1929 = vsel %vm1927, %v1926, %v1924
    %v1930 = vld [vmem:[#allocation5 + $0xb0] sm:$0x3]
    %v1931 = vld [vmem:[#allocation5 + $0xb8] sm:$0x3]
    %v1932 = vmul.f32 %v1930, %v1928
    %v1933 = vmul.f32 %v1931, %v1929
    %v1934 = vadd.f32 %v1896, %v1932
    %v1935 = vadd.f32 %v1897, %v1933
    %1936 = vrot.lane.b32.xlu0 %v1026, 80
    %v1937 = vpop.permute.xlu0 %1936
    %1938 = vrot.lane.b32.xlu0 %v1027, 80
    %v1939 = vpop.permute.xlu0 %1938
    %vm1940 = vcmp.lt.s32.totalorder %v132, 80
    %v1941 = vsel %vm1940, %v1937, %v1939
    %v1942 = vsel %vm1940, %v1939, %v1937
    %v1943 = vld [vmem:[#allocation5 + $0xb0] sm:$0xc]
    %v1944 = vld [vmem:[#allocation5 + $0xb8] sm:$0xc]
    %v1947 = vrot.slane %v1941, 6
    %v1948 = vrot.slane %v1942, 6
    %v1951 = vmul.f32 %v1943, %v1947
    %v1952 = vmul.f32 %v1944, %v1948
    %v1953 = vadd.f32 %v1921, %v1951
    %v1954 = vadd.f32 %v1922, %v1952
    %1955 = vrot.lane.b32.xlu0 %v1026, 79
    %v1956 = vpop.permute.xlu0 %1955
    %1957 = vrot.lane.b32.xlu0 %v1027, 79
    %v1958 = vpop.permute.xlu0 %1957
    %vm1959 = vcmp.lt.s32.totalorder %v132, 79
    %v1960 = vsel %vm1959, %v1956, %v1958
    %v1961 = vsel %vm1959, %v1958, %v1956
    %v1962 = vld [vmem:[#allocation5 + $0xb0] sm:$0x30]
    %v1963 = vld [vmem:[#allocation5 + $0xb8] sm:$0x30]
    %v1966 = vrot.slane %v1960, 4
    %v1967 = vrot.slane %v1961, 4
    %v1970 = vmul.f32 %v1962, %v1966
    %v1971 = vmul.f32 %v1963, %v1967
    %v1974 = vrot.slane %v1970, 4
    %v1975 = vrot.slane %v1971, 4
    %v1978 = vadd.f32 %v1934, %v1974
    %v1979 = vadd.f32 %v1935, %v1975
    %1980 = vrot.lane.b32.xlu0 %v1026, 78
    %v1981 = vpop.permute.xlu0 %1980
    %1982 = vrot.lane.b32.xlu0 %v1027, 78
    %v1983 = vpop.permute.xlu0 %1982
    %vm1984 = vcmp.lt.s32.totalorder %v132, 78
    %v1985 = vsel %vm1984, %v1981, %v1983
    %v1986 = vsel %vm1984, %v1983, %v1981
    %v1987 = vld [vmem:[#allocation5 + $0xb0] sm:$0xc0]
    %v1988 = vld [vmem:[#allocation5 + $0xb8] sm:$0xc0]
    %v1991 = vrot.slane %v1985, 2
    %v1992 = vrot.slane %v1986, 2
    %v1995 = vmul.f32 %v1987, %v1991
    %v1996 = vmul.f32 %v1988, %v1992
    %v1999 = vrot.slane %v1995, 4
    %v2000 = vrot.slane %v1996, 4
    %v2003 = vadd.f32 %v1953, %v1999
    %v2004 = vadd.f32 %v1954, %v2000
    %2005 = vrot.lane.b32.xlu0 %v1026, 77
    %v2006 = vpop.permute.xlu0 %2005
    %2007 = vrot.lane.b32.xlu0 %v1027, 77
    %v2008 = vpop.permute.xlu0 %2007
    %vm2009 = vcmp.lt.s32.totalorder %v132, 77
    %v2010 = vsel %vm2009, %v2006, %v2008
    %v2011 = vsel %vm2009, %v2008, %v2006
    %v2012 = vld [vmem:[#allocation5 + $0xc0] sm:$0x3]
    %v2013 = vld [vmem:[#allocation5 + $0xc8] sm:$0x3]
    %v2014 = vmul.f32 %v2012, %v2010
    %v2015 = vmul.f32 %v2013, %v2011
    %v2016 = vadd.f32 %v1978, %v2014
    %v2017 = vadd.f32 %v1979, %v2015
    %v2020 = vrot.slane %v2003, 2
    %v2021 = vrot.slane %v2004, 2
    %v2024 = vadd.f32 %v2016, %v2020
    %v2025 = vadd.f32 %v2017, %v2021
    %vm2026 = vcmask 1041408
    %v2027 = vsel %vm2026, %v2024, 0.0
    %v2028 = vrot.slane %v2027, 4
    %v2029 = vadd.f32 %v2027, %v2028
    %v2030 = vrot.slane %v2029, 2
    %v2031 = vadd.f32 %v2029, %v2030
    %v2032 = vrot.slane %v2031, 1
    %v2033 = vadd.f32 %v2031, %v2032
    %v2034 = vsel %vm2026, %v2025, 0.0
    %v2035 = vrot.slane %v2034, 4
    %v2036 = vadd.f32 %v2034, %v2035
    %v2037 = vrot.slane %v2036, 2
    %v2038 = vadd.f32 %v2036, %v2037
    %v2039 = vrot.slane %v2038, 1
    %v2040 = vadd.f32 %v2038, %v2039
    %v2041 = vxor.u32 %v2033, 2147483648
    %v2042 = vxor.u32 %v2040, 2147483648
    %v2043 = vmul.f32 %v2041, 1.442695
    %v2044 = vpow.pop %v2043
    %v2045 = vmul.f32 %v2042, 1.442695
    %v2046 = vpow.pop %v2045
    %v2047 = vadd.f32 %v2044, 1.0
    %v2048 = vadd.f32 %v2046, 1.0
    %v2049 = vrcp.pop %v2047
    %v2050 = vmul.f32 %v2047, %v2049
    %v2051 = vsub.f32 1.0, %v2050
    %v2052 = vmul.f32 %v2049, %v2051
    %v2053 = vadd.f32 %v2049, %v2052
    %vm2054 = vweird.f32 %v2047
    %vm2055 = vweird.f32 %v2049
    %vm2056 = vmor %vm2054, %vm2055
    %v2057 = vsel %vm2056, %v2049, %v2053
    %v2058 = vand.u32 2147483647, %v2047
    %vm2059 = vcmp.eq.f32.partialorder %v2058, 8.507059e+37
    %v2060 = vand.u32 %v2047, 2147483648
    %v2061 = vor.u32 1.1754944e-38, %v2060
    %v2062 = vsel %vm2059, %v2061, %v2057
    %v2063 = vmul.f32 1.0, %v2062
    %v2064 = vrcp.pop %v2048
    %v2065 = vmul.f32 %v2048, %v2064
    %v2066 = vsub.f32 1.0, %v2065
    %v2067 = vmul.f32 %v2064, %v2066
    %v2068 = vadd.f32 %v2064, %v2067
    %vm2069 = vweird.f32 %v2048
    %vm2070 = vweird.f32 %v2064
    %vm2071 = vmor %vm2069, %vm2070
    %v2072 = vsel %vm2071, %v2064, %v2068
    %v2073 = vand.u32 2147483647, %v2048
    %vm2074 = vcmp.eq.f32.partialorder %v2073, 8.507059e+37
    %v2075 = vand.u32 %v2048, 2147483648
    %v2076 = vor.u32 1.1754944e-38, %v2075
    %v2077 = vsel %vm2074, %v2076, %v2072
    %v2078 = vmul.f32 1.0, %v2077
    %v2079 = vmul.f32 %v953, %v2063
    %v2080 = vmul.f32 %v954, %v2078
    %v2081 = vmul.f32 %v955, %v2063
    %v2082 = vmul.f32 %v956, %v2078
    %v2083 = vmul.f32 %v957, %v2063
    %v2084 = vmul.f32 %v958, %v2078
    %v2085 = vmul.f32 %v959, %v2063
    %v2086 = vmul.f32 %v960, %v2078
    %v2087 = vmul.f32 %v961, %v2063
    %v2088 = vmul.f32 %v962, %v2078
    %v2089 = vmul.f32 %v963, %v2063
    %v2090 = vmul.f32 %v964, %v2078
    %v2091 = vmul.f32 %v965, %v2063
    %v2092 = vmul.f32 %v966, %v2078
    %v2093 = vmul.f32 %v967, %v2063
    %v2094 = vmul.f32 %v968, %v2078
    %2095 = vst [vmem:[#allocation7] sm:$0xff] %v2079
    %2096 = vst [vmem:[#allocation7 + $0x8] sm:$0xff] %v2080
    %2097 = vst [vmem:[#allocation7 + $0x10] sm:$0xff] %v2081
    %2098 = vst [vmem:[#allocation7 + $0x18] sm:$0xff] %v2082
    %2099 = vst [vmem:[#allocation7 + $0x20] sm:$0xff] %v2083
    %2100 = vst [vmem:[#allocation7 + $0x28] sm:$0xff] %v2084
    %2101 = vst [vmem:[#allocation7 + $0x30] sm:$0xff] %v2085
    %2102 = vst [vmem:[#allocation7 + $0x38] sm:$0xff] %v2086
    %2103 = vst [vmem:[#allocation7 + $0x40] sm:$0xff] %v2087
    %2104 = vst [vmem:[#allocation7 + $0x48] sm:$0xff] %v2088
    %2105 = vst [vmem:[#allocation7 + $0x50] sm:$0xff] %v2089
    %2106 = vst [vmem:[#allocation7 + $0x58] sm:$0xff] %v2090
    %2107 = vst [vmem:[#allocation7 + $0x60] sm:$0xff] %v2091
    %2108 = vst [vmem:[#allocation7 + $0x68] sm:$0xff] %v2092
    %2109 = vst [vmem:[#allocation7 + $0x70] sm:$0xff] %v2093
    %2110 = vst [vmem:[#allocation7 + $0x78] sm:$0xff] %v2094
    %s2111 = scalar_lea.vmem [#allocation2], 128
    %v2112 = vld [vmem:[%s2111] sm:$0xff]
    %v2113 = vld [vmem:[%s2111 + $0x8] sm:$0xff]
    %v2114 = vld [vmem:[%s2111 + $0x10] sm:$0xff]
    %v2115 = vld [vmem:[%s2111 + $0x18] sm:$0xff]
    %v2116 = vld [vmem:[%s2111 + $0x20] sm:$0xff]
    %v2117 = vld [vmem:[%s2111 + $0x28] sm:$0xff]
    %v2118 = vld [vmem:[%s2111 + $0x30] sm:$0xff]
    %v2119 = vld [vmem:[%s2111 + $0x38] sm:$0xff]
    %v2120 = vld [vmem:[%s2111 + $0x40] sm:$0xff]
    %v2121 = vld [vmem:[%s2111 + $0x48] sm:$0xff]
    %v2122 = vld [vmem:[%s2111 + $0x50] sm:$0xff]
    %v2123 = vld [vmem:[%s2111 + $0x58] sm:$0xff]
    %v2124 = vld [vmem:[%s2111 + $0x60] sm:$0xff]
    %v2125 = vld [vmem:[%s2111 + $0x68] sm:$0xff]
    %v2126 = vld [vmem:[%s2111 + $0x70] sm:$0xff]
    %v2127 = vld [vmem:[%s2111 + $0x78] sm:$0xff]
    %v2128 = vmax.f32 %v2112, %v2113
    %2129 = vmax.xlane.f32.xlu0 %v2128
    %v2130 = vpop.xlane.xlu0 %2129
    %v2131 = vmax.f32 %v2114, %v2115
    %2132 = vmax.xlane.f32.xlu0 %v2131
    %v2133 = vpop.xlane.xlu0 %2132
    %v2134 = vmax.f32 %v2116, %v2117
    %2135 = vmax.xlane.f32.xlu0 %v2134
    %v2136 = vpop.xlane.xlu0 %2135
    %v2137 = vmax.f32 %v2118, %v2119
    %2138 = vmax.xlane.f32.xlu0 %v2137
    %v2139 = vpop.xlane.xlu0 %2138
    %v2140 = vmax.f32 %v2120, %v2121
    %2141 = vmax.xlane.f32.xlu0 %v2140
    %v2142 = vpop.xlane.xlu0 %2141
    %v2143 = vmax.f32 %v2122, %v2123
    %2144 = vmax.xlane.f32.xlu0 %v2143
    %v2145 = vpop.xlane.xlu0 %2144
    %v2146 = vmax.f32 %v2124, %v2125
    %2147 = vmax.xlane.f32.xlu0 %v2146
    %v2148 = vpop.xlane.xlu0 %2147
    %v2149 = vmax.f32 %v2126, %v2127
    %2150 = vmax.xlane.f32.xlu0 %v2149
    %v2151 = vpop.xlane.xlu0 %2150
    %v2152 = vadd.f32 %v2112, %v2113
    %2153 = vadd.xlane.f32.xlu0 %v2152
    %v2154 = vpop.xlane.xlu0 %2153
    %v2155 = vadd.f32 %v2114, %v2115
    %2156 = vadd.xlane.f32.xlu0 %v2155
    %v2157 = vpop.xlane.xlu0 %2156
    %v2158 = vadd.f32 %v2116, %v2117
    %2159 = vadd.xlane.f32.xlu0 %v2158
    %v2160 = vpop.xlane.xlu0 %2159
    %v2161 = vadd.f32 %v2118, %v2119
    %2162 = vadd.xlane.f32.xlu0 %v2161
    %v2163 = vpop.xlane.xlu0 %2162
    %v2164 = vadd.f32 %v2120, %v2121
    %2165 = vadd.xlane.f32.xlu0 %v2164
    %v2166 = vpop.xlane.xlu0 %2165
    %v2167 = vadd.f32 %v2122, %v2123
    %2168 = vadd.xlane.f32.xlu0 %v2167
    %v2169 = vpop.xlane.xlu0 %2168
    %v2170 = vadd.f32 %v2124, %v2125
    %2171 = vadd.xlane.f32.xlu0 %v2170
    %v2172 = vpop.xlane.xlu0 %2171
    %v2173 = vadd.f32 %v2126, %v2127
    %2174 = vadd.xlane.f32.xlu0 %v2173
    %v2175 = vpop.xlane.xlu0 %2174
    %v2176 = vmul.f32 %v2154, 0.00390625
    %v2177 = vmul.f32 %v2157, 0.00390625
    %v2178 = vmul.f32 %v2160, 0.00390625
    %v2179 = vmul.f32 %v2163, 0.00390625
    %v2180 = vmul.f32 %v2166, 0.00390625
    %v2181 = vmul.f32 %v2169, 0.00390625
    %v2182 = vmul.f32 %v2172, 0.00390625
    %v2183 = vmul.f32 %v2175, 0.00390625
    %v2184 = vsel %vm133, %v2130, %v2176
    %v2185 = vsel %vm133, %v2133, %v2177
    %v2186 = vsel %vm133, %v2136, %v2178
    %v2187 = vsel %vm133, %v2139, %v2179
    %v2188 = vsel %vm133, %v2142, %v2180
    %v2189 = vsel %vm133, %v2145, %v2181
    %v2190 = vsel %vm133, %v2148, %v2182
    %v2191 = vsel %vm133, %v2151, %v2183
    %2192 = vmatpush.msra.mxu0 0.0
    %2193 = vmatpush.msra.mxu0 0.0
    %2194 = vmatpush.msra.mxu0 0.0
    %2195 = vmatpush.msra.mxu0 0.0
    %2196 = vmatpush.msra.mxu0 0.0
    %2197 = vmatpush.msra.mxu0 0.0
    %2198 = vmatpush.msra.mxu0 0.0
    %2199 = vmatpush.msra.mxu0 0.0
    %v2200 = vand.u32 %v2191, 4294901760
    %2201 = vmatpush.msra.mxu0 %v2200
    %v2202 = vand.u32 %v2190, 4294901760
    %2203 = vmatpush.msra.mxu0 %v2202
    %v2204 = vand.u32 %v2189, 4294901760
    %2205 = vmatpush.msra.mxu0 %v2204
    %v2206 = vand.u32 %v2188, 4294901760
    %2207 = vmatpush.msra.mxu0 %v2206
    %v2208 = vand.u32 %v2187, 4294901760
    %2209 = vmatpush.msra.mxu0 %v2208
    %v2210 = vand.u32 %v2186, 4294901760
    %2211 = vmatpush.msra.mxu0 %v2210
    %v2212 = vand.u32 %v2185, 4294901760
    %2213 = vmatpush.msra.mxu0 %v2212
    %v2214 = vand.u32 %v2184, 4294901760
    %2215 = vmatpush.msra.mxu0 %v2214
    %v2216 = vand.u32 %v144, 4294901760
    %v2217 = vsub.f32 %v144, %v2216
    %v2218 = vand.u32 %v2217, 4294901760
    %v2219 = vsub.f32 %v2217, %v2218
    %v2220 = vand.u32 %v2219, 4294901760
    %2221 = vmatmul.f32.gmra.mxu0 %v2220
    %v2222 = vpop.f32.mrf.mxu0
    %v2223 = vadd.f32 0.0, %v2222
    %2224 = vdwg.mxu0
    %2225 = vmatpush.msra.mxu0 0.0
    %2226 = vmatpush.msra.mxu0 0.0
    %2227 = vmatpush.msra.mxu0 0.0
    %2228 = vmatpush.msra.mxu0 0.0
    %2229 = vmatpush.msra.mxu0 0.0
    %2230 = vmatpush.msra.mxu0 0.0
    %2231 = vmatpush.msra.mxu0 0.0
    %2232 = vmatpush.msra.mxu0 0.0
    %v2233 = vand.u32 %v2191, 4294901760
    %v2234 = vsub.f32 %v2191, %v2233
    %v2235 = vand.u32 %v2234, 4294901760
    %v2236 = vsub.f32 %v2234, %v2235
    %v2237 = vand.u32 %v2236, 4294901760
    %2238 = vmatpush.msra.mxu0 %v2237
    %v2239 = vand.u32 %v2190, 4294901760
    %v2240 = vsub.f32 %v2190, %v2239
    %v2241 = vand.u32 %v2240, 4294901760
    %v2242 = vsub.f32 %v2240, %v2241
    %v2243 = vand.u32 %v2242, 4294901760
    %2244 = vmatpush.msra.mxu0 %v2243
    %v2245 = vand.u32 %v2189, 4294901760
    %v2246 = vsub.f32 %v2189, %v2245
    %v2247 = vand.u32 %v2246, 4294901760
    %v2248 = vsub.f32 %v2246, %v2247
    %v2249 = vand.u32 %v2248, 4294901760
    %2250 = vmatpush.msra.mxu0 %v2249
    %v2251 = vand.u32 %v2188, 4294901760
    %v2252 = vsub.f32 %v2188, %v2251
    %v2253 = vand.u32 %v2252, 4294901760
    %v2254 = vsub.f32 %v2252, %v2253
    %v2255 = vand.u32 %v2254, 4294901760
    %2256 = vmatpush.msra.mxu0 %v2255
    %v2257 = vand.u32 %v2187, 4294901760
    %v2258 = vsub.f32 %v2187, %v2257
    %v2259 = vand.u32 %v2258, 4294901760
    %v2260 = vsub.f32 %v2258, %v2259
    %v2261 = vand.u32 %v2260, 4294901760
    %2262 = vmatpush.msra.mxu0 %v2261
    %v2263 = vand.u32 %v2186, 4294901760
    %v2264 = vsub.f32 %v2186, %v2263
    %v2265 = vand.u32 %v2264, 4294901760
    %v2266 = vsub.f32 %v2264, %v2265
    %v2267 = vand.u32 %v2266, 4294901760
    %2268 = vmatpush.msra.mxu0 %v2267
    %v2269 = vand.u32 %v2185, 4294901760
    %v2270 = vsub.f32 %v2185, %v2269
    %v2271 = vand.u32 %v2270, 4294901760
    %v2272 = vsub.f32 %v2270, %v2271
    %v2273 = vand.u32 %v2272, 4294901760
    %2274 = vmatpush.msra.mxu0 %v2273
    %v2275 = vand.u32 %v2184, 4294901760
    %v2276 = vsub.f32 %v2184, %v2275
    %v2277 = vand.u32 %v2276, 4294901760
    %v2278 = vsub.f32 %v2276, %v2277
    %v2279 = vand.u32 %v2278, 4294901760
    %2280 = vmatpush.msra.mxu0 %v2279
    %v2281 = vand.u32 %v144, 4294901760
    %2282 = vmatmul.f32.gmra.mxu0 %v2281
    %v2283 = vpop.f32.mrf.mxu0
    %v2284 = vadd.f32 %v2223, %v2283
    %2285 = vdwg.mxu0
    %2286 = vmatpush.msra.mxu0 0.0
    %2287 = vmatpush.msra.mxu0 0.0
    %2288 = vmatpush.msra.mxu0 0.0
    %2289 = vmatpush.msra.mxu0 0.0
    %2290 = vmatpush.msra.mxu0 0.0
    %2291 = vmatpush.msra.mxu0 0.0
    %2292 = vmatpush.msra.mxu0 0.0
    %2293 = vmatpush.msra.mxu0 0.0
    %v2294 = vand.u32 %v2191, 4294901760
    %v2295 = vsub.f32 %v2191, %v2294
    %2296 = vmatpush.msra.mxu0 %v2295
    %v2297 = vand.u32 %v2190, 4294901760
    %v2298 = vsub.f32 %v2190, %v2297
    %2299 = vmatpush.msra.mxu0 %v2298
    %v2300 = vand.u32 %v2189, 4294901760
    %v2301 = vsub.f32 %v2189, %v2300
    %2302 = vmatpush.msra.mxu0 %v2301
    %v2303 = vand.u32 %v2188, 4294901760
    %v2304 = vsub.f32 %v2188, %v2303
    %2305 = vmatpush.msra.mxu0 %v2304
    %v2306 = vand.u32 %v2187, 4294901760
    %v2307 = vsub.f32 %v2187, %v2306
    %2308 = vmatpush.msra.mxu0 %v2307
    %v2309 = vand.u32 %v2186, 4294901760
    %v2310 = vsub.f32 %v2186, %v2309
    %2311 = vmatpush.msra.mxu0 %v2310
    %v2312 = vand.u32 %v2185, 4294901760
    %v2313 = vsub.f32 %v2185, %v2312
    %2314 = vmatpush.msra.mxu0 %v2313
    %v2315 = vand.u32 %v2184, 4294901760
    %v2316 = vsub.f32 %v2184, %v2315
    %2317 = vmatpush.msra.mxu0 %v2316
    %v2318 = vand.u32 %v144, 4294901760
    %v2319 = vsub.f32 %v144, %v2318
    %2320 = vmatmul.f32.gmra.mxu0 %v2319
    %v2321 = vpop.f32.mrf.mxu0
    %v2322 = vadd.f32 %v2284, %v2321
    %2323 = vdwg.mxu0
    %2324 = vmatpush.msra.mxu0 0.0
    %2325 = vmatpush.msra.mxu0 0.0
    %2326 = vmatpush.msra.mxu0 0.0
    %2327 = vmatpush.msra.mxu0 0.0
    %2328 = vmatpush.msra.mxu0 0.0
    %2329 = vmatpush.msra.mxu0 0.0
    %2330 = vmatpush.msra.mxu0 0.0
    %2331 = vmatpush.msra.mxu0 0.0
    %v2332 = vand.u32 %v2191, 4294901760
    %2333 = vmatpush.msra.mxu0 %v2332
    %v2334 = vand.u32 %v2190, 4294901760
    %2335 = vmatpush.msra.mxu0 %v2334
    %v2336 = vand.u32 %v2189, 4294901760
    %2337 = vmatpush.msra.mxu0 %v2336
    %v2338 = vand.u32 %v2188, 4294901760
    %2339 = vmatpush.msra.mxu0 %v2338
    %v2340 = vand.u32 %v2187, 4294901760
    %2341 = vmatpush.msra.mxu0 %v2340
    %v2342 = vand.u32 %v2186, 4294901760
    %2343 = vmatpush.msra.mxu0 %v2342
    %v2344 = vand.u32 %v2185, 4294901760
    %2345 = vmatpush.msra.mxu0 %v2344
    %v2346 = vand.u32 %v2184, 4294901760
    %2347 = vmatpush.msra.mxu0 %v2346
    %v2348 = vand.u32 %v144, 4294901760
    %v2349 = vsub.f32 %v144, %v2348
    %v2350 = vand.u32 %v2349, 4294901760
    %2351 = vmatmul.f32.gmra.mxu0 %v2350
    %v2352 = vpop.f32.mrf.mxu0
    %v2353 = vadd.f32 %v2322, %v2352
    %2354 = vdwg.mxu0
    %2355 = vmatpush.msra.mxu0 0.0
    %2356 = vmatpush.msra.mxu0 0.0
    %2357 = vmatpush.msra.mxu0 0.0
    %2358 = vmatpush.msra.mxu0 0.0
    %2359 = vmatpush.msra.mxu0 0.0
    %2360 = vmatpush.msra.mxu0 0.0
    %2361 = vmatpush.msra.mxu0 0.0
    %2362 = vmatpush.msra.mxu0 0.0
    %v2363 = vand.u32 %v2191, 4294901760
    %v2364 = vsub.f32 %v2191, %v2363
    %v2365 = vand.u32 %v2364, 4294901760
    %2366 = vmatpush.msra.mxu0 %v2365
    %v2367 = vand.u32 %v2190, 4294901760
    %v2368 = vsub.f32 %v2190, %v2367
    %v2369 = vand.u32 %v2368, 4294901760
    %2370 = vmatpush.msra.mxu0 %v2369
    %v2371 = vand.u32 %v2189, 4294901760
    %v2372 = vsub.f32 %v2189, %v2371
    %v2373 = vand.u32 %v2372, 4294901760
    %2374 = vmatpush.msra.mxu0 %v2373
    %v2375 = vand.u32 %v2188, 4294901760
    %v2376 = vsub.f32 %v2188, %v2375
    %v2377 = vand.u32 %v2376, 4294901760
    %2378 = vmatpush.msra.mxu0 %v2377
    %v2379 = vand.u32 %v2187, 4294901760
    %v2380 = vsub.f32 %v2187, %v2379
    %v2381 = vand.u32 %v2380, 4294901760
    %2382 = vmatpush.msra.mxu0 %v2381
    %v2383 = vand.u32 %v2186, 4294901760
    %v2384 = vsub.f32 %v2186, %v2383
    %v2385 = vand.u32 %v2384, 4294901760
    %2386 = vmatpush.msra.mxu0 %v2385
    %v2387 = vand.u32 %v2185, 4294901760
    %v2388 = vsub.f32 %v2185, %v2387
    %v2389 = vand.u32 %v2388, 4294901760
    %2390 = vmatpush.msra.mxu0 %v2389
    %v2391 = vand.u32 %v2184, 4294901760
    %v2392 = vsub.f32 %v2184, %v2391
    %v2393 = vand.u32 %v2392, 4294901760
    %2394 = vmatpush.msra.mxu0 %v2393
    %v2395 = vand.u32 %v144, 4294901760
    %2396 = vmatmul.f32.gmra.mxu0 %v2395
    %v2397 = vpop.f32.mrf.mxu0
    %v2398 = vadd.f32 %v2353, %v2397
    %2399 = vdwg.mxu0
    %2400 = vmatpush.msra.mxu0 0.0
    %2401 = vmatpush.msra.mxu0 0.0
    %2402 = vmatpush.msra.mxu0 0.0
    %2403 = vmatpush.msra.mxu0 0.0
    %2404 = vmatpush.msra.mxu0 0.0
    %2405 = vmatpush.msra.mxu0 0.0
    %2406 = vmatpush.msra.mxu0 0.0
    %2407 = vmatpush.msra.mxu0 0.0
    %v2408 = vand.u32 %v2191, 4294901760
    %2409 = vmatpush.msra.mxu0 %v2408
    %v2410 = vand.u32 %v2190, 4294901760
    %2411 = vmatpush.msra.mxu0 %v2410
    %v2412 = vand.u32 %v2189, 4294901760
    %2413 = vmatpush.msra.mxu0 %v2412
    %v2414 = vand.u32 %v2188, 4294901760
    %2415 = vmatpush.msra.mxu0 %v2414
    %v2416 = vand.u32 %v2187, 4294901760
    %2417 = vmatpush.msra.mxu0 %v2416
    %v2418 = vand.u32 %v2186, 4294901760
    %2419 = vmatpush.msra.mxu0 %v2418
    %v2420 = vand.u32 %v2185, 4294901760
    %2421 = vmatpush.msra.mxu0 %v2420
    %v2422 = vand.u32 %v2184, 4294901760
    %2423 = vmatpush.msra.mxu0 %v2422
    %v2424 = vand.u32 %v144, 4294901760
    %2425 = vmatmul.f32.gmra.mxu0 %v2424
    %v2426 = vpop.f32.mrf.mxu0
    %v2427 = vadd.f32 %v2398, %v2426
    %2428 = vdwg.mxu0
    %v2429 = vmax.f32 %v2427, 0.0
    %v2431 = vsel %vm409, %v2429, 0
    %2433 = vmatpush.msra.mxu0 0.0
    %2434 = vmatpush.msra.mxu0 0.0
    %2435 = vmatpush.msra.mxu0 0.0
    %2436 = vmatpush.msra.mxu0 0.0
    %2437 = vmatpush.msra.mxu0 0.0
    %2438 = vmatpush.msra.mxu0 0.0
    %2439 = vmatpush.msra.mxu0 0.0
    %2440 = vmatpush.msra.mxu0 0.0
    %2441 = vmatpush.msra.mxu0 0.0
    %2442 = vmatpush.msra.mxu0 0.0
    %2443 = vmatpush.msra.mxu0 0.0
    %2444 = vmatpush.msra.mxu0 0.0
    %2445 = vmatpush.msra.mxu0 0.0
    %2446 = vmatpush.msra.mxu0 0.0
    %2447 = vmatpush.msra.mxu0 0.0
    %v2448 = vand.u32 %v2431, 4294901760
    %2449 = vmatpush.msra.mxu0 %v2448
    %v2450 = vand.u32 %v386, 4294901760
    %v2451 = vsub.f32 %v386, %v2450
    %v2452 = vand.u32 %v2451, 4294901760
    %v2453 = vsub.f32 %v2451, %v2452
    %v2454 = vand.u32 %v2453, 4294901760
    %2455 = vmatmul.f32.gmra.mxu0 %v2454
    %v2456 = vpop.f32.mrf.mxu0
    %v2457 = vadd.f32 0.0, %v2456
    %v2458 = vand.u32 %v389, 4294901760
    %v2459 = vsub.f32 %v389, %v2458
    %v2460 = vand.u32 %v2459, 4294901760
    %v2461 = vsub.f32 %v2459, %v2460
    %v2462 = vand.u32 %v2461, 4294901760
    %2463 = vmatmul.f32.gmra.mxu0 %v2462
    %v2464 = vpop.f32.mrf.mxu0
    %v2465 = vadd.f32 0.0, %v2464
    %v2466 = vand.u32 %v392, 4294901760
    %v2467 = vsub.f32 %v392, %v2466
    %v2468 = vand.u32 %v2467, 4294901760
    %v2469 = vsub.f32 %v2467, %v2468
    %v2470 = vand.u32 %v2469, 4294901760
    %2471 = vmatmul.f32.gmra.mxu0 %v2470
    %v2472 = vpop.f32.mrf.mxu0
    %v2473 = vadd.f32 0.0, %v2472
    %v2474 = vand.u32 %v395, 4294901760
    %v2475 = vsub.f32 %v395, %v2474
    %v2476 = vand.u32 %v2475, 4294901760
    %v2477 = vsub.f32 %v2475, %v2476
    %v2478 = vand.u32 %v2477, 4294901760
    %2479 = vmatmul.f32.gmra.mxu0 %v2478
    %v2480 = vpop.f32.mrf.mxu0
    %v2481 = vadd.f32 0.0, %v2480
    %v2482 = vand.u32 %v398, 4294901760
    %v2483 = vsub.f32 %v398, %v2482
    %v2484 = vand.u32 %v2483, 4294901760
    %v2485 = vsub.f32 %v2483, %v2484
    %v2486 = vand.u32 %v2485, 4294901760
    %2487 = vmatmul.f32.gmra.mxu0 %v2486
    %v2488 = vpop.f32.mrf.mxu0
    %v2489 = vadd.f32 0.0, %v2488
    %v2490 = vand.u32 %v401, 4294901760
    %v2491 = vsub.f32 %v401, %v2490
    %v2492 = vand.u32 %v2491, 4294901760
    %v2493 = vsub.f32 %v2491, %v2492
    %v2494 = vand.u32 %v2493, 4294901760
    %2495 = vmatmul.f32.gmra.mxu0 %v2494
    %v2496 = vpop.f32.mrf.mxu0
    %v2497 = vadd.f32 0.0, %v2496
    %v2498 = vand.u32 %v404, 4294901760
    %v2499 = vsub.f32 %v404, %v2498
    %v2500 = vand.u32 %v2499, 4294901760
    %v2501 = vsub.f32 %v2499, %v2500
    %v2502 = vand.u32 %v2501, 4294901760
    %2503 = vmatmul.f32.gmra.mxu0 %v2502
    %v2504 = vpop.f32.mrf.mxu0
    %v2505 = vadd.f32 0.0, %v2504
    %v2506 = vand.u32 %v407, 4294901760
    %v2507 = vsub.f32 %v407, %v2506
    %v2508 = vand.u32 %v2507, 4294901760
    %v2509 = vsub.f32 %v2507, %v2508
    %v2510 = vand.u32 %v2509, 4294901760
    %2511 = vmatmul.f32.gmra.mxu0 %v2510
    %v2512 = vpop.f32.mrf.mxu0
    %v2513 = vadd.f32 0.0, %v2512
    %2514 = vdwg.mxu0
    %2515 = vmatpush.msra.mxu0 0.0
    %2516 = vmatpush.msra.mxu0 0.0
    %2517 = vmatpush.msra.mxu0 0.0
    %2518 = vmatpush.msra.mxu0 0.0
    %2519 = vmatpush.msra.mxu0 0.0
    %2520 = vmatpush.msra.mxu0 0.0
    %2521 = vmatpush.msra.mxu0 0.0
    %2522 = vmatpush.msra.mxu0 0.0
    %2523 = vmatpush.msra.mxu0 0.0
    %2524 = vmatpush.msra.mxu0 0.0
    %2525 = vmatpush.msra.mxu0 0.0
    %2526 = vmatpush.msra.mxu0 0.0
    %2527 = vmatpush.msra.mxu0 0.0
    %2528 = vmatpush.msra.mxu0 0.0
    %2529 = vmatpush.msra.mxu0 0.0
    %v2530 = vand.u32 %v2431, 4294901760
    %v2531 = vsub.f32 %v2431, %v2530
    %v2532 = vand.u32 %v2531, 4294901760
    %v2533 = vsub.f32 %v2531, %v2532
    %v2534 = vand.u32 %v2533, 4294901760
    %2535 = vmatpush.msra.mxu0 %v2534
    %v2536 = vand.u32 %v386, 4294901760
    %2537 = vmatmul.f32.gmra.mxu0 %v2536
    %v2538 = vpop.f32.mrf.mxu0
    %v2539 = vadd.f32 %v2457, %v2538
    %v2540 = vand.u32 %v389, 4294901760
    %2541 = vmatmul.f32.gmra.mxu0 %v2540
    %v2542 = vpop.f32.mrf.mxu0
    %v2543 = vadd.f32 %v2465, %v2542
    %v2544 = vand.u32 %v392, 4294901760
    %2545 = vmatmul.f32.gmra.mxu0 %v2544
    %v2546 = vpop.f32.mrf.mxu0
    %v2547 = vadd.f32 %v2473, %v2546
    %v2548 = vand.u32 %v395, 4294901760
    %2549 = vmatmul.f32.gmra.mxu0 %v2548
    %v2550 = vpop.f32.mrf.mxu0
    %v2551 = vadd.f32 %v2481, %v2550
    %v2552 = vand.u32 %v398, 4294901760
    %2553 = vmatmul.f32.gmra.mxu0 %v2552
    %v2554 = vpop.f32.mrf.mxu0
    %v2555 = vadd.f32 %v2489, %v2554
    %v2556 = vand.u32 %v401, 4294901760
    %2557 = vmatmul.f32.gmra.mxu0 %v2556
    %v2558 = vpop.f32.mrf.mxu0
    %v2559 = vadd.f32 %v2497, %v2558
    %v2560 = vand.u32 %v404, 4294901760
    %2561 = vmatmul.f32.gmra.mxu0 %v2560
    %v2562 = vpop.f32.mrf.mxu0
    %v2563 = vadd.f32 %v2505, %v2562
    %v2564 = vand.u32 %v407, 4294901760
    %2565 = vmatmul.f32.gmra.mxu0 %v2564
    %v2566 = vpop.f32.mrf.mxu0
    %v2567 = vadd.f32 %v2513, %v2566
    %2568 = vdwg.mxu0
    %2569 = vmatpush.msra.mxu0 0.0
    %2570 = vmatpush.msra.mxu0 0.0
    %2571 = vmatpush.msra.mxu0 0.0
    %2572 = vmatpush.msra.mxu0 0.0
    %2573 = vmatpush.msra.mxu0 0.0
    %2574 = vmatpush.msra.mxu0 0.0
    %2575 = vmatpush.msra.mxu0 0.0
    %2576 = vmatpush.msra.mxu0 0.0
    %2577 = vmatpush.msra.mxu0 0.0
    %2578 = vmatpush.msra.mxu0 0.0
    %2579 = vmatpush.msra.mxu0 0.0
    %2580 = vmatpush.msra.mxu0 0.0
    %2581 = vmatpush.msra.mxu0 0.0
    %2582 = vmatpush.msra.mxu0 0.0
    %2583 = vmatpush.msra.mxu0 0.0
    %v2584 = vand.u32 %v2431, 4294901760
    %v2585 = vsub.f32 %v2431, %v2584
    %2586 = vmatpush.msra.mxu0 %v2585
    %v2587 = vand.u32 %v386, 4294901760
    %v2588 = vsub.f32 %v386, %v2587
    %2589 = vmatmul.f32.gmra.mxu0 %v2588
    %v2590 = vpop.f32.mrf.mxu0
    %v2591 = vadd.f32 %v2539, %v2590
    %v2592 = vand.u32 %v389, 4294901760
    %v2593 = vsub.f32 %v389, %v2592
    %2594 = vmatmul.f32.gmra.mxu0 %v2593
    %v2595 = vpop.f32.mrf.mxu0
    %v2596 = vadd.f32 %v2543, %v2595
    %v2597 = vand.u32 %v392, 4294901760
    %v2598 = vsub.f32 %v392, %v2597
    %2599 = vmatmul.f32.gmra.mxu0 %v2598
    %v2600 = vpop.f32.mrf.mxu0
    %v2601 = vadd.f32 %v2547, %v2600
    %v2602 = vand.u32 %v395, 4294901760
    %v2603 = vsub.f32 %v395, %v2602
    %2604 = vmatmul.f32.gmra.mxu0 %v2603
    %v2605 = vpop.f32.mrf.mxu0
    %v2606 = vadd.f32 %v2551, %v2605
    %v2607 = vand.u32 %v398, 4294901760
    %v2608 = vsub.f32 %v398, %v2607
    %2609 = vmatmul.f32.gmra.mxu0 %v2608
    %v2610 = vpop.f32.mrf.mxu0
    %v2611 = vadd.f32 %v2555, %v2610
    %v2612 = vand.u32 %v401, 4294901760
    %v2613 = vsub.f32 %v401, %v2612
    %2614 = vmatmul.f32.gmra.mxu0 %v2613
    %v2615 = vpop.f32.mrf.mxu0
    %v2616 = vadd.f32 %v2559, %v2615
    %v2617 = vand.u32 %v404, 4294901760
    %v2618 = vsub.f32 %v404, %v2617
    %2619 = vmatmul.f32.gmra.mxu0 %v2618
    %v2620 = vpop.f32.mrf.mxu0
    %v2621 = vadd.f32 %v2563, %v2620
    %v2622 = vand.u32 %v407, 4294901760
    %v2623 = vsub.f32 %v407, %v2622
    %2624 = vmatmul.f32.gmra.mxu0 %v2623
    %v2625 = vpop.f32.mrf.mxu0
    %v2626 = vadd.f32 %v2567, %v2625
    %2627 = vdwg.mxu0
    %2628 = vmatpush.msra.mxu0 0.0
    %2629 = vmatpush.msra.mxu0 0.0
    %2630 = vmatpush.msra.mxu0 0.0
    %2631 = vmatpush.msra.mxu0 0.0
    %2632 = vmatpush.msra.mxu0 0.0
    %2633 = vmatpush.msra.mxu0 0.0
    %2634 = vmatpush.msra.mxu0 0.0
    %2635 = vmatpush.msra.mxu0 0.0
    %2636 = vmatpush.msra.mxu0 0.0
    %2637 = vmatpush.msra.mxu0 0.0
    %2638 = vmatpush.msra.mxu0 0.0
    %2639 = vmatpush.msra.mxu0 0.0
    %2640 = vmatpush.msra.mxu0 0.0
    %2641 = vmatpush.msra.mxu0 0.0
    %2642 = vmatpush.msra.mxu0 0.0
    %v2643 = vand.u32 %v2431, 4294901760
    %2644 = vmatpush.msra.mxu0 %v2643
    %v2645 = vand.u32 %v386, 4294901760
    %v2646 = vsub.f32 %v386, %v2645
    %v2647 = vand.u32 %v2646, 4294901760
    %2648 = vmatmul.f32.gmra.mxu0 %v2647
    %v2649 = vpop.f32.mrf.mxu0
    %v2650 = vadd.f32 %v2591, %v2649
    %v2651 = vand.u32 %v389, 4294901760
    %v2652 = vsub.f32 %v389, %v2651
    %v2653 = vand.u32 %v2652, 4294901760
    %2654 = vmatmul.f32.gmra.mxu0 %v2653
    %v2655 = vpop.f32.mrf.mxu0
    %v2656 = vadd.f32 %v2596, %v2655
    %v2657 = vand.u32 %v392, 4294901760
    %v2658 = vsub.f32 %v392, %v2657
    %v2659 = vand.u32 %v2658, 4294901760
    %2660 = vmatmul.f32.gmra.mxu0 %v2659
    %v2661 = vpop.f32.mrf.mxu0
    %v2662 = vadd.f32 %v2601, %v2661
    %v2663 = vand.u32 %v395, 4294901760
    %v2664 = vsub.f32 %v395, %v2663
    %v2665 = vand.u32 %v2664, 4294901760
    %2666 = vmatmul.f32.gmra.mxu0 %v2665
    %v2667 = vpop.f32.mrf.mxu0
    %v2668 = vadd.f32 %v2606, %v2667
    %v2669 = vand.u32 %v398, 4294901760
    %v2670 = vsub.f32 %v398, %v2669
    %v2671 = vand.u32 %v2670, 4294901760
    %2672 = vmatmul.f32.gmra.mxu0 %v2671
    %v2673 = vpop.f32.mrf.mxu0
    %v2674 = vadd.f32 %v2611, %v2673
    %v2675 = vand.u32 %v401, 4294901760
    %v2676 = vsub.f32 %v401, %v2675
    %v2677 = vand.u32 %v2676, 4294901760
    %2678 = vmatmul.f32.gmra.mxu0 %v2677
    %v2679 = vpop.f32.mrf.mxu0
    %v2680 = vadd.f32 %v2616, %v2679
    %v2681 = vand.u32 %v404, 4294901760
    %v2682 = vsub.f32 %v404, %v2681
    %v2683 = vand.u32 %v2682, 4294901760
    %2684 = vmatmul.f32.gmra.mxu0 %v2683
    %v2685 = vpop.f32.mrf.mxu0
    %v2686 = vadd.f32 %v2621, %v2685
    %v2687 = vand.u32 %v407, 4294901760
    %v2688 = vsub.f32 %v407, %v2687
    %v2689 = vand.u32 %v2688, 4294901760
    %2690 = vmatmul.f32.gmra.mxu0 %v2689
    %v2691 = vpop.f32.mrf.mxu0
    %v2692 = vadd.f32 %v2626, %v2691
    %2693 = vdwg.mxu0
    %2694 = vmatpush.msra.mxu0 0.0
    %2695 = vmatpush.msra.mxu0 0.0
    %2696 = vmatpush.msra.mxu0 0.0
    %2697 = vmatpush.msra.mxu0 0.0
    %2698 = vmatpush.msra.mxu0 0.0
    %2699 = vmatpush.msra.mxu0 0.0
    %2700 = vmatpush.msra.mxu0 0.0
    %2701 = vmatpush.msra.mxu0 0.0
    %2702 = vmatpush.msra.mxu0 0.0
    %2703 = vmatpush.msra.mxu0 0.0
    %2704 = vmatpush.msra.mxu0 0.0
    %2705 = vmatpush.msra.mxu0 0.0
    %2706 = vmatpush.msra.mxu0 0.0
    %2707 = vmatpush.msra.mxu0 0.0
    %2708 = vmatpush.msra.mxu0 0.0
    %v2709 = vand.u32 %v2431, 4294901760
    %v2710 = vsub.f32 %v2431, %v2709
    %v2711 = vand.u32 %v2710, 4294901760
    %2712 = vmatpush.msra.mxu0 %v2711
    %v2713 = vand.u32 %v386, 4294901760
    %2714 = vmatmul.f32.gmra.mxu0 %v2713
    %v2715 = vpop.f32.mrf.mxu0
    %v2716 = vadd.f32 %v2650, %v2715
    %v2717 = vand.u32 %v389, 4294901760
    %2718 = vmatmul.f32.gmra.mxu0 %v2717
    %v2719 = vpop.f32.mrf.mxu0
    %v2720 = vadd.f32 %v2656, %v2719
    %v2721 = vand.u32 %v392, 4294901760
    %2722 = vmatmul.f32.gmra.mxu0 %v2721
    %v2723 = vpop.f32.mrf.mxu0
    %v2724 = vadd.f32 %v2662, %v2723
    %v2725 = vand.u32 %v395, 4294901760
    %2726 = vmatmul.f32.gmra.mxu0 %v2725
    %v2727 = vpop.f32.mrf.mxu0
    %v2728 = vadd.f32 %v2668, %v2727
    %v2729 = vand.u32 %v398, 4294901760
    %2730 = vmatmul.f32.gmra.mxu0 %v2729
    %v2731 = vpop.f32.mrf.mxu0
    %v2732 = vadd.f32 %v2674, %v2731
    %v2733 = vand.u32 %v401, 4294901760
    %2734 = vmatmul.f32.gmra.mxu0 %v2733
    %v2735 = vpop.f32.mrf.mxu0
    %v2736 = vadd.f32 %v2680, %v2735
    %v2737 = vand.u32 %v404, 4294901760
    %2738 = vmatmul.f32.gmra.mxu0 %v2737
    %v2739 = vpop.f32.mrf.mxu0
    %v2740 = vadd.f32 %v2686, %v2739
    %v2741 = vand.u32 %v407, 4294901760
    %2742 = vmatmul.f32.gmra.mxu0 %v2741
    %v2743 = vpop.f32.mrf.mxu0
    %v2744 = vadd.f32 %v2692, %v2743
    %2745 = vdwg.mxu0
    %2746 = vmatpush.msra.mxu0 0.0
    %2747 = vmatpush.msra.mxu0 0.0
    %2748 = vmatpush.msra.mxu0 0.0
    %2749 = vmatpush.msra.mxu0 0.0
    %2750 = vmatpush.msra.mxu0 0.0
    %2751 = vmatpush.msra.mxu0 0.0
    %2752 = vmatpush.msra.mxu0 0.0
    %2753 = vmatpush.msra.mxu0 0.0
    %2754 = vmatpush.msra.mxu0 0.0
    %2755 = vmatpush.msra.mxu0 0.0
    %2756 = vmatpush.msra.mxu0 0.0
    %2757 = vmatpush.msra.mxu0 0.0
    %2758 = vmatpush.msra.mxu0 0.0
    %2759 = vmatpush.msra.mxu0 0.0
    %2760 = vmatpush.msra.mxu0 0.0
    %v2761 = vand.u32 %v2431, 4294901760
    %2762 = vmatpush.msra.mxu0 %v2761
    %v2763 = vand.u32 %v386, 4294901760
    %2764 = vmatmul.f32.gmra.mxu0 %v2763
    %v2765 = vpop.f32.mrf.mxu0
    %v2766 = vadd.f32 %v2716, %v2765
    %v2767 = vand.u32 %v389, 4294901760
    %2768 = vmatmul.f32.gmra.mxu0 %v2767
    %v2769 = vpop.f32.mrf.mxu0
    %v2770 = vadd.f32 %v2720, %v2769
    %v2771 = vand.u32 %v392, 4294901760
    %2772 = vmatmul.f32.gmra.mxu0 %v2771
    %v2773 = vpop.f32.mrf.mxu0
    %v2774 = vadd.f32 %v2724, %v2773
    %v2775 = vand.u32 %v395, 4294901760
    %2776 = vmatmul.f32.gmra.mxu0 %v2775
    %v2777 = vpop.f32.mrf.mxu0
    %v2778 = vadd.f32 %v2728, %v2777
    %v2779 = vand.u32 %v398, 4294901760
    %2780 = vmatmul.f32.gmra.mxu0 %v2779
    %v2781 = vpop.f32.mrf.mxu0
    %v2782 = vadd.f32 %v2732, %v2781
    %v2783 = vand.u32 %v401, 4294901760
    %2784 = vmatmul.f32.gmra.mxu0 %v2783
    %v2785 = vpop.f32.mrf.mxu0
    %v2786 = vadd.f32 %v2736, %v2785
    %v2787 = vand.u32 %v404, 4294901760
    %2788 = vmatmul.f32.gmra.mxu0 %v2787
    %v2789 = vpop.f32.mrf.mxu0
    %v2790 = vadd.f32 %v2740, %v2789
    %v2791 = vand.u32 %v407, 4294901760
    %2792 = vmatmul.f32.gmra.mxu0 %v2791
    %v2793 = vpop.f32.mrf.mxu0
    %v2794 = vadd.f32 %v2744, %v2793
    %2795 = vdwg.mxu0
    %v2796 = vsel %vm776, %v2766, 0.0
    %2797 = vadd.xlane.f32.xlu0 %v2796
    %v2798 = vpop.xlane.xlu0 %2797
    %v2799 = vsel %vm776, %v2770, 0.0
    %2800 = vadd.xlane.f32.xlu0 %v2799
    %v2801 = vpop.xlane.xlu0 %2800
    %v2802 = vsel %vm776, %v2774, 0.0
    %2803 = vadd.xlane.f32.xlu0 %v2802
    %v2804 = vpop.xlane.xlu0 %2803
    %v2805 = vsel %vm776, %v2778, 0.0
    %2806 = vadd.xlane.f32.xlu0 %v2805
    %v2807 = vpop.xlane.xlu0 %2806
    %v2808 = vsel %vm776, %v2782, 0.0
    %2809 = vadd.xlane.f32.xlu0 %v2808
    %v2810 = vpop.xlane.xlu0 %2809
    %v2811 = vsel %vm776, %v2786, 0.0
    %2812 = vadd.xlane.f32.xlu0 %v2811
    %v2813 = vpop.xlane.xlu0 %2812
    %v2814 = vsel %vm776, %v2790, 0.0
    %2815 = vadd.xlane.f32.xlu0 %v2814
    %v2816 = vpop.xlane.xlu0 %2815
    %v2817 = vsel %vm776, %v2794, 0.0
    %2818 = vadd.xlane.f32.xlu0 %v2817
    %v2819 = vpop.xlane.xlu0 %2818
    %v2820 = vxor.u32 %v2798, 2147483648
    %v2821 = vxor.u32 %v2801, 2147483648
    %v2822 = vxor.u32 %v2804, 2147483648
    %v2823 = vxor.u32 %v2807, 2147483648
    %v2824 = vxor.u32 %v2810, 2147483648
    %v2825 = vxor.u32 %v2813, 2147483648
    %v2826 = vxor.u32 %v2816, 2147483648
    %v2827 = vxor.u32 %v2819, 2147483648
    %v2828 = vmul.f32 %v2820, 1.442695
    %v2829 = vpow.pop %v2828
    %v2830 = vmul.f32 %v2821, 1.442695
    %v2831 = vpow.pop %v2830
    %v2832 = vmul.f32 %v2822, 1.442695
    %v2833 = vpow.pop %v2832
    %v2834 = vmul.f32 %v2823, 1.442695
    %v2835 = vpow.pop %v2834
    %v2836 = vmul.f32 %v2824, 1.442695
    %v2837 = vpow.pop %v2836
    %v2838 = vmul.f32 %v2825, 1.442695
    %v2839 = vpow.pop %v2838
    %v2840 = vmul.f32 %v2826, 1.442695
    %v2841 = vpow.pop %v2840
    %v2842 = vmul.f32 %v2827, 1.442695
    %v2843 = vpow.pop %v2842
    %v2844 = vadd.f32 %v2829, 1.0
    %v2845 = vadd.f32 %v2831, 1.0
    %v2846 = vadd.f32 %v2833, 1.0
    %v2847 = vadd.f32 %v2835, 1.0
    %v2848 = vadd.f32 %v2837, 1.0
    %v2849 = vadd.f32 %v2839, 1.0
    %v2850 = vadd.f32 %v2841, 1.0
    %v2851 = vadd.f32 %v2843, 1.0
    %v2852 = vrcp.pop %v2844
    %v2853 = vmul.f32 %v2844, %v2852
    %v2854 = vsub.f32 1.0, %v2853
    %v2855 = vmul.f32 %v2852, %v2854
    %v2856 = vadd.f32 %v2852, %v2855
    %vm2857 = vweird.f32 %v2844
    %vm2858 = vweird.f32 %v2852
    %vm2859 = vmor %vm2857, %vm2858
    %v2860 = vsel %vm2859, %v2852, %v2856
    %v2861 = vand.u32 2147483647, %v2844
    %vm2862 = vcmp.eq.f32.partialorder %v2861, 8.507059e+37
    %v2863 = vand.u32 %v2844, 2147483648
    %v2864 = vor.u32 1.1754944e-38, %v2863
    %v2865 = vsel %vm2862, %v2864, %v2860
    %v2866 = vmul.f32 1.0, %v2865
    %v2867 = vrcp.pop %v2845
    %v2868 = vmul.f32 %v2845, %v2867
    %v2869 = vsub.f32 1.0, %v2868
    %v2870 = vmul.f32 %v2867, %v2869
    %v2871 = vadd.f32 %v2867, %v2870
    %vm2872 = vweird.f32 %v2845
    %vm2873 = vweird.f32 %v2867
    %vm2874 = vmor %vm2872, %vm2873
    %v2875 = vsel %vm2874, %v2867, %v2871
    %v2876 = vand.u32 2147483647, %v2845
    %vm2877 = vcmp.eq.f32.partialorder %v2876, 8.507059e+37
    %v2878 = vand.u32 %v2845, 2147483648
    %v2879 = vor.u32 1.1754944e-38, %v2878
    %v2880 = vsel %vm2877, %v2879, %v2875
    %v2881 = vmul.f32 1.0, %v2880
    %v2882 = vrcp.pop %v2846
    %v2883 = vmul.f32 %v2846, %v2882
    %v2884 = vsub.f32 1.0, %v2883
    %v2885 = vmul.f32 %v2882, %v2884
    %v2886 = vadd.f32 %v2882, %v2885
    %vm2887 = vweird.f32 %v2846
    %vm2888 = vweird.f32 %v2882
    %vm2889 = vmor %vm2887, %vm2888
    %v2890 = vsel %vm2889, %v2882, %v2886
    %v2891 = vand.u32 2147483647, %v2846
    %vm2892 = vcmp.eq.f32.partialorder %v2891, 8.507059e+37
    %v2893 = vand.u32 %v2846, 2147483648
    %v2894 = vor.u32 1.1754944e-38, %v2893
    %v2895 = vsel %vm2892, %v2894, %v2890
    %v2896 = vmul.f32 1.0, %v2895
    %v2897 = vrcp.pop %v2847
    %v2898 = vmul.f32 %v2847, %v2897
    %v2899 = vsub.f32 1.0, %v2898
    %v2900 = vmul.f32 %v2897, %v2899
    %v2901 = vadd.f32 %v2897, %v2900
    %vm2902 = vweird.f32 %v2847
    %vm2903 = vweird.f32 %v2897
    %vm2904 = vmor %vm2902, %vm2903
    %v2905 = vsel %vm2904, %v2897, %v2901
    %v2906 = vand.u32 2147483647, %v2847
    %vm2907 = vcmp.eq.f32.partialorder %v2906, 8.507059e+37
    %v2908 = vand.u32 %v2847, 2147483648
    %v2909 = vor.u32 1.1754944e-38, %v2908
    %v2910 = vsel %vm2907, %v2909, %v2905
    %v2911 = vmul.f32 1.0, %v2910
    %v2912 = vrcp.pop %v2848
    %v2913 = vmul.f32 %v2848, %v2912
    %v2914 = vsub.f32 1.0, %v2913
    %v2915 = vmul.f32 %v2912, %v2914
    %v2916 = vadd.f32 %v2912, %v2915
    %vm2917 = vweird.f32 %v2848
    %vm2918 = vweird.f32 %v2912
    %vm2919 = vmor %vm2917, %vm2918
    %v2920 = vsel %vm2919, %v2912, %v2916
    %v2921 = vand.u32 2147483647, %v2848
    %vm2922 = vcmp.eq.f32.partialorder %v2921, 8.507059e+37
    %v2923 = vand.u32 %v2848, 2147483648
    %v2924 = vor.u32 1.1754944e-38, %v2923
    %v2925 = vsel %vm2922, %v2924, %v2920
    %v2926 = vmul.f32 1.0, %v2925
    %v2927 = vrcp.pop %v2849
    %v2928 = vmul.f32 %v2849, %v2927
    %v2929 = vsub.f32 1.0, %v2928
    %v2930 = vmul.f32 %v2927, %v2929
    %v2931 = vadd.f32 %v2927, %v2930
    %vm2932 = vweird.f32 %v2849
    %vm2933 = vweird.f32 %v2927
    %vm2934 = vmor %vm2932, %vm2933
    %v2935 = vsel %vm2934, %v2927, %v2931
    %v2936 = vand.u32 2147483647, %v2849
    %vm2937 = vcmp.eq.f32.partialorder %v2936, 8.507059e+37
    %v2938 = vand.u32 %v2849, 2147483648
    %v2939 = vor.u32 1.1754944e-38, %v2938
    %v2940 = vsel %vm2937, %v2939, %v2935
    %v2941 = vmul.f32 1.0, %v2940
    %v2942 = vrcp.pop %v2850
    %v2943 = vmul.f32 %v2850, %v2942
    %v2944 = vsub.f32 1.0, %v2943
    %v2945 = vmul.f32 %v2942, %v2944
    %v2946 = vadd.f32 %v2942, %v2945
    %vm2947 = vweird.f32 %v2850
    %vm2948 = vweird.f32 %v2942
    %vm2949 = vmor %vm2947, %vm2948
    %v2950 = vsel %vm2949, %v2942, %v2946
    %v2951 = vand.u32 2147483647, %v2850
    %vm2952 = vcmp.eq.f32.partialorder %v2951, 8.507059e+37
    %v2953 = vand.u32 %v2850, 2147483648
    %v2954 = vor.u32 1.1754944e-38, %v2953
    %v2955 = vsel %vm2952, %v2954, %v2950
    %v2956 = vmul.f32 1.0, %v2955
    %v2957 = vrcp.pop %v2851
    %v2958 = vmul.f32 %v2851, %v2957
    %v2959 = vsub.f32 1.0, %v2958
    %v2960 = vmul.f32 %v2957, %v2959
    %v2961 = vadd.f32 %v2957, %v2960
    %vm2962 = vweird.f32 %v2851
    %vm2963 = vweird.f32 %v2957
    %vm2964 = vmor %vm2962, %vm2963
    %v2965 = vsel %vm2964, %v2957, %v2961
    %v2966 = vand.u32 2147483647, %v2851
    %vm2967 = vcmp.eq.f32.partialorder %v2966, 8.507059e+37
    %v2968 = vand.u32 %v2851, 2147483648
    %v2969 = vor.u32 1.1754944e-38, %v2968
    %v2970 = vsel %vm2967, %v2969, %v2965
    %v2971 = vmul.f32 1.0, %v2970
    %v2972 = vmul.f32 %v2112, %v2866
    %v2973 = vmul.f32 %v2113, %v2866
    %v2974 = vmul.f32 %v2114, %v2881
    %v2975 = vmul.f32 %v2115, %v2881
    %v2976 = vmul.f32 %v2116, %v2896
    %v2977 = vmul.f32 %v2117, %v2896
    %v2978 = vmul.f32 %v2118, %v2911
    %v2979 = vmul.f32 %v2119, %v2911
    %v2980 = vmul.f32 %v2120, %v2926
    %v2981 = vmul.f32 %v2121, %v2926
    %v2982 = vmul.f32 %v2122, %v2941
    %v2983 = vmul.f32 %v2123, %v2941
    %v2984 = vmul.f32 %v2124, %v2956
    %v2985 = vmul.f32 %v2125, %v2956
    %v2986 = vmul.f32 %v2126, %v2971
    %v2987 = vmul.f32 %v2127, %v2971
    %v2988 = vmax.f32 %v2972, %v2976
    %v2989 = vmax.f32 %v2974, %v2978
    %v2990 = vmax.f32 %v2988, %v2980
    %v2991 = vmax.f32 %v2989, %v2982
    %v2992 = vmax.f32 %v2990, %v2984
    %v2993 = vmax.f32 %v2991, %v2986
    %v2994 = vmax.f32 %v2992, %v2993
    %v2995 = vrot.slane %v2994, 4
    %v2996 = vmax.f32 %v2994, %v2995
    %v2997 = vrot.slane %v2996, 2
    %v2998 = vmax.f32 %v2996, %v2997
    %v2999 = vrot.slane %v2998, 1
    %v3000 = vmax.f32 %v2998, %v2999
    %v3001 = vmax.f32 %v2973, %v2977
    %v3002 = vmax.f32 %v2975, %v2979
    %v3003 = vmax.f32 %v3001, %v2981
    %v3004 = vmax.f32 %v3002, %v2983
    %v3005 = vmax.f32 %v3003, %v2985
    %v3006 = vmax.f32 %v3004, %v2987
    %v3007 = vmax.f32 %v3005, %v3006
    %v3008 = vrot.slane %v3007, 4
    %v3009 = vmax.f32 %v3007, %v3008
    %v3010 = vrot.slane %v3009, 2
    %v3011 = vmax.f32 %v3009, %v3010
    %v3012 = vrot.slane %v3011, 1
    %v3013 = vmax.f32 %v3011, %v3012
    %v3014 = vadd.f32 %v2972, %v2974
    %v3015 = vadd.f32 %v3014, %v2976
    %v3016 = vadd.f32 %v3015, %v2978
    %v3017 = vadd.f32 %v3016, %v2980
    %v3018 = vadd.f32 %v3017, %v2982
    %v3019 = vadd.f32 %v3018, %v2984
    %v3020 = vadd.f32 %v3019, %v2986
    %v3021 = vrot.slane %v3020, 4
    %v3022 = vadd.f32 %v3020, %v3021
    %v3023 = vrot.slane %v3022, 2
    %v3024 = vadd.f32 %v3022, %v3023
    %v3025 = vrot.slane %v3024, 1
    %v3026 = vadd.f32 %v3024, %v3025
    %v3027 = vadd.f32 %v2973, %v2975
    %v3028 = vadd.f32 %v3027, %v2977
    %v3029 = vadd.f32 %v3028, %v2979
    %v3030 = vadd.f32 %v3029, %v2981
    %v3031 = vadd.f32 %v3030, %v2983
    %v3032 = vadd.f32 %v3031, %v2985
    %v3033 = vadd.f32 %v3032, %v2987
    %v3034 = vrot.slane %v3033, 4
    %v3035 = vadd.f32 %v3033, %v3034
    %v3036 = vrot.slane %v3035, 2
    %v3037 = vadd.f32 %v3035, %v3036
    %v3038 = vrot.slane %v3037, 1
    %v3039 = vadd.f32 %v3037, %v3038
    %v3040 = vmul.f32 %v3026, 0.015625
    %v3041 = vmul.f32 %v3039, 0.015625
    %v3042 = vsel %vm1025, %v3000, %v3040
    %v3043 = vsel %vm1025, %v3013, %v3041
    %3044 = vrot.lane.b32.xlu0 %v3042, 51
    %v3045 = vpop.permute.xlu0 %3044
    %3046 = vrot.lane.b32.xlu0 %v3043, 51
    %v3047 = vpop.permute.xlu0 %3046
    %v3048 = vsel %vm1032, %v3045, %v3047
    %v3049 = vsel %vm1032, %v3047, %v3045
    %v3050 = vld [vmem:[#allocation5] sm:$0x3]
    %v3051 = vld [vmem:[#allocation5 + $0x8] sm:$0x3]
    %v3052 = vmul.f32 %v3050, %v3049
    %v3053 = vmul.f32 %v3051, %v3048
    %v3054 = vadd.f32 %v3052, 0.0
    %v3055 = vadd.f32 %v3053, 0.0
    %3056 = vrot.lane.b32.xlu0 %v3042, 50
    %v3057 = vpop.permute.xlu0 %3056
    %3058 = vrot.lane.b32.xlu0 %v3043, 50
    %v3059 = vpop.permute.xlu0 %3058
    %v3060 = vsel %vm1045, %v3057, %v3059
    %v3061 = vsel %vm1045, %v3059, %v3057
    %v3062 = vld [vmem:[#allocation5] sm:$0xc]
    %v3063 = vld [vmem:[#allocation5 + $0x8] sm:$0xc]
    %v3066 = vrot.slane %v3061, 6
    %v3067 = vrot.slane %v3060, 6
    %v3070 = vmul.f32 %v3062, %v3066
    %v3071 = vmul.f32 %v3063, %v3067
    %v3072 = vadd.f32 %v3070, 0.0
    %v3073 = vadd.f32 %v3071, 0.0
    %3074 = vrot.lane.b32.xlu0 %v3042, 49
    %v3075 = vpop.permute.xlu0 %3074
    %3076 = vrot.lane.b32.xlu0 %v3043, 49
    %v3077 = vpop.permute.xlu0 %3076
    %v3078 = vsel %vm1064, %v3075, %v3077
    %v3079 = vsel %vm1064, %v3077, %v3075
    %v3080 = vld [vmem:[#allocation5] sm:$0x30]
    %v3081 = vld [vmem:[#allocation5 + $0x8] sm:$0x30]
    %v3084 = vrot.slane %v3079, 4
    %v3085 = vrot.slane %v3078, 4
    %v3088 = vmul.f32 %v3080, %v3084
    %v3089 = vmul.f32 %v3081, %v3085
    %v3092 = vrot.slane %v3088, 4
    %v3093 = vrot.slane %v3089, 4
    %v3096 = vadd.f32 %v3054, %v3092
    %v3097 = vadd.f32 %v3055, %v3093
    %3098 = vrot.lane.b32.xlu0 %v3042, 48
    %v3099 = vpop.permute.xlu0 %3098
    %3100 = vrot.lane.b32.xlu0 %v3043, 48
    %v3101 = vpop.permute.xlu0 %3100
    %v3102 = vsel %vm1089, %v3099, %v3101
    %v3103 = vsel %vm1089, %v3101, %v3099
    %v3104 = vld [vmem:[#allocation5] sm:$0xc0]
    %v3105 = vld [vmem:[#allocation5 + $0x8] sm:$0xc0]
    %v3108 = vrot.slane %v3103, 2
    %v3109 = vrot.slane %v3102, 2
    %v3112 = vmul.f32 %v3104, %v3108
    %v3113 = vmul.f32 %v3105, %v3109
    %v3116 = vrot.slane %v3112, 4
    %v3117 = vrot.slane %v3113, 4
    %v3120 = vadd.f32 %v3072, %v3116
    %v3121 = vadd.f32 %v3073, %v3117
    %3122 = vrot.lane.b32.xlu0 %v3042, 47
    %v3123 = vpop.permute.xlu0 %3122
    %3124 = vrot.lane.b32.xlu0 %v3043, 47
    %v3125 = vpop.permute.xlu0 %3124
    %v3126 = vsel %vm1114, %v3123, %v3125
    %v3127 = vsel %vm1114, %v3125, %v3123
    %v3128 = vld [vmem:[#allocation5 + $0x10] sm:$0x3]
    %v3129 = vld [vmem:[#allocation5 + $0x18] sm:$0x3]
    %v3130 = vmul.f32 %v3128, %v3127
    %v3131 = vmul.f32 %v3129, %v3126
    %v3132 = vadd.f32 %v3096, %v3130
    %v3133 = vadd.f32 %v3097, %v3131
    %3134 = vrot.lane.b32.xlu0 %v3042, 46
    %v3135 = vpop.permute.xlu0 %3134
    %3136 = vrot.lane.b32.xlu0 %v3043, 46
    %v3137 = vpop.permute.xlu0 %3136
    %v3138 = vsel %vm1127, %v3135, %v3137
    %v3139 = vsel %vm1127, %v3137, %v3135
    %v3140 = vld [vmem:[#allocation5 + $0x10] sm:$0xc]
    %v3141 = vld [vmem:[#allocation5 + $0x18] sm:$0xc]
    %v3144 = vrot.slane %v3139, 6
    %v3145 = vrot.slane %v3138, 6
    %v3148 = vmul.f32 %v3140, %v3144
    %v3149 = vmul.f32 %v3141, %v3145
    %v3150 = vadd.f32 %v3120, %v3148
    %v3151 = vadd.f32 %v3121, %v3149
    %3152 = vrot.lane.b32.xlu0 %v3042, 45
    %v3153 = vpop.permute.xlu0 %3152
    %3154 = vrot.lane.b32.xlu0 %v3043, 45
    %v3155 = vpop.permute.xlu0 %3154
    %v3156 = vsel %vm1146, %v3153, %v3155
    %v3157 = vsel %vm1146, %v3155, %v3153
    %v3158 = vld [vmem:[#allocation5 + $0x10] sm:$0x30]
    %v3159 = vld [vmem:[#allocation5 + $0x18] sm:$0x30]
    %v3162 = vrot.slane %v3157, 4
    %v3163 = vrot.slane %v3156, 4
    %v3166 = vmul.f32 %v3158, %v3162
    %v3167 = vmul.f32 %v3159, %v3163
    %v3170 = vrot.slane %v3166, 4
    %v3171 = vrot.slane %v3167, 4
    %v3174 = vadd.f32 %v3132, %v3170
    %v3175 = vadd.f32 %v3133, %v3171
    %3176 = vrot.lane.b32.xlu0 %v3042, 35
    %v3177 = vpop.permute.xlu0 %3176
    %3178 = vrot.lane.b32.xlu0 %v3043, 35
    %v3179 = vpop.permute.xlu0 %3178
    %v3180 = vsel %vm1171, %v3177, %v3179
    %v3181 = vsel %vm1171, %v3179, %v3177
    %v3182 = vld [vmem:[#allocation5 + $0x10] sm:$0xc0]
    %v3183 = vld [vmem:[#allocation5 + $0x18] sm:$0xc0]
    %v3186 = vrot.slane %v3181, 2
    %v3187 = vrot.slane %v3180, 2
    %v3190 = vmul.f32 %v3182, %v3186
    %v3191 = vmul.f32 %v3183, %v3187
    %v3194 = vrot.slane %v3190, 4
    %v3195 = vrot.slane %v3191, 4
    %v3198 = vadd.f32 %v3150, %v3194
    %v3199 = vadd.f32 %v3151, %v3195
    %3200 = vrot.lane.b32.xlu0 %v3042, 34
    %v3201 = vpop.permute.xlu0 %3200
    %3202 = vrot.lane.b32.xlu0 %v3043, 34
    %v3203 = vpop.permute.xlu0 %3202
    %v3204 = vsel %vm1196, %v3201, %v3203
    %v3205 = vsel %vm1196, %v3203, %v3201
    %v3206 = vld [vmem:[#allocation5 + $0x20] sm:$0x3]
    %v3207 = vld [vmem:[#allocation5 + $0x28] sm:$0x3]
    %v3208 = vmul.f32 %v3206, %v3205
    %v3209 = vmul.f32 %v3207, %v3204
    %v3210 = vadd.f32 %v3174, %v3208
    %v3211 = vadd.f32 %v3175, %v3209
    %3212 = vrot.lane.b32.xlu0 %v3042, 33
    %v3213 = vpop.permute.xlu0 %3212
    %3214 = vrot.lane.b32.xlu0 %v3043, 33
    %v3215 = vpop.permute.xlu0 %3214
    %v3216 = vsel %vm1209, %v3213, %v3215
    %v3217 = vsel %vm1209, %v3215, %v3213
    %v3218 = vld [vmem:[#allocation5 + $0x20] sm:$0xc]
    %v3219 = vld [vmem:[#allocation5 + $0x28] sm:$0xc]
    %v3222 = vrot.slane %v3217, 6
    %v3223 = vrot.slane %v3216, 6
    %v3226 = vmul.f32 %v3218, %v3222
    %v3227 = vmul.f32 %v3219, %v3223
    %v3228 = vadd.f32 %v3198, %v3226
    %v3229 = vadd.f32 %v3199, %v3227
    %3230 = vrot.lane.b32.xlu0 %v3042, 32
    %v3231 = vpop.permute.xlu0 %3230
    %3232 = vrot.lane.b32.xlu0 %v3043, 32
    %v3233 = vpop.permute.xlu0 %3232
    %v3234 = vsel %vm1228, %v3231, %v3233
    %v3235 = vsel %vm1228, %v3233, %v3231
    %v3236 = vld [vmem:[#allocation5 + $0x20] sm:$0x30]
    %v3237 = vld [vmem:[#allocation5 + $0x28] sm:$0x30]
    %v3240 = vrot.slane %v3235, 4
    %v3241 = vrot.slane %v3234, 4
    %v3244 = vmul.f32 %v3236, %v3240
    %v3245 = vmul.f32 %v3237, %v3241
    %v3248 = vrot.slane %v3244, 4
    %v3249 = vrot.slane %v3245, 4
    %v3252 = vadd.f32 %v3210, %v3248
    %v3253 = vadd.f32 %v3211, %v3249
    %3254 = vrot.lane.b32.xlu0 %v3042, 31
    %v3255 = vpop.permute.xlu0 %3254
    %3256 = vrot.lane.b32.xlu0 %v3043, 31
    %v3257 = vpop.permute.xlu0 %3256
    %v3258 = vsel %vm1253, %v3255, %v3257
    %v3259 = vsel %vm1253, %v3257, %v3255
    %v3260 = vld [vmem:[#allocation5 + $0x20] sm:$0xc0]
    %v3261 = vld [vmem:[#allocation5 + $0x28] sm:$0xc0]
    %v3264 = vrot.slane %v3259, 2
    %v3265 = vrot.slane %v3258, 2
    %v3268 = vmul.f32 %v3260, %v3264
    %v3269 = vmul.f32 %v3261, %v3265
    %v3272 = vrot.slane %v3268, 4
    %v3273 = vrot.slane %v3269, 4
    %v3276 = vadd.f32 %v3228, %v3272
    %v3277 = vadd.f32 %v3229, %v3273
    %3278 = vrot.lane.b32.xlu0 %v3042, 30
    %v3279 = vpop.permute.xlu0 %3278
    %3280 = vrot.lane.b32.xlu0 %v3043, 30
    %v3281 = vpop.permute.xlu0 %3280
    %v3282 = vsel %vm1278, %v3279, %v3281
    %v3283 = vsel %vm1278, %v3281, %v3279
    %v3284 = vld [vmem:[#allocation5 + $0x30] sm:$0x3]
    %v3285 = vld [vmem:[#allocation5 + $0x38] sm:$0x3]
    %v3286 = vmul.f32 %v3284, %v3283
    %v3287 = vmul.f32 %v3285, %v3282
    %v3288 = vadd.f32 %v3252, %v3286
    %v3289 = vadd.f32 %v3253, %v3287
    %3290 = vrot.lane.b32.xlu0 %v3042, 29
    %v3291 = vpop.permute.xlu0 %3290
    %3292 = vrot.lane.b32.xlu0 %v3043, 29
    %v3293 = vpop.permute.xlu0 %3292
    %v3294 = vsel %vm1291, %v3291, %v3293
    %v3295 = vsel %vm1291, %v3293, %v3291
    %v3296 = vld [vmem:[#allocation5 + $0x30] sm:$0xc]
    %v3297 = vld [vmem:[#allocation5 + $0x38] sm:$0xc]
    %v3300 = vrot.slane %v3295, 6
    %v3301 = vrot.slane %v3294, 6
    %v3304 = vmul.f32 %v3296, %v3300
    %v3305 = vmul.f32 %v3297, %v3301
    %v3306 = vadd.f32 %v3276, %v3304
    %v3307 = vadd.f32 %v3277, %v3305
    %3308 = vrot.lane.b32.xlu0 %v3042, 19
    %v3309 = vpop.permute.xlu0 %3308
    %3310 = vrot.lane.b32.xlu0 %v3043, 19
    %v3311 = vpop.permute.xlu0 %3310
    %v3312 = vsel %vm1310, %v3309, %v3311
    %v3313 = vsel %vm1310, %v3311, %v3309
    %v3314 = vld [vmem:[#allocation5 + $0x30] sm:$0x30]
    %v3315 = vld [vmem:[#allocation5 + $0x38] sm:$0x30]
    %v3318 = vrot.slane %v3313, 4
    %v3319 = vrot.slane %v3312, 4
    %v3322 = vmul.f32 %v3314, %v3318
    %v3323 = vmul.f32 %v3315, %v3319
    %v3326 = vrot.slane %v3322, 4
    %v3327 = vrot.slane %v3323, 4
    %v3330 = vadd.f32 %v3288, %v3326
    %v3331 = vadd.f32 %v3289, %v3327
    %3332 = vrot.lane.b32.xlu0 %v3042, 18
    %v3333 = vpop.permute.xlu0 %3332
    %3334 = vrot.lane.b32.xlu0 %v3043, 18
    %v3335 = vpop.permute.xlu0 %3334
    %v3336 = vsel %vm1335, %v3333, %v3335
    %v3337 = vsel %vm1335, %v3335, %v3333
    %v3338 = vld [vmem:[#allocation5 + $0x30] sm:$0xc0]
    %v3339 = vld [vmem:[#allocation5 + $0x38] sm:$0xc0]
    %v3342 = vrot.slane %v3337, 2
    %v3343 = vrot.slane %v3336, 2
    %v3346 = vmul.f32 %v3338, %v3342
    %v3347 = vmul.f32 %v3339, %v3343
    %v3350 = vrot.slane %v3346, 4
    %v3351 = vrot.slane %v3347, 4
    %v3354 = vadd.f32 %v3306, %v3350
    %v3355 = vadd.f32 %v3307, %v3351
    %3356 = vrot.lane.b32.xlu0 %v3042, 17
    %v3357 = vpop.permute.xlu0 %3356
    %3358 = vrot.lane.b32.xlu0 %v3043, 17
    %v3359 = vpop.permute.xlu0 %3358
    %v3360 = vsel %vm1360, %v3357, %v3359
    %v3361 = vsel %vm1360, %v3359, %v3357
    %v3362 = vld [vmem:[#allocation5 + $0x40] sm:$0x3]
    %v3363 = vld [vmem:[#allocation5 + $0x48] sm:$0x3]
    %v3364 = vmul.f32 %v3362, %v3361
    %v3365 = vmul.f32 %v3363, %v3360
    %v3366 = vadd.f32 %v3330, %v3364
    %v3367 = vadd.f32 %v3331, %v3365
    %3368 = vrot.lane.b32.xlu0 %v3042, 16
    %v3369 = vpop.permute.xlu0 %3368
    %3370 = vrot.lane.b32.xlu0 %v3043, 16
    %v3371 = vpop.permute.xlu0 %3370
    %v3372 = vsel %vm1373, %v3369, %v3371
    %v3373 = vsel %vm1373, %v3371, %v3369
    %v3374 = vld [vmem:[#allocation5 + $0x40] sm:$0xc]
    %v3375 = vld [vmem:[#allocation5 + $0x48] sm:$0xc]
    %v3378 = vrot.slane %v3373, 6
    %v3379 = vrot.slane %v3372, 6
    %v3382 = vmul.f32 %v3374, %v3378
    %v3383 = vmul.f32 %v3375, %v3379
    %v3384 = vadd.f32 %v3354, %v3382
    %v3385 = vadd.f32 %v3355, %v3383
    %3386 = vrot.lane.b32.xlu0 %v3042, 15
    %v3387 = vpop.permute.xlu0 %3386
    %3388 = vrot.lane.b32.xlu0 %v3043, 15
    %v3389 = vpop.permute.xlu0 %3388
    %v3390 = vsel %vm1392, %v3387, %v3389
    %v3391 = vsel %vm1392, %v3389, %v3387
    %v3392 = vld [vmem:[#allocation5 + $0x40] sm:$0x30]
    %v3393 = vld [vmem:[#allocation5 + $0x48] sm:$0x30]
    %v3396 = vrot.slane %v3391, 4
    %v3397 = vrot.slane %v3390, 4
    %v3400 = vmul.f32 %v3392, %v3396
    %v3401 = vmul.f32 %v3393, %v3397
    %v3404 = vrot.slane %v3400, 4
    %v3405 = vrot.slane %v3401, 4
    %v3408 = vadd.f32 %v3366, %v3404
    %v3409 = vadd.f32 %v3367, %v3405
    %3410 = vrot.lane.b32.xlu0 %v3042, 14
    %v3411 = vpop.permute.xlu0 %3410
    %3412 = vrot.lane.b32.xlu0 %v3043, 14
    %v3413 = vpop.permute.xlu0 %3412
    %v3414 = vsel %vm1417, %v3411, %v3413
    %v3415 = vsel %vm1417, %v3413, %v3411
    %v3416 = vld [vmem:[#allocation5 + $0x40] sm:$0xc0]
    %v3417 = vld [vmem:[#allocation5 + $0x48] sm:$0xc0]
    %v3420 = vrot.slane %v3415, 2
    %v3421 = vrot.slane %v3414, 2
    %v3424 = vmul.f32 %v3416, %v3420
    %v3425 = vmul.f32 %v3417, %v3421
    %v3428 = vrot.slane %v3424, 4
    %v3429 = vrot.slane %v3425, 4
    %v3432 = vadd.f32 %v3384, %v3428
    %v3433 = vadd.f32 %v3385, %v3429
    %3434 = vrot.lane.b32.xlu0 %v3042, 13
    %v3435 = vpop.permute.xlu0 %3434
    %3436 = vrot.lane.b32.xlu0 %v3043, 13
    %v3437 = vpop.permute.xlu0 %3436
    %v3438 = vsel %vm1442, %v3435, %v3437
    %v3439 = vsel %vm1442, %v3437, %v3435
    %v3440 = vld [vmem:[#allocation5 + $0x50] sm:$0x3]
    %v3441 = vld [vmem:[#allocation5 + $0x58] sm:$0x3]
    %v3442 = vmul.f32 %v3440, %v3439
    %v3443 = vmul.f32 %v3441, %v3438
    %v3444 = vadd.f32 %v3408, %v3442
    %v3445 = vadd.f32 %v3409, %v3443
    %3446 = vrot.lane.b32.xlu0 %v3042, 3
    %v3447 = vpop.permute.xlu0 %3446
    %3448 = vrot.lane.b32.xlu0 %v3043, 3
    %v3449 = vpop.permute.xlu0 %3448
    %v3450 = vsel %vm1455, %v3447, %v3449
    %v3451 = vsel %vm1455, %v3449, %v3447
    %v3452 = vld [vmem:[#allocation5 + $0x50] sm:$0xc]
    %v3453 = vld [vmem:[#allocation5 + $0x58] sm:$0xc]
    %v3456 = vrot.slane %v3451, 6
    %v3457 = vrot.slane %v3450, 6
    %v3460 = vmul.f32 %v3452, %v3456
    %v3461 = vmul.f32 %v3453, %v3457
    %v3462 = vadd.f32 %v3432, %v3460
    %v3463 = vadd.f32 %v3433, %v3461
    %3464 = vrot.lane.b32.xlu0 %v3042, 2
    %v3465 = vpop.permute.xlu0 %3464
    %3466 = vrot.lane.b32.xlu0 %v3043, 2
    %v3467 = vpop.permute.xlu0 %3466
    %v3468 = vsel %vm1474, %v3465, %v3467
    %v3469 = vsel %vm1474, %v3467, %v3465
    %v3470 = vld [vmem:[#allocation5 + $0x50] sm:$0x30]
    %v3471 = vld [vmem:[#allocation5 + $0x58] sm:$0x30]
    %v3474 = vrot.slane %v3469, 4
    %v3475 = vrot.slane %v3468, 4
    %v3478 = vmul.f32 %v3470, %v3474
    %v3479 = vmul.f32 %v3471, %v3475
    %v3482 = vrot.slane %v3478, 4
    %v3483 = vrot.slane %v3479, 4
    %v3486 = vadd.f32 %v3444, %v3482
    %v3487 = vadd.f32 %v3445, %v3483
    %3488 = vrot.lane.b32.xlu0 %v3042, 1
    %v3489 = vpop.permute.xlu0 %3488
    %3490 = vrot.lane.b32.xlu0 %v3043, 1
    %v3491 = vpop.permute.xlu0 %3490
    %v3492 = vsel %vm1499, %v3489, %v3491
    %v3493 = vsel %vm1499, %v3491, %v3489
    %v3494 = vld [vmem:[#allocation5 + $0x50] sm:$0xc0]
    %v3495 = vld [vmem:[#allocation5 + $0x58] sm:$0xc0]
    %v3498 = vrot.slane %v3493, 2
    %v3499 = vrot.slane %v3492, 2
    %v3502 = vmul.f32 %v3494, %v3498
    %v3503 = vmul.f32 %v3495, %v3499
    %v3506 = vrot.slane %v3502, 4
    %v3507 = vrot.slane %v3503, 4
    %v3510 = vadd.f32 %v3462, %v3506
    %v3511 = vadd.f32 %v3463, %v3507
    %v3512 = vld [vmem:[#allocation5 + $0x60] sm:$0x3]
    %v3513 = vld [vmem:[#allocation5 + $0x68] sm:$0x3]
    %v3514 = vmul.f32 %v3512, %v3042
    %v3515 = vmul.f32 %v3513, %v3043
    %v3516 = vadd.f32 %v3486, %v3514
    %v3517 = vadd.f32 %v3487, %v3515
    %3518 = vrot.lane.b32.xlu0 %v3042, 127
    %v3519 = vpop.permute.xlu0 %3518
    %3520 = vrot.lane.b32.xlu0 %v3043, 127
    %v3521 = vpop.permute.xlu0 %3520
    %v3522 = vsel %vm1530, %v3519, %v3521
    %v3523 = vsel %vm1530, %v3521, %v3519
    %v3524 = vld [vmem:[#allocation5 + $0x60] sm:$0xc]
    %v3525 = vld [vmem:[#allocation5 + $0x68] sm:$0xc]
    %v3528 = vrot.slane %v3522, 6
    %v3529 = vrot.slane %v3523, 6
    %v3532 = vmul.f32 %v3524, %v3528
    %v3533 = vmul.f32 %v3525, %v3529
    %v3534 = vadd.f32 %v3510, %v3532
    %v3535 = vadd.f32 %v3511, %v3533
    %3536 = vrot.lane.b32.xlu0 %v3042, 126
    %v3537 = vpop.permute.xlu0 %3536
    %3538 = vrot.lane.b32.xlu0 %v3043, 126
    %v3539 = vpop.permute.xlu0 %3538
    %v3540 = vsel %vm1549, %v3537, %v3539
    %v3541 = vsel %vm1549, %v3539, %v3537
    %v3542 = vld [vmem:[#allocation5 + $0x60] sm:$0x30]
    %v3543 = vld [vmem:[#allocation5 + $0x68] sm:$0x30]
    %v3546 = vrot.slane %v3540, 4
    %v3547 = vrot.slane %v3541, 4
    %v3550 = vmul.f32 %v3542, %v3546
    %v3551 = vmul.f32 %v3543, %v3547
    %v3554 = vrot.slane %v3550, 4
    %v3555 = vrot.slane %v3551, 4
    %v3558 = vadd.f32 %v3516, %v3554
    %v3559 = vadd.f32 %v3517, %v3555
    %3560 = vrot.lane.b32.xlu0 %v3042, 125
    %v3561 = vpop.permute.xlu0 %3560
    %3562 = vrot.lane.b32.xlu0 %v3043, 125
    %v3563 = vpop.permute.xlu0 %3562
    %v3564 = vsel %vm1574, %v3561, %v3563
    %v3565 = vsel %vm1574, %v3563, %v3561
    %v3566 = vld [vmem:[#allocation5 + $0x60] sm:$0xc0]
    %v3567 = vld [vmem:[#allocation5 + $0x68] sm:$0xc0]
    %v3570 = vrot.slane %v3564, 2
    %v3571 = vrot.slane %v3565, 2
    %v3574 = vmul.f32 %v3566, %v3570
    %v3575 = vmul.f32 %v3567, %v3571
    %v3578 = vrot.slane %v3574, 4
    %v3579 = vrot.slane %v3575, 4
    %v3582 = vadd.f32 %v3534, %v3578
    %v3583 = vadd.f32 %v3535, %v3579
    %3584 = vrot.lane.b32.xlu0 %v3042, 115
    %v3585 = vpop.permute.xlu0 %3584
    %3586 = vrot.lane.b32.xlu0 %v3043, 115
    %v3587 = vpop.permute.xlu0 %3586
    %v3588 = vsel %vm1599, %v3585, %v3587
    %v3589 = vsel %vm1599, %v3587, %v3585
    %v3590 = vld [vmem:[#allocation5 + $0x70] sm:$0x3]
    %v3591 = vld [vmem:[#allocation5 + $0x78] sm:$0x3]
    %v3592 = vmul.f32 %v3590, %v3588
    %v3593 = vmul.f32 %v3591, %v3589
    %v3594 = vadd.f32 %v3558, %v3592
    %v3595 = vadd.f32 %v3559, %v3593
    %3596 = vrot.lane.b32.xlu0 %v3042, 114
    %v3597 = vpop.permute.xlu0 %3596
    %3598 = vrot.lane.b32.xlu0 %v3043, 114
    %v3599 = vpop.permute.xlu0 %3598
    %v3600 = vsel %vm1612, %v3597, %v3599
    %v3601 = vsel %vm1612, %v3599, %v3597
    %v3602 = vld [vmem:[#allocation5 + $0x70] sm:$0xc]
    %v3603 = vld [vmem:[#allocation5 + $0x78] sm:$0xc]
    %v3606 = vrot.slane %v3600, 6
    %v3607 = vrot.slane %v3601, 6
    %v3610 = vmul.f32 %v3602, %v3606
    %v3611 = vmul.f32 %v3603, %v3607
    %v3612 = vadd.f32 %v3582, %v3610
    %v3613 = vadd.f32 %v3583, %v3611
    %3614 = vrot.lane.b32.xlu0 %v3042, 113
    %v3615 = vpop.permute.xlu0 %3614
    %3616 = vrot.lane.b32.xlu0 %v3043, 113
    %v3617 = vpop.permute.xlu0 %3616
    %v3618 = vsel %vm1631, %v3615, %v3617
    %v3619 = vsel %vm1631, %v3617, %v3615
    %v3620 = vld [vmem:[#allocation5 + $0x70] sm:$0x30]
    %v3621 = vld [vmem:[#allocation5 + $0x78] sm:$0x30]
    %v3624 = vrot.slane %v3618, 4
    %v3625 = vrot.slane %v3619, 4
    %v3628 = vmul.f32 %v3620, %v3624
    %v3629 = vmul.f32 %v3621, %v3625
    %v3632 = vrot.slane %v3628, 4
    %v3633 = vrot.slane %v3629, 4
    %v3636 = vadd.f32 %v3594, %v3632
    %v3637 = vadd.f32 %v3595, %v3633
    %3638 = vrot.lane.b32.xlu0 %v3042, 112
    %v3639 = vpop.permute.xlu0 %3638
    %3640 = vrot.lane.b32.xlu0 %v3043, 112
    %v3641 = vpop.permute.xlu0 %3640
    %v3642 = vsel %vm1656, %v3639, %v3641
    %v3643 = vsel %vm1656, %v3641, %v3639
    %v3644 = vld [vmem:[#allocation5 + $0x70] sm:$0xc0]
    %v3645 = vld [vmem:[#allocation5 + $0x78] sm:$0xc0]
    %v3648 = vrot.slane %v3642, 2
    %v3649 = vrot.slane %v3643, 2
    %v3652 = vmul.f32 %v3644, %v3648
    %v3653 = vmul.f32 %v3645, %v3649
    %v3656 = vrot.slane %v3652, 4
    %v3657 = vrot.slane %v3653, 4
    %v3660 = vadd.f32 %v3612, %v3656
    %v3661 = vadd.f32 %v3613, %v3657
    %3662 = vrot.lane.b32.xlu0 %v3042, 111
    %v3663 = vpop.permute.xlu0 %3662
    %3664 = vrot.lane.b32.xlu0 %v3043, 111
    %v3665 = vpop.permute.xlu0 %3664
    %v3666 = vsel %vm1681, %v3663, %v3665
    %v3667 = vsel %vm1681, %v3665, %v3663
    %v3668 = vld [vmem:[#allocation5 + $0x80] sm:$0x3]
    %v3669 = vld [vmem:[#allocation5 + $0x88] sm:$0x3]
    %v3670 = vmul.f32 %v3668, %v3666
    %v3671 = vmul.f32 %v3669, %v3667
    %v3672 = vadd.f32 %v3636, %v3670
    %v3673 = vadd.f32 %v3637, %v3671
    %3674 = vrot.lane.b32.xlu0 %v3042, 110
    %v3675 = vpop.permute.xlu0 %3674
    %3676 = vrot.lane.b32.xlu0 %v3043, 110
    %v3677 = vpop.permute.xlu0 %3676
    %v3678 = vsel %vm1694, %v3675, %v3677
    %v3679 = vsel %vm1694, %v3677, %v3675
    %v3680 = vld [vmem:[#allocation5 + $0x80] sm:$0xc]
    %v3681 = vld [vmem:[#allocation5 + $0x88] sm:$0xc]
    %v3684 = vrot.slane %v3678, 6
    %v3685 = vrot.slane %v3679, 6
    %v3688 = vmul.f32 %v3680, %v3684
    %v3689 = vmul.f32 %v3681, %v3685
    %v3690 = vadd.f32 %v3660, %v3688
    %v3691 = vadd.f32 %v3661, %v3689
    %3692 = vrot.lane.b32.xlu0 %v3042, 109
    %v3693 = vpop.permute.xlu0 %3692
    %3694 = vrot.lane.b32.xlu0 %v3043, 109
    %v3695 = vpop.permute.xlu0 %3694
    %v3696 = vsel %vm1713, %v3693, %v3695
    %v3697 = vsel %vm1713, %v3695, %v3693
    %v3698 = vld [vmem:[#allocation5 + $0x80] sm:$0x30]
    %v3699 = vld [vmem:[#allocation5 + $0x88] sm:$0x30]
    %v3702 = vrot.slane %v3696, 4
    %v3703 = vrot.slane %v3697, 4
    %v3706 = vmul.f32 %v3698, %v3702
    %v3707 = vmul.f32 %v3699, %v3703
    %v3710 = vrot.slane %v3706, 4
    %v3711 = vrot.slane %v3707, 4
    %v3714 = vadd.f32 %v3672, %v3710
    %v3715 = vadd.f32 %v3673, %v3711
    %3716 = vrot.lane.b32.xlu0 %v3042, 99
    %v3717 = vpop.permute.xlu0 %3716
    %3718 = vrot.lane.b32.xlu0 %v3043, 99
    %v3719 = vpop.permute.xlu0 %3718
    %v3720 = vsel %vm1738, %v3717, %v3719
    %v3721 = vsel %vm1738, %v3719, %v3717
    %v3722 = vld [vmem:[#allocation5 + $0x80] sm:$0xc0]
    %v3723 = vld [vmem:[#allocation5 + $0x88] sm:$0xc0]
    %v3726 = vrot.slane %v3720, 2
    %v3727 = vrot.slane %v3721, 2
    %v3730 = vmul.f32 %v3722, %v3726
    %v3731 = vmul.f32 %v3723, %v3727
    %v3734 = vrot.slane %v3730, 4
    %v3735 = vrot.slane %v3731, 4
    %v3738 = vadd.f32 %v3690, %v3734
    %v3739 = vadd.f32 %v3691, %v3735
    %3740 = vrot.lane.b32.xlu0 %v3042, 98
    %v3741 = vpop.permute.xlu0 %3740
    %3742 = vrot.lane.b32.xlu0 %v3043, 98
    %v3743 = vpop.permute.xlu0 %3742
    %v3744 = vsel %vm1763, %v3741, %v3743
    %v3745 = vsel %vm1763, %v3743, %v3741
    %v3746 = vld [vmem:[#allocation5 + $0x90] sm:$0x3]
    %v3747 = vld [vmem:[#allocation5 + $0x98] sm:$0x3]
    %v3748 = vmul.f32 %v3746, %v3744
    %v3749 = vmul.f32 %v3747, %v3745
    %v3750 = vadd.f32 %v3714, %v3748
    %v3751 = vadd.f32 %v3715, %v3749
    %3752 = vrot.lane.b32.xlu0 %v3042, 97
    %v3753 = vpop.permute.xlu0 %3752
    %3754 = vrot.lane.b32.xlu0 %v3043, 97
    %v3755 = vpop.permute.xlu0 %3754
    %v3756 = vsel %vm1776, %v3753, %v3755
    %v3757 = vsel %vm1776, %v3755, %v3753
    %v3758 = vld [vmem:[#allocation5 + $0x90] sm:$0xc]
    %v3759 = vld [vmem:[#allocation5 + $0x98] sm:$0xc]
    %v3762 = vrot.slane %v3756, 6
    %v3763 = vrot.slane %v3757, 6
    %v3766 = vmul.f32 %v3758, %v3762
    %v3767 = vmul.f32 %v3759, %v3763
    %v3768 = vadd.f32 %v3738, %v3766
    %v3769 = vadd.f32 %v3739, %v3767
    %3770 = vrot.lane.b32.xlu0 %v3042, 96
    %v3771 = vpop.permute.xlu0 %3770
    %3772 = vrot.lane.b32.xlu0 %v3043, 96
    %v3773 = vpop.permute.xlu0 %3772
    %v3774 = vsel %vm1795, %v3771, %v3773
    %v3775 = vsel %vm1795, %v3773, %v3771
    %v3776 = vld [vmem:[#allocation5 + $0x90] sm:$0x30]
    %v3777 = vld [vmem:[#allocation5 + $0x98] sm:$0x30]
    %v3780 = vrot.slane %v3774, 4
    %v3781 = vrot.slane %v3775, 4
    %v3784 = vmul.f32 %v3776, %v3780
    %v3785 = vmul.f32 %v3777, %v3781
    %v3788 = vrot.slane %v3784, 4
    %v3789 = vrot.slane %v3785, 4
    %v3792 = vadd.f32 %v3750, %v3788
    %v3793 = vadd.f32 %v3751, %v3789
    %3794 = vrot.lane.b32.xlu0 %v3042, 95
    %v3795 = vpop.permute.xlu0 %3794
    %3796 = vrot.lane.b32.xlu0 %v3043, 95
    %v3797 = vpop.permute.xlu0 %3796
    %v3798 = vsel %vm1820, %v3795, %v3797
    %v3799 = vsel %vm1820, %v3797, %v3795
    %v3800 = vld [vmem:[#allocation5 + $0x90] sm:$0xc0]
    %v3801 = vld [vmem:[#allocation5 + $0x98] sm:$0xc0]
    %v3804 = vrot.slane %v3798, 2
    %v3805 = vrot.slane %v3799, 2
    %v3808 = vmul.f32 %v3800, %v3804
    %v3809 = vmul.f32 %v3801, %v3805
    %v3812 = vrot.slane %v3808, 4
    %v3813 = vrot.slane %v3809, 4
    %v3816 = vadd.f32 %v3768, %v3812
    %v3817 = vadd.f32 %v3769, %v3813
    %3818 = vrot.lane.b32.xlu0 %v3042, 94
    %v3819 = vpop.permute.xlu0 %3818
    %3820 = vrot.lane.b32.xlu0 %v3043, 94
    %v3821 = vpop.permute.xlu0 %3820
    %v3822 = vsel %vm1845, %v3819, %v3821
    %v3823 = vsel %vm1845, %v3821, %v3819
    %v3824 = vld [vmem:[#allocation5 + $0xa0] sm:$0x3]
    %v3825 = vld [vmem:[#allocation5 + $0xa8] sm:$0x3]
    %v3826 = vmul.f32 %v3824, %v3822
    %v3827 = vmul.f32 %v3825, %v3823
    %v3828 = vadd.f32 %v3792, %v3826
    %v3829 = vadd.f32 %v3793, %v3827
    %3830 = vrot.lane.b32.xlu0 %v3042, 93
    %v3831 = vpop.permute.xlu0 %3830
    %3832 = vrot.lane.b32.xlu0 %v3043, 93
    %v3833 = vpop.permute.xlu0 %3832
    %v3834 = vsel %vm1858, %v3831, %v3833
    %v3835 = vsel %vm1858, %v3833, %v3831
    %v3836 = vld [vmem:[#allocation5 + $0xa0] sm:$0xc]
    %v3837 = vld [vmem:[#allocation5 + $0xa8] sm:$0xc]
    %v3840 = vrot.slane %v3834, 6
    %v3841 = vrot.slane %v3835, 6
    %v3844 = vmul.f32 %v3836, %v3840
    %v3845 = vmul.f32 %v3837, %v3841
    %v3846 = vadd.f32 %v3816, %v3844
    %v3847 = vadd.f32 %v3817, %v3845
    %3848 = vrot.lane.b32.xlu0 %v3042, 83
    %v3849 = vpop.permute.xlu0 %3848
    %3850 = vrot.lane.b32.xlu0 %v3043, 83
    %v3851 = vpop.permute.xlu0 %3850
    %v3852 = vsel %vm1877, %v3849, %v3851
    %v3853 = vsel %vm1877, %v3851, %v3849
    %v3854 = vld [vmem:[#allocation5 + $0xa0] sm:$0x30]
    %v3855 = vld [vmem:[#allocation5 + $0xa8] sm:$0x30]
    %v3858 = vrot.slane %v3852, 4
    %v3859 = vrot.slane %v3853, 4
    %v3862 = vmul.f32 %v3854, %v3858
    %v3863 = vmul.f32 %v3855, %v3859
    %v3866 = vrot.slane %v3862, 4
    %v3867 = vrot.slane %v3863, 4
    %v3870 = vadd.f32 %v3828, %v3866
    %v3871 = vadd.f32 %v3829, %v3867
    %3872 = vrot.lane.b32.xlu0 %v3042, 82
    %v3873 = vpop.permute.xlu0 %3872
    %3874 = vrot.lane.b32.xlu0 %v3043, 82
    %v3875 = vpop.permute.xlu0 %3874
    %v3876 = vsel %vm1902, %v3873, %v3875
    %v3877 = vsel %vm1902, %v3875, %v3873
    %v3878 = vld [vmem:[#allocation5 + $0xa0] sm:$0xc0]
    %v3879 = vld [vmem:[#allocation5 + $0xa8] sm:$0xc0]
    %v3882 = vrot.slane %v3876, 2
    %v3883 = vrot.slane %v3877, 2
    %v3886 = vmul.f32 %v3878, %v3882
    %v3887 = vmul.f32 %v3879, %v3883
    %v3890 = vrot.slane %v3886, 4
    %v3891 = vrot.slane %v3887, 4
    %v3894 = vadd.f32 %v3846, %v3890
    %v3895 = vadd.f32 %v3847, %v3891
    %3896 = vrot.lane.b32.xlu0 %v3042, 81
    %v3897 = vpop.permute.xlu0 %3896
    %3898 = vrot.lane.b32.xlu0 %v3043, 81
    %v3899 = vpop.permute.xlu0 %3898
    %v3900 = vsel %vm1927, %v3897, %v3899
    %v3901 = vsel %vm1927, %v3899, %v3897
    %v3902 = vld [vmem:[#allocation5 + $0xb0] sm:$0x3]
    %v3903 = vld [vmem:[#allocation5 + $0xb8] sm:$0x3]
    %v3904 = vmul.f32 %v3902, %v3900
    %v3905 = vmul.f32 %v3903, %v3901
    %v3906 = vadd.f32 %v3870, %v3904
    %v3907 = vadd.f32 %v3871, %v3905
    %3908 = vrot.lane.b32.xlu0 %v3042, 80
    %v3909 = vpop.permute.xlu0 %3908
    %3910 = vrot.lane.b32.xlu0 %v3043, 80
    %v3911 = vpop.permute.xlu0 %3910
    %v3912 = vsel %vm1940, %v3909, %v3911
    %v3913 = vsel %vm1940, %v3911, %v3909
    %v3914 = vld [vmem:[#allocation5 + $0xb0] sm:$0xc]
    %v3915 = vld [vmem:[#allocation5 + $0xb8] sm:$0xc]
    %v3918 = vrot.slane %v3912, 6
    %v3919 = vrot.slane %v3913, 6
    %v3922 = vmul.f32 %v3914, %v3918
    %v3923 = vmul.f32 %v3915, %v3919
    %v3924 = vadd.f32 %v3894, %v3922
    %v3925 = vadd.f32 %v3895, %v3923
    %3926 = vrot.lane.b32.xlu0 %v3042, 79
    %v3927 = vpop.permute.xlu0 %3926
    %3928 = vrot.lane.b32.xlu0 %v3043, 79
    %v3929 = vpop.permute.xlu0 %3928
    %v3930 = vsel %vm1959, %v3927, %v3929
    %v3931 = vsel %vm1959, %v3929, %v3927
    %v3932 = vld [vmem:[#allocation5 + $0xb0] sm:$0x30]
    %v3933 = vld [vmem:[#allocation5 + $0xb8] sm:$0x30]
    %v3936 = vrot.slane %v3930, 4
    %v3937 = vrot.slane %v3931, 4
    %v3940 = vmul.f32 %v3932, %v3936
    %v3941 = vmul.f32 %v3933, %v3937
    %v3944 = vrot.slane %v3940, 4
    %v3945 = vrot.slane %v3941, 4
    %v3948 = vadd.f32 %v3906, %v3944
    %v3949 = vadd.f32 %v3907, %v3945
    %3950 = vrot.lane.b32.xlu0 %v3042, 78
    %v3951 = vpop.permute.xlu0 %3950
    %3952 = vrot.lane.b32.xlu0 %v3043, 78
    %v3953 = vpop.permute.xlu0 %3952
    %v3954 = vsel %vm1984, %v3951, %v3953
    %v3955 = vsel %vm1984, %v3953, %v3951
    %v3956 = vld [vmem:[#allocation5 + $0xb0] sm:$0xc0]
    %v3957 = vld [vmem:[#allocation5 + $0xb8] sm:$0xc0]
    %v3960 = vrot.slane %v3954, 2
    %v3961 = vrot.slane %v3955, 2
    %v3964 = vmul.f32 %v3956, %v3960
    %v3965 = vmul.f32 %v3957, %v3961
    %v3968 = vrot.slane %v3964, 4
    %v3969 = vrot.slane %v3965, 4
    %v3972 = vadd.f32 %v3924, %v3968
    %v3973 = vadd.f32 %v3925, %v3969
    %3974 = vrot.lane.b32.xlu0 %v3042, 77
    %v3975 = vpop.permute.xlu0 %3974
    %3976 = vrot.lane.b32.xlu0 %v3043, 77
    %v3977 = vpop.permute.xlu0 %3976
    %v3978 = vsel %vm2009, %v3975, %v3977
    %v3979 = vsel %vm2009, %v3977, %v3975
    %v3980 = vld [vmem:[#allocation5 + $0xc0] sm:$0x3]
    %v3981 = vld [vmem:[#allocation5 + $0xc8] sm:$0x3]
    %v3982 = vmul.f32 %v3980, %v3978
    %v3983 = vmul.f32 %v3981, %v3979
    %v3984 = vadd.f32 %v3948, %v3982
    %v3985 = vadd.f32 %v3949, %v3983
    %v3988 = vrot.slane %v3972, 2
    %v3989 = vrot.slane %v3973, 2
    %v3992 = vadd.f32 %v3984, %v3988
    %v3993 = vadd.f32 %v3985, %v3989
    %v3994 = vsel %vm2026, %v3992, 0.0
    %v3995 = vrot.slane %v3994, 4
    %v3996 = vadd.f32 %v3994, %v3995
    %v3997 = vrot.slane %v3996, 2
    %v3998 = vadd.f32 %v3996, %v3997
    %v3999 = vrot.slane %v3998, 1
    %v4000 = vadd.f32 %v3998, %v3999
    %v4001 = vsel %vm2026, %v3993, 0.0
    %v4002 = vrot.slane %v4001, 4
    %v4003 = vadd.f32 %v4001, %v4002
    %v4004 = vrot.slane %v4003, 2
    %v4005 = vadd.f32 %v4003, %v4004
    %v4006 = vrot.slane %v4005, 1
    %v4007 = vadd.f32 %v4005, %v4006
    %v4008 = vxor.u32 %v4000, 2147483648
    %v4009 = vxor.u32 %v4007, 2147483648
    %v4010 = vmul.f32 %v4008, 1.442695
    %v4011 = vpow.pop %v4010
    %v4012 = vmul.f32 %v4009, 1.442695
    %v4013 = vpow.pop %v4012
    %v4014 = vadd.f32 %v4011, 1.0
    %v4015 = vadd.f32 %v4013, 1.0
    %v4016 = vrcp.pop %v4014
    %v4017 = vmul.f32 %v4014, %v4016
    %v4018 = vsub.f32 1.0, %v4017
    %v4019 = vmul.f32 %v4016, %v4018
    %v4020 = vadd.f32 %v4016, %v4019
    %vm4021 = vweird.f32 %v4014
    %vm4022 = vweird.f32 %v4016
    %vm4023 = vmor %vm4021, %vm4022
    %v4024 = vsel %vm4023, %v4016, %v4020
    %v4025 = vand.u32 2147483647, %v4014
    %vm4026 = vcmp.eq.f32.partialorder %v4025, 8.507059e+37
    %v4027 = vand.u32 %v4014, 2147483648
    %v4028 = vor.u32 1.1754944e-38, %v4027
    %v4029 = vsel %vm4026, %v4028, %v4024
    %v4030 = vmul.f32 1.0, %v4029
    %v4031 = vrcp.pop %v4015
    %v4032 = vmul.f32 %v4015, %v4031
    %v4033 = vsub.f32 1.0, %v4032
    %v4034 = vmul.f32 %v4031, %v4033
    %v4035 = vadd.f32 %v4031, %v4034
    %vm4036 = vweird.f32 %v4015
    %vm4037 = vweird.f32 %v4031
    %vm4038 = vmor %vm4036, %vm4037
    %v4039 = vsel %vm4038, %v4031, %v4035
    %v4040 = vand.u32 2147483647, %v4015
    %vm4041 = vcmp.eq.f32.partialorder %v4040, 8.507059e+37
    %v4042 = vand.u32 %v4015, 2147483648
    %v4043 = vor.u32 1.1754944e-38, %v4042
    %v4044 = vsel %vm4041, %v4043, %v4039
    %v4045 = vmul.f32 1.0, %v4044
    %v4046 = vmul.f32 %v2972, %v4030
    %v4047 = vmul.f32 %v2973, %v4045
    %v4048 = vmul.f32 %v2974, %v4030
    %v4049 = vmul.f32 %v2975, %v4045
    %v4050 = vmul.f32 %v2976, %v4030
    %v4051 = vmul.f32 %v2977, %v4045
    %v4052 = vmul.f32 %v2978, %v4030
    %v4053 = vmul.f32 %v2979, %v4045
    %v4054 = vmul.f32 %v2980, %v4030
    %v4055 = vmul.f32 %v2981, %v4045
    %v4056 = vmul.f32 %v2982, %v4030
    %v4057 = vmul.f32 %v2983, %v4045
    %v4058 = vmul.f32 %v2984, %v4030
    %v4059 = vmul.f32 %v2985, %v4045
    %v4060 = vmul.f32 %v2986, %v4030
    %v4061 = vmul.f32 %v2987, %v4045
    %s4062 = scalar_lea.vmem [#allocation7], 128
    %4063 = vst [vmem:[%s4062] sm:$0xff] %v4046
    %4064 = vst [vmem:[%s4062 + $0x8] sm:$0xff] %v4047
    %4065 = vst [vmem:[%s4062 + $0x10] sm:$0xff] %v4048
    %4066 = vst [vmem:[%s4062 + $0x18] sm:$0xff] %v4049
    %4067 = vst [vmem:[%s4062 + $0x20] sm:$0xff] %v4050
    %4068 = vst [vmem:[%s4062 + $0x28] sm:$0xff] %v4051
    %4069 = vst [vmem:[%s4062 + $0x30] sm:$0xff] %v4052
    %4070 = vst [vmem:[%s4062 + $0x38] sm:$0xff] %v4053
    %4071 = vst [vmem:[%s4062 + $0x40] sm:$0xff] %v4054
    %4072 = vst [vmem:[%s4062 + $0x48] sm:$0xff] %v4055
    %4073 = vst [vmem:[%s4062 + $0x50] sm:$0xff] %v4056
    %4074 = vst [vmem:[%s4062 + $0x58] sm:$0xff] %v4057
    %4075 = vst [vmem:[%s4062 + $0x60] sm:$0xff] %v4058
    %4076 = vst [vmem:[%s4062 + $0x68] sm:$0xff] %v4059
    %4077 = vst [vmem:[%s4062 + $0x70] sm:$0xff] %v4060
    %4078 = vst [vmem:[%s4062 + $0x78] sm:$0xff] %v4061
    // Predicated region
    $region26: #{tpu_custom_call.1} parent=1 // pred_check
      _
    $region27: #{tpu_custom_call.1} parent=1 // pred_check_branch
      %4080 = sbr.rel (0) target = $region29
    $region28: #{tpu_custom_call.1} parent=1 // pred_region
      %4082 = vsyncadd [#allocation4], 0
      %s4083 = sshll.u32 [#allocation7], 4
      %s4084 = int_to_ptr.vmem [resolvable:$true] %s4083
      %s4085 = sshll.u32 %s4, 4
      %s4086 = int_to_ptr.hbm [resolvable:$true] %s4085
      %4091 = dma.vmem_to_hbm [thread:$0]  %s4084, 4096, %s4086, [#allocation4], 256, 256, 16
    $region29: #{tpu_custom_call.1} parent=1 // pred_fallthru
      _
    // Predicated region
    $region30: #{tpu_custom_call.1} parent=1 // pred_check
      _
    $region31: #{tpu_custom_call.1} parent=1 // pred_check_branch
      %4093 = sbr.rel (0) target = $region33
    $region32: #{tpu_custom_call.1} parent=1 // pred_region
      %4095 = dma.done [#allocation4], 4096
    $region33: #{tpu_custom_call.1} parent=1 // pred_fallthru
      _
    %4096 = vsyncpa [#allocation3], 1
    %4097 = vsyncpa [#allocation6], 1
    %4098 = vsyncpa [#allocation4], 1

</llo_original>
